<compile_context>
chip_gen: v7x
topology: tpu7x:2x2x1
jax: 0.10.0
libtpu: 0.0.40
codegen_flags: <defaults>
</compile_context>

<pallas_src>
import math
from functools import partial

import jax
import jax.numpy as jnp
from jax import lax
from jax.experimental import pallas as pl
from jax.experimental.pallas import tpu as pltpu


# ------------------------------ fused kernel -------------------------------- #
# gvec rows: [b_in1, b_in2, b_out1, ln_out_g, ln_out_b, b_out2]
# lvec rows (per layer): [b_o, ln1_g, ln1_b, b_ff2, ln2_g, ln2_b]

def _fused_forward_kernel(x_ref, pe_ref, w_in1_ref, w_dd_ref, gvec_ref,
                          w_qkvh_ref, b_qkvh_ref, wo_h_ref, wf1_ref, wf2_ref,
                          lvec_ref, lbf1_ref, w_out3_ref, b_out3_ref, out_ref,
                          *, num_layers, num_heads, seq_len, batch_per_step):
    S = seq_len
    Bt = batch_per_step
    rows = x_ref.shape[0]
    D = w_in1_ref.shape[1]
    H = num_heads
    hd = D // H
    assert rows == Bt * S

    def mm(a, b):
        return jnp.dot(a, b, preferred_element_type=jnp.float32)

    def ln(z, g, b, eps=1e-5):
        mu = jnp.mean(z, axis=-1, keepdims=True)
        zc = z - mu
        var = jnp.mean(zc * zc, axis=-1, keepdims=True)
        return zc * lax.rsqrt(var + eps) * g + b

    x = x_ref[...]                                               # (rows, input_dim)

    # ---- input_net: Dropout(id) -> Linear -> ReLU -> Linear, fused with +PE ----
    h = jnp.maximum(mm(x, w_in1_ref[...]) + gvec_ref[0:1, :], 0.0)
    h = mm(h, w_dd_ref[0]) + gvec_ref[1:2, :] + pe_ref[...]      # (rows, D)

    # ---- encoder layers (all weights VMEM-resident) ----
    for l in range(num_layers):
        # multi-head self-attention with head-major per-head weights (no lane slices)
        attn = None
        for hh in range(H):
            iq, ik, iv = 0 * H + hh, 1 * H + hh, 2 * H + hh
            # 1/sqrt(hd) already folded into W_q / b_q in the glue
            qh = mm(h, w_qkvh_ref[l, iq]) + b_qkvh_ref[l, iq:iq + 1, :]
            kh = mm(h, w_qkvh_ref[l, ik]) + b_qkvh_ref[l, ik:ik + 1, :]
            vh = mm(h, w_qkvh_ref[l, iv]) + b_qkvh_ref[l, iv:iv + 1, :]
            q3 = qh.reshape(Bt, S, hd)
            k3 = kh.reshape(Bt, S, hd)
            v3 = vh.reshape(Bt, S, hd)
            s = jnp.einsum("bqd,bkd->bqk", q3, k3,
                           preferred_element_type=jnp.float32)   # (Bt, S, S)
            m = jnp.max(s, axis=-1, keepdims=True)
            p = jnp.exp(s - m)
            denom = jnp.sum(p, axis=-1, keepdims=True)
            o3 = jnp.einsum("bqk,bkd->bqd", p, v3,
                            preferred_element_type=jnp.float32)  # (Bt, S, hd)
            o3 = o3 / denom                                      # exact softmax norm
            oh = o3.reshape(rows, hd)
            contrib = mm(oh, wo_h_ref[l, hh])                    # (rows, D)
            attn = contrib if attn is None else attn + contrib
        attn = attn + lvec_ref[l, 0:1, :]                        # + b_o

        h = ln(h + attn, lvec_ref[l, 1:2, :], lvec_ref[l, 2:3, :])       # add + norm1
        ff = jnp.maximum(mm(h, wf1_ref[l]) + lbf1_ref[l:l + 1, :], 0.0)  # FF1 + ReLU
        ff = mm(ff, wf2_ref[l]) + lvec_ref[l, 3:4, :]                    # FF2
        h = ln(h + ff, lvec_ref[l, 4:5, :], lvec_ref[l, 5:6, :])         # add + norm2

    # ---- output_net: Linear -> LayerNorm -> ReLU -> Dropout(id) -> Linear -> ReLU -> Linear
    o = mm(h, w_dd_ref[1]) + gvec_ref[2:3, :]
    o = jnp.maximum(ln(o, gvec_ref[3:4, :], gvec_ref[4:5, :]), 0.0)
    o = jnp.maximum(mm(o, w_dd_ref[2]) + gvec_ref[5:6, :], 0.0)
    o = mm(o, w_out3_ref[...]) + b_out3_ref[...]
    out_ref[...] = o.astype(out_ref.dtype)


# --------------------------- glue: param packing ---------------------------- #

def _pack_args(x, params, num_heads, batch_blocks):
    B, S, input_dim = x.shape
    D = params["w_in1"].shape[1]
    H = num_heads
    hd = D // H
    Bt = B // batch_blocks
    scale = 1.0 / math.sqrt(hd)
    f32 = jnp.float32

    x2 = x.reshape(B * S, input_dim).astype(f32)
    pe_block = jnp.tile(params["pe"][:S], (Bt, 1)).astype(f32)   # (Bt*S, D)

    # Global weight / vector slabs.
    w_in1 = params["w_in1"].astype(f32)
    w_dd = jnp.stack([params["w_in2"], params["w_out1"], params["w_out2"]]).astype(f32)
    w_out3 = params["w_out3"].astype(f32)
    gvec = jnp.stack([params["b_in1"], params["b_in2"], params["b_out1"],
                      params["ln_out_g"], params["ln_out_b"], params["b_out2"]]).astype(f32)
    b_out3 = params["b_out3"].reshape(1, input_dim).astype(f32)

    # Per-layer slabs (leading L axis).
    wqkvh_l, bqkvh_l, wo_l, wf1_l, wf2_l, lvec_l, lbf1_l = ([] for _ in range(7))
    for lyr in params["layers"]:
        # w_qkv is (D, 3D) in x@W form; PyTorch column layout is per-head [q | k | v].
        w3 = lyr["w_qkv"].reshape(D, H, 3, hd)
        b3 = lyr["b_qkv"].reshape(H, 3, hd)
        w_heads = jnp.transpose(w3, (2, 1, 0, 3))                # (3, H, D, hd)
        b_heads = jnp.transpose(b3, (1, 0, 2))                   # (3, H, hd)
        w_heads = w_heads.at[0].multiply(scale)                  # fold 1/sqrt(hd) into Wq
        b_heads = b_heads.at[0].multiply(scale)                  # ... and into bq
        wqkvh_l.append(w_heads.reshape(3 * H, D, hd).astype(f32))
        bqkvh_l.append(b_heads.reshape(3 * H, hd).astype(f32))
        # o_proj rows split per head -> head merge folds into the projection.
        wo_l.append(lyr["w_o"].reshape(H, hd, D).astype(f32))
        wf1_l.append(lyr["w_ff1"].astype(f32))
        wf2_l.append(lyr["w_ff2"].astype(f32))
        lvec_l.append(jnp.stack([lyr["b_o"], lyr["ln1_g"], lyr["ln1_b"],
                                 lyr["b_ff2"], lyr["ln2_g"], lyr["ln2_b"]]).astype(f32))
        lbf1_l.append(lyr["b_ff1"].astype(f32))

    stack = lambda xs: jnp.stack(xs, axis=0)
    args = [
        x2, pe_block, w_in1, w_dd, gvec,
        stack(wqkvh_l),     # (L, 3H, D, hd)
        stack(bqkvh_l),     # (L, 3H, hd)
        stack(wo_l),        # (L, H, hd, D)
        stack(wf1_l),       # (L, D, dff)
        stack(wf2_l),       # (L, dff, D)
        stack(lvec_l),      # (L, 6, D)
        stack(lbf1_l),      # (L, dff)
        w_out3, b_out3,
    ]
    return args


@partial(jax.jit, static_argnames=("num_heads", "batch_blocks"))
def transformer_predictor_forward(x, params, *, num_heads, batch_blocks=1):
    B, S, input_dim = x.shape
    assert B % batch_blocks == 0
    Bt = B // batch_blocks
    L = len(params["layers"])
    args = _pack_args(x, params, num_heads, batch_blocks)

    # x / out are tiled per batch block (rows = Bt*S folded into matmul M); all
    # weight slabs use constant block indices so they stay VMEM-resident.
    rows = Bt * S
    in_specs = [pl.BlockSpec((rows, input_dim), lambda i: (i, 0))]
    for a in args[1:]:
        in_specs.append(pl.BlockSpec(a.shape, lambda i, _nd=a.ndim: (0,) * _nd))

    # Explicit scoped-VMEM budget (defaults: 16 MiB v5e / 32 MiB v6e,v7x).
    op_bytes = sum(int(a.size) * a.dtype.itemsize for a in args) + rows * input_dim * 4
    vmem_limit = int(min(max(4 * op_bytes + (2 << 20), 32 << 20), 64 << 20))

    out = pl.pallas_call(
        partial(_fused_forward_kernel, num_layers=L, num_heads=num_heads,
                seq_len=S, batch_per_step=Bt),
        out_shape=jax.ShapeDtypeStruct((B * S, input_dim), jnp.float32),
        grid=(batch_blocks,),
        in_specs=in_specs,
        out_specs=pl.BlockSpec((rows, input_dim), lambda i: (i, 0)),
        compiler_params=pltpu.CompilerParams(
            dimension_semantics=("parallel",),
            vmem_limit_bytes=vmem_limit),
    )(*args)
    return out.reshape(B, S, input_dim)


# ------------------------------ parameters ---------------------------------- #

def sinusoidal_pe(max_len, d_model):
    position = jnp.arange(max_len, dtype=jnp.float32)[:, None]
    div_term = jnp.exp(jnp.arange(0, d_model, 2, dtype=jnp.float32)
                       * (-math.log(10000.0) / d_model))
    pe = jnp.zeros((max_len, d_model), jnp.float32)
    pe = pe.at[:, 0::2].set(jnp.sin(position * div_term))
    cos = jnp.cos(position * div_term)
    if d_model % 2 == 1:
        pe = pe.at[:, 1::2].set(cos[:, : d_model // 2])
    else:
        pe = pe.at[:, 1::2].set(cos)
    return pe


def init_params(key, input_dim, model_dim, num_layers, max_len):
    def xavier(k, fan_in, fan_out):
        lim = math.sqrt(6.0 / (fan_in + fan_out))
        return jax.random.uniform(k, (fan_in, fan_out), jnp.float32, -lim, lim)  # x @ W

    keys = iter(jax.random.split(key, 64))
    p = {
        "w_in1": xavier(next(keys), input_dim, model_dim),
        "b_in1": jnp.zeros((model_dim,), jnp.float32),
        "w_in2": xavier(next(keys), model_dim, model_dim),
        "b_in2": jnp.zeros((model_dim,), jnp.float32),
        "pe": sinusoidal_pe(max_len, model_dim),
        "w_out1": xavier(next(keys), model_dim, model_dim),
        "b_out1": jnp.zeros((model_dim,), jnp.float32),
        "ln_out_g": jnp.ones((model_dim,), jnp.float32),
        "ln_out_b": jnp.zeros((model_dim,), jnp.float32),
        "w_out2": xavier(next(keys), model_dim, model_dim),
        "b_out2": jnp.zeros((model_dim,), jnp.float32),
        "w_out3": xavier(next(keys), model_dim, input_dim),
        "b_out3": jnp.zeros((input_dim,), jnp.float32),
        "layers": [],
    }
    dff = 2 * model_dim   # EncoderBlock feedforward = 2 * model_dim (per _create_model)
    for _ in range(num_layers):
        p["layers"].append({
            "w_qkv": xavier(next(keys), model_dim, 3 * model_dim),
            "b_qkv": jnp.zeros((3 * model_dim,), jnp.float32),
            "w_o": xavier(next(keys), model_dim, model_dim),
            "b_o": jnp.zeros((model_dim,), jnp.float32),
            "ln1_g": jnp.ones((model_dim,), jnp.float32),
            "ln1_b": jnp.zeros((model_dim,), jnp.float32),
            "w_ff1": xavier(next(keys), model_dim, dff),
            "b_ff1": jnp.zeros((dff,), jnp.float32),
            "w_ff2": xavier(next(keys), dff, model_dim),
            "b_ff2": jnp.zeros((model_dim,), jnp.float32),
            "ln2_g": jnp.ones((model_dim,), jnp.float32),
            "ln2_b": jnp.zeros((model_dim,), jnp.float32),
        })
    return p


# ------------------------------ JAX reference -------------------------------- #

def transformer_predictor_ref(x, params, num_heads):
    """Pure-JAX f32 reference with PyTorch-matching math."""
    B, S, _ = x.shape
    D = params["w_in1"].shape[1]
    hd = D // num_heads

    def lin(z, w, b):
        return z @ w + b

    def ln(z, g, b):
        mu = z.mean(-1, keepdims=True)
        var = ((z - mu) ** 2).mean(-1, keepdims=True)
        return (z - mu) / jnp.sqrt(var + 1e-5) * g + b

    h = jax.nn.relu(lin(x, params["w_in1"], params["b_in1"]))
    h = lin(h, params["w_in2"], params["b_in2"])
    h = h + params["pe"][:S][None]
    for lyr in params["layers"]:
        qkv = lin(h, lyr["w_qkv"], lyr["b_qkv"]).reshape(B, S, num_heads, 3 * hd)
        qkv = qkv.transpose(0, 2, 1, 3)
        q, k, v = qkv[..., :hd], qkv[..., hd:2 * hd], qkv[..., 2 * hd:]
        s = (q @ k.transpose(0, 1, 3, 2)) / math.sqrt(hd)
        a = jax.nn.softmax(s, axis=-1)
        vals = (a @ v).transpose(0, 2, 1, 3).reshape(B, S, D)
        attn_out = lin(vals, lyr["w_o"], lyr["b_o"])
        h = ln(h + attn_out, lyr["ln1_g"], lyr["ln1_b"])
        ff = lin(jax.nn.relu(lin(h, lyr["w_ff1"], lyr["b_ff1"])),
                 lyr["w_ff2"], lyr["b_ff2"])
        h = ln(h + ff, lyr["ln2_g"], lyr["ln2_b"])
    o = lin(h, params["w_out1"], params["b_out1"])
    o = jax.nn.relu(ln(o, params["ln_out_g"], params["ln_out_b"]))
    o = jax.nn.relu(lin(o, params["w_out2"], params["b_out2"]))
    o = lin(o, params["w_out3"], params["b_out3"])
    return o


# ---------------------------------- main ------------------------------------- #

if __name__ == "__main__":
    input_dim = 16
    model_dim = 32
    num_heads = 2
    num_layers = 2
    B, S = 2, 8

    key = jax.random.PRNGKey(0)
    k_x, k_p = jax.random.split(key)
    x = jax.random.normal(k_x, (B, S, input_dim), dtype=jnp.float32)
    params = init_params(k_p, input_dim, model_dim, num_layers, max_len=64)

    ref = jax.block_until_ready(transformer_predictor_ref(x, params, num_heads))

    # Default path: batch folded into M, single grid step (v5e/v6e).
    out = jax.block_until_ready(
        transformer_predictor_forward(x, params, num_heads=num_heads))
    assert out.shape == (B, S, input_dim)
    err = float(jnp.max(jnp.abs(out - ref)))
    assert err < 5e-2, f"mismatch vs reference: max abs err {err}"

    # v7x-style path: 2 parallel batch blocks (one per TensorCore).
    out2 = jax.block_until_ready(
        transformer_predictor_forward(x, params, num_heads=num_heads, batch_blocks=2))
    err2 = float(jnp.max(jnp.abs(out2 - ref)))
    assert err2 < 5e-2, f"mismatch (batch_blocks=2): max abs err {err2}"

    print("KERNEL_OK")
</pallas_src>

<mosaic_0001>
module attributes {stable_mosaic.version = 11 : i64} {
  func.func @_fused_forward_kernel(%arg0: i32, %arg1: memref<16x16xf32, #tpu.memory_space<vmem>>, %arg2: memref<16x32xf32, #tpu.memory_space<vmem>>, %arg3: memref<16x32xf32, #tpu.memory_space<vmem>>, %arg4: memref<3x32x32xf32, #tpu.memory_space<vmem>>, %arg5: memref<6x32xf32, #tpu.memory_space<vmem>>, %arg6: memref<2x6x32x16xf32, #tpu.memory_space<vmem>>, %arg7: memref<2x6x16xf32, #tpu.memory_space<vmem>>, %arg8: memref<2x2x16x32xf32, #tpu.memory_space<vmem>>, %arg9: memref<2x32x64xf32, #tpu.memory_space<vmem>>, %arg10: memref<2x64x32xf32, #tpu.memory_space<vmem>>, %arg11: memref<2x6x32xf32, #tpu.memory_space<vmem>>, %arg12: memref<2x64xf32, #tpu.memory_space<vmem>>, %arg13: memref<32x16xf32, #tpu.memory_space<vmem>>, %arg14: memref<1x16xf32, #tpu.memory_space<vmem>>, %arg15: memref<16x16xf32, #tpu.memory_space<vmem>>) attributes {dimension_semantics = [#tpu.dimension_semantics<parallel>], iteration_bounds = array<i64: 1>, scalar_prefetch = 0 : i64, scratch_operands = 0 : i64, tpu.core_type = #tpu.core_type<tc>, window_params = [{transform_indices = @transform_0, window_bounds = array<i64: 16, 16>}, {pipeline_mode = #tpu.pipeline_mode<synchronous>, transform_indices = @transform_1, window_bounds = array<i64: 16, 32>}, {pipeline_mode = #tpu.pipeline_mode<synchronous>, transform_indices = @transform_2, window_bounds = array<i64: 16, 32>}, {pipeline_mode = #tpu.pipeline_mode<synchronous>, transform_indices = @transform_3, window_bounds = array<i64: 3, 32, 32>}, {pipeline_mode = #tpu.pipeline_mode<synchronous>, transform_indices = @transform_4, window_bounds = array<i64: 6, 32>}, {pipeline_mode = #tpu.pipeline_mode<synchronous>, transform_indices = @transform_5, window_bounds = array<i64: 2, 6, 32, 16>}, {pipeline_mode = #tpu.pipeline_mode<synchronous>, transform_indices = @transform_6, window_bounds = array<i64: 2, 6, 16>}, {pipeline_mode = #tpu.pipeline_mode<synchronous>, transform_indices = @transform_7, window_bounds = array<i64: 2, 2, 16, 32>}, {pipeline_mode = #tpu.pipeline_mode<synchronous>, transform_indices = @transform_8, window_bounds = array<i64: 2, 32, 64>}, {pipeline_mode = #tpu.pipeline_mode<synchronous>, transform_indices = @transform_9, window_bounds = array<i64: 2, 64, 32>}, {pipeline_mode = #tpu.pipeline_mode<synchronous>, transform_indices = @transform_10, window_bounds = array<i64: 2, 6, 32>}, {pipeline_mode = #tpu.pipeline_mode<synchronous>, transform_indices = @transform_11, window_bounds = array<i64: 2, 64>}, {pipeline_mode = #tpu.pipeline_mode<synchronous>, transform_indices = @transform_12, window_bounds = array<i64: 32, 16>}, {pipeline_mode = #tpu.pipeline_mode<synchronous>, transform_indices = @transform_13, window_bounds = array<i64: 1, 16>}, {transform_indices = @transform_14, window_bounds = array<i64: 16, 16>}]} {
    %c0 = arith.constant 0 : index
    %c0_0 = arith.constant 0 : index
    %0 = vector.load %arg1[%c0, %c0_0] : memref<16x16xf32, #tpu.memory_space<vmem>>, vector<16x16xf32>
    %c0_1 = arith.constant 0 : index
    %c0_2 = arith.constant 0 : index
    %1 = vector.load %arg3[%c0_1, %c0_2] : memref<16x32xf32, #tpu.memory_space<vmem>>, vector<16x32xf32>
    %cst = arith.constant dense<0.000000e+00> : vector<16x32xf32>
    %2 = tpu.matmul %0, %1, %cst {dimension_numbers = #tpu.dot_dimension_numbers<[1], [0], [0], [1], [0, 0, 1, 1], [], []>} : vector<16x16xf32>, vector<16x32xf32>, vector<16x32xf32> -> vector<16x32xf32>
    %c0_3 = arith.constant 0 : index
    %c0_4 = arith.constant 0 : index
    %3 = vector.load %arg5[%c0_3, %c0_4] : memref<6x32xf32, #tpu.memory_space<vmem>>, vector<1x32xf32>
    %4 = vector.broadcast %3 : vector<1x32xf32> to vector<16x32xf32>
    %5 = arith.addf %2, %4 : vector<16x32xf32>
    %cst_5 = arith.constant 0.000000e+00 : f32
    %6 = vector.broadcast %cst_5 : f32 to vector<16x32xf32>
    %7 = arith.maximumf %5, %6 : vector<16x32xf32>
    %c0_6 = arith.constant 0 : index
    %c0_7 = arith.constant 0 : index
    %c0_8 = arith.constant 0 : index
    %8 = vector.load %arg4[%c0_6, %c0_7, %c0_8] : memref<3x32x32xf32, #tpu.memory_space<vmem>>, vector<1x32x32xf32>
    %9 = vector.shape_cast %8 : vector<1x32x32xf32> to vector<32x32xf32>
    %cst_9 = arith.constant dense<0.000000e+00> : vector<16x32xf32>
    %10 = tpu.matmul %7, %9, %cst_9 {dimension_numbers = #tpu.dot_dimension_numbers<[1], [0], [0], [1], [0, 0, 1, 1], [], []>} : vector<16x32xf32>, vector<32x32xf32>, vector<16x32xf32> -> vector<16x32xf32>
    %c1 = arith.constant 1 : index
    %c0_10 = arith.constant 0 : index
    %11 = vector.load %arg5[%c1, %c0_10] : memref<6x32xf32, #tpu.memory_space<vmem>>, vector<1x32xf32>
    %12 = vector.broadcast %11 : vector<1x32xf32> to vector<16x32xf32>
    %13 = arith.addf %10, %12 : vector<16x32xf32>
    %c0_11 = arith.constant 0 : index
    %c0_12 = arith.constant 0 : index
    %14 = vector.load %arg2[%c0_11, %c0_12] : memref<16x32xf32, #tpu.memory_space<vmem>>, vector<16x32xf32>
    %15 = arith.addf %13, %14 : vector<16x32xf32>
    %c0_13 = arith.constant 0 : index
    %c0_14 = arith.constant 0 : index
    %c0_15 = arith.constant 0 : index
    %c0_16 = arith.constant 0 : index
    %16 = vector.load %arg6[%c0_13, %c0_14, %c0_15, %c0_16] : memref<2x6x32x16xf32, #tpu.memory_space<vmem>>, vector<1x1x32x16xf32>
    %17 = vector.shape_cast %16 : vector<1x1x32x16xf32> to vector<32x16xf32>
    %cst_17 = arith.constant dense<0.000000e+00> : vector<16x16xf32>
    %18 = tpu.matmul %15, %17, %cst_17 {dimension_numbers = #tpu.dot_dimension_numbers<[1], [0], [0], [1], [0, 0, 1, 1], [], []>} : vector<16x32xf32>, vector<32x16xf32>, vector<16x16xf32> -> vector<16x16xf32>
    %c0_18 = arith.constant 0 : index
    %c0_19 = arith.constant 0 : index
    %c0_20 = arith.constant 0 : index
    %19 = vector.load %arg7[%c0_18, %c0_19, %c0_20] : memref<2x6x16xf32, #tpu.memory_space<vmem>>, vector<1x1x16xf32>
    %20 = vector.shape_cast %19 : vector<1x1x16xf32> to vector<1x16xf32>
    %21 = vector.broadcast %20 : vector<1x16xf32> to vector<16x16xf32>
    %22 = arith.addf %18, %21 : vector<16x16xf32>
    %c0_21 = arith.constant 0 : index
    %c2 = arith.constant 2 : index
    %c0_22 = arith.constant 0 : index
    %c0_23 = arith.constant 0 : index
    %23 = vector.load %arg6[%c0_21, %c2, %c0_22, %c0_23] : memref<2x6x32x16xf32, #tpu.memory_space<vmem>>, vector<1x1x32x16xf32>
    %24 = vector.shape_cast %23 : vector<1x1x32x16xf32> to vector<32x16xf32>
    %cst_24 = arith.constant dense<0.000000e+00> : vector<16x16xf32>
    %25 = tpu.matmul %15, %24, %cst_24 {dimension_numbers = #tpu.dot_dimension_numbers<[1], [0], [0], [1], [0, 0, 1, 1], [], []>} : vector<16x32xf32>, vector<32x16xf32>, vector<16x16xf32> -> vector<16x16xf32>
    %c0_25 = arith.constant 0 : index
    %c2_26 = arith.constant 2 : index
    %c0_27 = arith.constant 0 : index
    %26 = vector.load %arg7[%c0_25, %c2_26, %c0_27] : memref<2x6x16xf32, #tpu.memory_space<vmem>>, vector<1x1x16xf32>
    %27 = vector.shape_cast %26 : vector<1x1x16xf32> to vector<1x16xf32>
    %28 = vector.broadcast %27 : vector<1x16xf32> to vector<16x16xf32>
    %29 = arith.addf %25, %28 : vector<16x16xf32>
    %c0_28 = arith.constant 0 : index
    %c4 = arith.constant 4 : index
    %c0_29 = arith.constant 0 : index
    %c0_30 = arith.constant 0 : index
    %30 = vector.load %arg6[%c0_28, %c4, %c0_29, %c0_30] : memref<2x6x32x16xf32, #tpu.memory_space<vmem>>, vector<1x1x32x16xf32>
    %31 = vector.shape_cast %30 : vector<1x1x32x16xf32> to vector<32x16xf32>
    %cst_31 = arith.constant dense<0.000000e+00> : vector<16x16xf32>
    %32 = tpu.matmul %15, %31, %cst_31 {dimension_numbers = #tpu.dot_dimension_numbers<[1], [0], [0], [1], [0, 0, 1, 1], [], []>} : vector<16x32xf32>, vector<32x16xf32>, vector<16x16xf32> -> vector<16x16xf32>
    %c0_32 = arith.constant 0 : index
    %c4_33 = arith.constant 4 : index
    %c0_34 = arith.constant 0 : index
    %33 = vector.load %arg7[%c0_32, %c4_33, %c0_34] : memref<2x6x16xf32, #tpu.memory_space<vmem>>, vector<1x1x16xf32>
    %34 = vector.shape_cast %33 : vector<1x1x16xf32> to vector<1x16xf32>
    %35 = vector.broadcast %34 : vector<1x16xf32> to vector<16x16xf32>
    %36 = arith.addf %32, %35 : vector<16x16xf32>
    %37 = vector.shape_cast %22 : vector<16x16xf32> to vector<2x8x16xf32>
    %38 = vector.shape_cast %29 : vector<16x16xf32> to vector<2x8x16xf32>
    %39 = vector.shape_cast %36 : vector<16x16xf32> to vector<2x8x16xf32>
    "tpu.trace_start"() <{level = 10 : i32, message = "bqd,bkd->bqk"}> : () -> ()
    %cst_35 = arith.constant dense<0.000000e+00> : vector<2x8x8xf32>
    %40 = tpu.matmul %37, %38, %cst_35 {dimension_numbers = #tpu.dot_dimension_numbers<[2], [2], [1], [1], [0, 0, 0, 1, 1, 1], [0], [0]>} : vector<2x8x16xf32>, vector<2x8x16xf32>, vector<2x8x8xf32> -> vector<2x8x8xf32>
    "tpu.trace_stop"() : () -> ()
    %cst_36 = arith.constant dense<0xFF800000> : vector<2x8xf32>
    %41 = vector.multi_reduction <maximumf>, %40, %cst_36 [2] : vector<2x8x8xf32> to vector<2x8xf32>
    %42 = vector.shape_cast %41 : vector<2x8xf32> to vector<2x8x1xf32>
    %43 = vector.broadcast %42 : vector<2x8x1xf32> to vector<2x8x8xf32>
    %44 = arith.subf %40, %43 : vector<2x8x8xf32>
    %45 = math.exp %44 : vector<2x8x8xf32>
    %cst_37 = arith.constant dense<0.000000e+00> : vector<2x8xf32>
    %46 = vector.multi_reduction <add>, %45, %cst_37 [2] : vector<2x8x8xf32> to vector<2x8xf32>
    %47 = vector.shape_cast %46 : vector<2x8xf32> to vector<2x8x1xf32>
    "tpu.trace_start"() <{level = 10 : i32, message = "bqk,bkd->bqd"}> : () -> ()
    %cst_38 = arith.constant dense<0.000000e+00> : vector<2x8x16xf32>
    %48 = tpu.matmul %45, %39, %cst_38 {dimension_numbers = #tpu.dot_dimension_numbers<[2], [1], [1], [2], [0, 0, 0, 1, 1, 2], [0], [0]>} : vector<2x8x8xf32>, vector<2x8x16xf32>, vector<2x8x16xf32> -> vector<2x8x16xf32>
    "tpu.trace_stop"() : () -> ()
    %49 = vector.broadcast %47 : vector<2x8x1xf32> to vector<2x8x16xf32>
    %50 = arith.divf %48, %49 : vector<2x8x16xf32>
    %51 = vector.shape_cast %50 : vector<2x8x16xf32> to vector<16x16xf32>
    %c0_39 = arith.constant 0 : index
    %c0_40 = arith.constant 0 : index
    %c0_41 = arith.constant 0 : index
    %c0_42 = arith.constant 0 : index
    %52 = vector.load %arg8[%c0_39, %c0_40, %c0_41, %c0_42] : memref<2x2x16x32xf32, #tpu.memory_space<vmem>>, vector<1x1x16x32xf32>
    %53 = vector.shape_cast %52 : vector<1x1x16x32xf32> to vector<16x32xf32>
    %cst_43 = arith.constant dense<0.000000e+00> : vector<16x32xf32>
    %54 = tpu.matmul %51, %53, %cst_43 {dimension_numbers = #tpu.dot_dimension_numbers<[1], [0], [0], [1], [0, 0, 1, 1], [], []>} : vector<16x16xf32>, vector<16x32xf32>, vector<16x32xf32> -> vector<16x32xf32>
    %c0_44 = arith.constant 0 : index
    %c1_45 = arith.constant 1 : index
    %c0_46 = arith.constant 0 : index
    %c0_47 = arith.constant 0 : index
    %55 = vector.load %arg6[%c0_44, %c1_45, %c0_46, %c0_47] : memref<2x6x32x16xf32, #tpu.memory_space<vmem>>, vector<1x1x32x16xf32>
    %56 = vector.shape_cast %55 : vector<1x1x32x16xf32> to vector<32x16xf32>
    %cst_48 = arith.constant dense<0.000000e+00> : vector<16x16xf32>
    %57 = tpu.matmul %15, %56, %cst_48 {dimension_numbers = #tpu.dot_dimension_numbers<[1], [0], [0], [1], [0, 0, 1, 1], [], []>} : vector<16x32xf32>, vector<32x16xf32>, vector<16x16xf32> -> vector<16x16xf32>
    %c0_49 = arith.constant 0 : index
    %c1_50 = arith.constant 1 : index
    %c0_51 = arith.constant 0 : index
    %58 = vector.load %arg7[%c0_49, %c1_50, %c0_51] : memref<2x6x16xf32, #tpu.memory_space<vmem>>, vector<1x1x16xf32>
    %59 = vector.shape_cast %58 : vector<1x1x16xf32> to vector<1x16xf32>
    %60 = vector.broadcast %59 : vector<1x16xf32> to vector<16x16xf32>
    %61 = arith.addf %57, %60 : vector<16x16xf32>
    %c0_52 = arith.constant 0 : index
    %c3 = arith.constant 3 : index
    %c0_53 = arith.constant 0 : index
    %c0_54 = arith.constant 0 : index
    %62 = vector.load %arg6[%c0_52, %c3, %c0_53, %c0_54] : memref<2x6x32x16xf32, #tpu.memory_space<vmem>>, vector<1x1x32x16xf32>
    %63 = vector.shape_cast %62 : vector<1x1x32x16xf32> to vector<32x16xf32>
    %cst_55 = arith.constant dense<0.000000e+00> : vector<16x16xf32>
    %64 = tpu.matmul %15, %63, %cst_55 {dimension_numbers = #tpu.dot_dimension_numbers<[1], [0], [0], [1], [0, 0, 1, 1], [], []>} : vector<16x32xf32>, vector<32x16xf32>, vector<16x16xf32> -> vector<16x16xf32>
    %c0_56 = arith.constant 0 : index
    %c3_57 = arith.constant 3 : index
    %c0_58 = arith.constant 0 : index
    %65 = vector.load %arg7[%c0_56, %c3_57, %c0_58] : memref<2x6x16xf32, #tpu.memory_space<vmem>>, vector<1x1x16xf32>
    %66 = vector.shape_cast %65 : vector<1x1x16xf32> to vector<1x16xf32>
    %67 = vector.broadcast %66 : vector<1x16xf32> to vector<16x16xf32>
    %68 = arith.addf %64, %67 : vector<16x16xf32>
    %c0_59 = arith.constant 0 : index
    %c5 = arith.constant 5 : index
    %c0_60 = arith.constant 0 : index
    %c0_61 = arith.constant 0 : index
    %69 = vector.load %arg6[%c0_59, %c5, %c0_60, %c0_61] : memref<2x6x32x16xf32, #tpu.memory_space<vmem>>, vector<1x1x32x16xf32>
    %70 = vector.shape_cast %69 : vector<1x1x32x16xf32> to vector<32x16xf32>
    %cst_62 = arith.constant dense<0.000000e+00> : vector<16x16xf32>
    %71 = tpu.matmul %15, %70, %cst_62 {dimension_numbers = #tpu.dot_dimension_numbers<[1], [0], [0], [1], [0, 0, 1, 1], [], []>} : vector<16x32xf32>, vector<32x16xf32>, vector<16x16xf32> -> vector<16x16xf32>
    %c0_63 = arith.constant 0 : index
    %c5_64 = arith.constant 5 : index
    %c0_65 = arith.constant 0 : index
    %72 = vector.load %arg7[%c0_63, %c5_64, %c0_65] : memref<2x6x16xf32, #tpu.memory_space<vmem>>, vector<1x1x16xf32>
    %73 = vector.shape_cast %72 : vector<1x1x16xf32> to vector<1x16xf32>
    %74 = vector.broadcast %73 : vector<1x16xf32> to vector<16x16xf32>
    %75 = arith.addf %71, %74 : vector<16x16xf32>
    %76 = vector.shape_cast %61 : vector<16x16xf32> to vector<2x8x16xf32>
    %77 = vector.shape_cast %68 : vector<16x16xf32> to vector<2x8x16xf32>
    %78 = vector.shape_cast %75 : vector<16x16xf32> to vector<2x8x16xf32>
    "tpu.trace_start"() <{level = 10 : i32, message = "bqd,bkd->bqk"}> : () -> ()
    %cst_66 = arith.constant dense<0.000000e+00> : vector<2x8x8xf32>
    %79 = tpu.matmul %76, %77, %cst_66 {dimension_numbers = #tpu.dot_dimension_numbers<[2], [2], [1], [1], [0, 0, 0, 1, 1, 1], [0], [0]>} : vector<2x8x16xf32>, vector<2x8x16xf32>, vector<2x8x8xf32> -> vector<2x8x8xf32>
    "tpu.trace_stop"() : () -> ()
    %cst_67 = arith.constant dense<0xFF800000> : vector<2x8xf32>
    %80 = vector.multi_reduction <maximumf>, %79, %cst_67 [2] : vector<2x8x8xf32> to vector<2x8xf32>
    %81 = vector.shape_cast %80 : vector<2x8xf32> to vector<2x8x1xf32>
    %82 = vector.broadcast %81 : vector<2x8x1xf32> to vector<2x8x8xf32>
    %83 = arith.subf %79, %82 : vector<2x8x8xf32>
    %84 = math.exp %83 : vector<2x8x8xf32>
    %cst_68 = arith.constant dense<0.000000e+00> : vector<2x8xf32>
    %85 = vector.multi_reduction <add>, %84, %cst_68 [2] : vector<2x8x8xf32> to vector<2x8xf32>
    %86 = vector.shape_cast %85 : vector<2x8xf32> to vector<2x8x1xf32>
    "tpu.trace_start"() <{level = 10 : i32, message = "bqk,bkd->bqd"}> : () -> ()
    %cst_69 = arith.constant dense<0.000000e+00> : vector<2x8x16xf32>
    %87 = tpu.matmul %84, %78, %cst_69 {dimension_numbers = #tpu.dot_dimension_numbers<[2], [1], [1], [2], [0, 0, 0, 1, 1, 2], [0], [0]>} : vector<2x8x8xf32>, vector<2x8x16xf32>, vector<2x8x16xf32> -> vector<2x8x16xf32>
    "tpu.trace_stop"() : () -> ()
    %88 = vector.broadcast %86 : vector<2x8x1xf32> to vector<2x8x16xf32>
    %89 = arith.divf %87, %88 : vector<2x8x16xf32>
    %90 = vector.shape_cast %89 : vector<2x8x16xf32> to vector<16x16xf32>
    %c0_70 = arith.constant 0 : index
    %c1_71 = arith.constant 1 : index
    %c0_72 = arith.constant 0 : index
    %c0_73 = arith.constant 0 : index
    %91 = vector.load %arg8[%c0_70, %c1_71, %c0_72, %c0_73] : memref<2x2x16x32xf32, #tpu.memory_space<vmem>>, vector<1x1x16x32xf32>
    %92 = vector.shape_cast %91 : vector<1x1x16x32xf32> to vector<16x32xf32>
    %cst_74 = arith.constant dense<0.000000e+00> : vector<16x32xf32>
    %93 = tpu.matmul %90, %92, %cst_74 {dimension_numbers = #tpu.dot_dimension_numbers<[1], [0], [0], [1], [0, 0, 1, 1], [], []>} : vector<16x16xf32>, vector<16x32xf32>, vector<16x32xf32> -> vector<16x32xf32>
    %94 = arith.addf %54, %93 : vector<16x32xf32>
    %c0_75 = arith.constant 0 : index
    %c0_76 = arith.constant 0 : index
    %c0_77 = arith.constant 0 : index
    %95 = vector.load %arg11[%c0_75, %c0_76, %c0_77] : memref<2x6x32xf32, #tpu.memory_space<vmem>>, vector<1x1x32xf32>
    %96 = vector.shape_cast %95 : vector<1x1x32xf32> to vector<1x32xf32>
    %97 = vector.broadcast %96 : vector<1x32xf32> to vector<16x32xf32>
    %98 = arith.addf %94, %97 : vector<16x32xf32>
    %99 = arith.addf %15, %98 : vector<16x32xf32>
    %c0_78 = arith.constant 0 : index
    %c1_79 = arith.constant 1 : index
    %c0_80 = arith.constant 0 : index
    %100 = vector.load %arg11[%c0_78, %c1_79, %c0_80] : memref<2x6x32xf32, #tpu.memory_space<vmem>>, vector<1x1x32xf32>
    %101 = vector.shape_cast %100 : vector<1x1x32xf32> to vector<1x32xf32>
    %c0_81 = arith.constant 0 : index
    %c2_82 = arith.constant 2 : index
    %c0_83 = arith.constant 0 : index
    %102 = vector.load %arg11[%c0_81, %c2_82, %c0_83] : memref<2x6x32xf32, #tpu.memory_space<vmem>>, vector<1x1x32xf32>
    %103 = vector.shape_cast %102 : vector<1x1x32xf32> to vector<1x32xf32>
    %cst_84 = arith.constant dense<0.000000e+00> : vector<16xf32>
    %104 = vector.multi_reduction <add>, %99, %cst_84 [1] : vector<16x32xf32> to vector<16xf32>
    %105 = vector.shape_cast %104 : vector<16xf32> to vector<16x1xf32>
    %cst_85 = arith.constant 3.200000e+01 : f32
    %106 = vector.broadcast %cst_85 : f32 to vector<16x1xf32>
    %107 = arith.divf %105, %106 : vector<16x1xf32>
    %108 = vector.broadcast %107 : vector<16x1xf32> to vector<16x32xf32>
    %109 = arith.subf %99, %108 : vector<16x32xf32>
    %110 = arith.mulf %109, %109 : vector<16x32xf32>
    %cst_86 = arith.constant dense<0.000000e+00> : vector<16xf32>
    %111 = vector.multi_reduction <add>, %110, %cst_86 [1] : vector<16x32xf32> to vector<16xf32>
    %112 = vector.shape_cast %111 : vector<16xf32> to vector<16x1xf32>
    %cst_87 = arith.constant 3.200000e+01 : f32
    %113 = vector.broadcast %cst_87 : f32 to vector<16x1xf32>
    %114 = arith.divf %112, %113 : vector<16x1xf32>
    %cst_88 = arith.constant 9.99999974E-6 : f32
    %115 = vector.broadcast %cst_88 : f32 to vector<16x1xf32>
    %116 = arith.addf %114, %115 : vector<16x1xf32>
    %117 = math.rsqrt %116 : vector<16x1xf32>
    %118 = vector.broadcast %117 : vector<16x1xf32> to vector<16x32xf32>
    %119 = arith.mulf %109, %118 : vector<16x32xf32>
    %120 = vector.broadcast %101 : vector<1x32xf32> to vector<16x32xf32>
    %121 = arith.mulf %119, %120 : vector<16x32xf32>
    %122 = vector.broadcast %103 : vector<1x32xf32> to vector<16x32xf32>
    %123 = arith.addf %121, %122 : vector<16x32xf32>
    %c0_89 = arith.constant 0 : index
    %c0_90 = arith.constant 0 : index
    %c0_91 = arith.constant 0 : index
    %124 = vector.load %arg9[%c0_89, %c0_90, %c0_91] : memref<2x32x64xf32, #tpu.memory_space<vmem>>, vector<1x32x64xf32>
    %125 = vector.shape_cast %124 : vector<1x32x64xf32> to vector<32x64xf32>
    %cst_92 = arith.constant dense<0.000000e+00> : vector<16x64xf32>
    %126 = tpu.matmul %123, %125, %cst_92 {dimension_numbers = #tpu.dot_dimension_numbers<[1], [0], [0], [1], [0, 0, 1, 1], [], []>} : vector<16x32xf32>, vector<32x64xf32>, vector<16x64xf32> -> vector<16x64xf32>
    %c0_93 = arith.constant 0 : index
    %c0_94 = arith.constant 0 : index
    %127 = vector.load %arg12[%c0_93, %c0_94] : memref<2x64xf32, #tpu.memory_space<vmem>>, vector<1x64xf32>
    %128 = vector.broadcast %127 : vector<1x64xf32> to vector<16x64xf32>
    %129 = arith.addf %126, %128 : vector<16x64xf32>
    %cst_95 = arith.constant 0.000000e+00 : f32
    %130 = vector.broadcast %cst_95 : f32 to vector<16x64xf32>
    %131 = arith.maximumf %129, %130 : vector<16x64xf32>
    %c0_96 = arith.constant 0 : index
    %c0_97 = arith.constant 0 : index
    %c0_98 = arith.constant 0 : index
    %132 = vector.load %arg10[%c0_96, %c0_97, %c0_98] : memref<2x64x32xf32, #tpu.memory_space<vmem>>, vector<1x64x32xf32>
    %133 = vector.shape_cast %132 : vector<1x64x32xf32> to vector<64x32xf32>
    %cst_99 = arith.constant dense<0.000000e+00> : vector<16x32xf32>
    %134 = tpu.matmul %131, %133, %cst_99 {dimension_numbers = #tpu.dot_dimension_numbers<[1], [0], [0], [1], [0, 0, 1, 1], [], []>} : vector<16x64xf32>, vector<64x32xf32>, vector<16x32xf32> -> vector<16x32xf32>
    %c0_100 = arith.constant 0 : index
    %c3_101 = arith.constant 3 : index
    %c0_102 = arith.constant 0 : index
    %135 = vector.load %arg11[%c0_100, %c3_101, %c0_102] : memref<2x6x32xf32, #tpu.memory_space<vmem>>, vector<1x1x32xf32>
    %136 = vector.shape_cast %135 : vector<1x1x32xf32> to vector<1x32xf32>
    %137 = vector.broadcast %136 : vector<1x32xf32> to vector<16x32xf32>
    %138 = arith.addf %134, %137 : vector<16x32xf32>
    %139 = arith.addf %123, %138 : vector<16x32xf32>
    %c0_103 = arith.constant 0 : index
    %c4_104 = arith.constant 4 : index
    %c0_105 = arith.constant 0 : index
    %140 = vector.load %arg11[%c0_103, %c4_104, %c0_105] : memref<2x6x32xf32, #tpu.memory_space<vmem>>, vector<1x1x32xf32>
    %141 = vector.shape_cast %140 : vector<1x1x32xf32> to vector<1x32xf32>
    %c0_106 = arith.constant 0 : index
    %c5_107 = arith.constant 5 : index
    %c0_108 = arith.constant 0 : index
    %142 = vector.load %arg11[%c0_106, %c5_107, %c0_108] : memref<2x6x32xf32, #tpu.memory_space<vmem>>, vector<1x1x32xf32>
    %143 = vector.shape_cast %142 : vector<1x1x32xf32> to vector<1x32xf32>
    %cst_109 = arith.constant dense<0.000000e+00> : vector<16xf32>
    %144 = vector.multi_reduction <add>, %139, %cst_109 [1] : vector<16x32xf32> to vector<16xf32>
    %145 = vector.shape_cast %144 : vector<16xf32> to vector<16x1xf32>
    %cst_110 = arith.constant 3.200000e+01 : f32
    %146 = vector.broadcast %cst_110 : f32 to vector<16x1xf32>
    %147 = arith.divf %145, %146 : vector<16x1xf32>
    %148 = vector.broadcast %147 : vector<16x1xf32> to vector<16x32xf32>
    %149 = arith.subf %139, %148 : vector<16x32xf32>
    %150 = arith.mulf %149, %149 : vector<16x32xf32>
    %cst_111 = arith.constant dense<0.000000e+00> : vector<16xf32>
    %151 = vector.multi_reduction <add>, %150, %cst_111 [1] : vector<16x32xf32> to vector<16xf32>
    %152 = vector.shape_cast %151 : vector<16xf32> to vector<16x1xf32>
    %cst_112 = arith.constant 3.200000e+01 : f32
    %153 = vector.broadcast %cst_112 : f32 to vector<16x1xf32>
    %154 = arith.divf %152, %153 : vector<16x1xf32>
    %cst_113 = arith.constant 9.99999974E-6 : f32
    %155 = vector.broadcast %cst_113 : f32 to vector<16x1xf32>
    %156 = arith.addf %154, %155 : vector<16x1xf32>
    %157 = math.rsqrt %156 : vector<16x1xf32>
    %158 = vector.broadcast %157 : vector<16x1xf32> to vector<16x32xf32>
    %159 = arith.mulf %149, %158 : vector<16x32xf32>
    %160 = vector.broadcast %141 : vector<1x32xf32> to vector<16x32xf32>
    %161 = arith.mulf %159, %160 : vector<16x32xf32>
    %162 = vector.broadcast %143 : vector<1x32xf32> to vector<16x32xf32>
    %163 = arith.addf %161, %162 : vector<16x32xf32>
    %c1_114 = arith.constant 1 : index
    %c0_115 = arith.constant 0 : index
    %c0_116 = arith.constant 0 : index
    %c0_117 = arith.constant 0 : index
    %164 = vector.load %arg6[%c1_114, %c0_115, %c0_116, %c0_117] : memref<2x6x32x16xf32, #tpu.memory_space<vmem>>, vector<1x1x32x16xf32>
    %165 = vector.shape_cast %164 : vector<1x1x32x16xf32> to vector<32x16xf32>
    %cst_118 = arith.constant dense<0.000000e+00> : vector<16x16xf32>
    %166 = tpu.matmul %163, %165, %cst_118 {dimension_numbers = #tpu.dot_dimension_numbers<[1], [0], [0], [1], [0, 0, 1, 1], [], []>} : vector<16x32xf32>, vector<32x16xf32>, vector<16x16xf32> -> vector<16x16xf32>
    %c1_119 = arith.constant 1 : index
    %c0_120 = arith.constant 0 : index
    %c0_121 = arith.constant 0 : index
    %167 = vector.load %arg7[%c1_119, %c0_120, %c0_121] : memref<2x6x16xf32, #tpu.memory_space<vmem>>, vector<1x1x16xf32>
    %168 = vector.shape_cast %167 : vector<1x1x16xf32> to vector<1x16xf32>
    %169 = vector.broadcast %168 : vector<1x16xf32> to vector<16x16xf32>
    %170 = arith.addf %166, %169 : vector<16x16xf32>
    %c1_122 = arith.constant 1 : index
    %c2_123 = arith.constant 2 : index
    %c0_124 = arith.constant 0 : index
    %c0_125 = arith.constant 0 : index
    %171 = vector.load %arg6[%c1_122, %c2_123, %c0_124, %c0_125] : memref<2x6x32x16xf32, #tpu.memory_space<vmem>>, vector<1x1x32x16xf32>
    %172 = vector.shape_cast %171 : vector<1x1x32x16xf32> to vector<32x16xf32>
    %cst_126 = arith.constant dense<0.000000e+00> : vector<16x16xf32>
    %173 = tpu.matmul %163, %172, %cst_126 {dimension_numbers = #tpu.dot_dimension_numbers<[1], [0], [0], [1], [0, 0, 1, 1], [], []>} : vector<16x32xf32>, vector<32x16xf32>, vector<16x16xf32> -> vector<16x16xf32>
    %c1_127 = arith.constant 1 : index
    %c2_128 = arith.constant 2 : index
    %c0_129 = arith.constant 0 : index
    %174 = vector.load %arg7[%c1_127, %c2_128, %c0_129] : memref<2x6x16xf32, #tpu.memory_space<vmem>>, vector<1x1x16xf32>
    %175 = vector.shape_cast %174 : vector<1x1x16xf32> to vector<1x16xf32>
    %176 = vector.broadcast %175 : vector<1x16xf32> to vector<16x16xf32>
    %177 = arith.addf %173, %176 : vector<16x16xf32>
    %c1_130 = arith.constant 1 : index
    %c4_131 = arith.constant 4 : index
    %c0_132 = arith.constant 0 : index
    %c0_133 = arith.constant 0 : index
    %178 = vector.load %arg6[%c1_130, %c4_131, %c0_132, %c0_133] : memref<2x6x32x16xf32, #tpu.memory_space<vmem>>, vector<1x1x32x16xf32>
    %179 = vector.shape_cast %178 : vector<1x1x32x16xf32> to vector<32x16xf32>
    %cst_134 = arith.constant dense<0.000000e+00> : vector<16x16xf32>
    %180 = tpu.matmul %163, %179, %cst_134 {dimension_numbers = #tpu.dot_dimension_numbers<[1], [0], [0], [1], [0, 0, 1, 1], [], []>} : vector<16x32xf32>, vector<32x16xf32>, vector<16x16xf32> -> vector<16x16xf32>
    %c1_135 = arith.constant 1 : index
    %c4_136 = arith.constant 4 : index
    %c0_137 = arith.constant 0 : index
    %181 = vector.load %arg7[%c1_135, %c4_136, %c0_137] : memref<2x6x16xf32, #tpu.memory_space<vmem>>, vector<1x1x16xf32>
    %182 = vector.shape_cast %181 : vector<1x1x16xf32> to vector<1x16xf32>
    %183 = vector.broadcast %182 : vector<1x16xf32> to vector<16x16xf32>
    %184 = arith.addf %180, %183 : vector<16x16xf32>
    %185 = vector.shape_cast %170 : vector<16x16xf32> to vector<2x8x16xf32>
    %186 = vector.shape_cast %177 : vector<16x16xf32> to vector<2x8x16xf32>
    %187 = vector.shape_cast %184 : vector<16x16xf32> to vector<2x8x16xf32>
    "tpu.trace_start"() <{level = 10 : i32, message = "bqd,bkd->bqk"}> : () -> ()
    %cst_138 = arith.constant dense<0.000000e+00> : vector<2x8x8xf32>
    %188 = tpu.matmul %185, %186, %cst_138 {dimension_numbers = #tpu.dot_dimension_numbers<[2], [2], [1], [1], [0, 0, 0, 1, 1, 1], [0], [0]>} : vector<2x8x16xf32>, vector<2x8x16xf32>, vector<2x8x8xf32> -> vector<2x8x8xf32>
    "tpu.trace_stop"() : () -> ()
    %cst_139 = arith.constant dense<0xFF800000> : vector<2x8xf32>
    %189 = vector.multi_reduction <maximumf>, %188, %cst_139 [2] : vector<2x8x8xf32> to vector<2x8xf32>
    %190 = vector.shape_cast %189 : vector<2x8xf32> to vector<2x8x1xf32>
    %191 = vector.broadcast %190 : vector<2x8x1xf32> to vector<2x8x8xf32>
    %192 = arith.subf %188, %191 : vector<2x8x8xf32>
    %193 = math.exp %192 : vector<2x8x8xf32>
    %cst_140 = arith.constant dense<0.000000e+00> : vector<2x8xf32>
    %194 = vector.multi_reduction <add>, %193, %cst_140 [2] : vector<2x8x8xf32> to vector<2x8xf32>
    %195 = vector.shape_cast %194 : vector<2x8xf32> to vector<2x8x1xf32>
    "tpu.trace_start"() <{level = 10 : i32, message = "bqk,bkd->bqd"}> : () -> ()
    %cst_141 = arith.constant dense<0.000000e+00> : vector<2x8x16xf32>
    %196 = tpu.matmul %193, %187, %cst_141 {dimension_numbers = #tpu.dot_dimension_numbers<[2], [1], [1], [2], [0, 0, 0, 1, 1, 2], [0], [0]>} : vector<2x8x8xf32>, vector<2x8x16xf32>, vector<2x8x16xf32> -> vector<2x8x16xf32>
    "tpu.trace_stop"() : () -> ()
    %197 = vector.broadcast %195 : vector<2x8x1xf32> to vector<2x8x16xf32>
    %198 = arith.divf %196, %197 : vector<2x8x16xf32>
    %199 = vector.shape_cast %198 : vector<2x8x16xf32> to vector<16x16xf32>
    %c1_142 = arith.constant 1 : index
    %c0_143 = arith.constant 0 : index
    %c0_144 = arith.constant 0 : index
    %c0_145 = arith.constant 0 : index
    %200 = vector.load %arg8[%c1_142, %c0_143, %c0_144, %c0_145] : memref<2x2x16x32xf32, #tpu.memory_space<vmem>>, vector<1x1x16x32xf32>
    %201 = vector.shape_cast %200 : vector<1x1x16x32xf32> to vector<16x32xf32>
    %cst_146 = arith.constant dense<0.000000e+00> : vector<16x32xf32>
    %202 = tpu.matmul %199, %201, %cst_146 {dimension_numbers = #tpu.dot_dimension_numbers<[1], [0], [0], [1], [0, 0, 1, 1], [], []>} : vector<16x16xf32>, vector<16x32xf32>, vector<16x32xf32> -> vector<16x32xf32>
    %c1_147 = arith.constant 1 : index
    %c1_148 = arith.constant 1 : index
    %c0_149 = arith.constant 0 : index
    %c0_150 = arith.constant 0 : index
    %203 = vector.load %arg6[%c1_147, %c1_148, %c0_149, %c0_150] : memref<2x6x32x16xf32, #tpu.memory_space<vmem>>, vector<1x1x32x16xf32>
    %204 = vector.shape_cast %203 : vector<1x1x32x16xf32> to vector<32x16xf32>
    %cst_151 = arith.constant dense<0.000000e+00> : vector<16x16xf32>
    %205 = tpu.matmul %163, %204, %cst_151 {dimension_numbers = #tpu.dot_dimension_numbers<[1], [0], [0], [1], [0, 0, 1, 1], [], []>} : vector<16x32xf32>, vector<32x16xf32>, vector<16x16xf32> -> vector<16x16xf32>
    %c1_152 = arith.constant 1 : index
    %c1_153 = arith.constant 1 : index
    %c0_154 = arith.constant 0 : index
    %206 = vector.load %arg7[%c1_152, %c1_153, %c0_154] : memref<2x6x16xf32, #tpu.memory_space<vmem>>, vector<1x1x16xf32>
    %207 = vector.shape_cast %206 : vector<1x1x16xf32> to vector<1x16xf32>
    %208 = vector.broadcast %207 : vector<1x16xf32> to vector<16x16xf32>
    %209 = arith.addf %205, %208 : vector<16x16xf32>
    %c1_155 = arith.constant 1 : index
    %c3_156 = arith.constant 3 : index
    %c0_157 = arith.constant 0 : index
    %c0_158 = arith.constant 0 : index
    %210 = vector.load %arg6[%c1_155, %c3_156, %c0_157, %c0_158] : memref<2x6x32x16xf32, #tpu.memory_space<vmem>>, vector<1x1x32x16xf32>
    %211 = vector.shape_cast %210 : vector<1x1x32x16xf32> to vector<32x16xf32>
    %cst_159 = arith.constant dense<0.000000e+00> : vector<16x16xf32>
    %212 = tpu.matmul %163, %211, %cst_159 {dimension_numbers = #tpu.dot_dimension_numbers<[1], [0], [0], [1], [0, 0, 1, 1], [], []>} : vector<16x32xf32>, vector<32x16xf32>, vector<16x16xf32> -> vector<16x16xf32>
    %c1_160 = arith.constant 1 : index
    %c3_161 = arith.constant 3 : index
    %c0_162 = arith.constant 0 : index
    %213 = vector.load %arg7[%c1_160, %c3_161, %c0_162] : memref<2x6x16xf32, #tpu.memory_space<vmem>>, vector<1x1x16xf32>
    %214 = vector.shape_cast %213 : vector<1x1x16xf32> to vector<1x16xf32>
    %215 = vector.broadcast %214 : vector<1x16xf32> to vector<16x16xf32>
    %216 = arith.addf %212, %215 : vector<16x16xf32>
    %c1_163 = arith.constant 1 : index
    %c5_164 = arith.constant 5 : index
    %c0_165 = arith.constant 0 : index
    %c0_166 = arith.constant 0 : index
    %217 = vector.load %arg6[%c1_163, %c5_164, %c0_165, %c0_166] : memref<2x6x32x16xf32, #tpu.memory_space<vmem>>, vector<1x1x32x16xf32>
    %218 = vector.shape_cast %217 : vector<1x1x32x16xf32> to vector<32x16xf32>
    %cst_167 = arith.constant dense<0.000000e+00> : vector<16x16xf32>
    %219 = tpu.matmul %163, %218, %cst_167 {dimension_numbers = #tpu.dot_dimension_numbers<[1], [0], [0], [1], [0, 0, 1, 1], [], []>} : vector<16x32xf32>, vector<32x16xf32>, vector<16x16xf32> -> vector<16x16xf32>
    %c1_168 = arith.constant 1 : index
    %c5_169 = arith.constant 5 : index
    %c0_170 = arith.constant 0 : index
    %220 = vector.load %arg7[%c1_168, %c5_169, %c0_170] : memref<2x6x16xf32, #tpu.memory_space<vmem>>, vector<1x1x16xf32>
    %221 = vector.shape_cast %220 : vector<1x1x16xf32> to vector<1x16xf32>
    %222 = vector.broadcast %221 : vector<1x16xf32> to vector<16x16xf32>
    %223 = arith.addf %219, %222 : vector<16x16xf32>
    %224 = vector.shape_cast %209 : vector<16x16xf32> to vector<2x8x16xf32>
    %225 = vector.shape_cast %216 : vector<16x16xf32> to vector<2x8x16xf32>
    %226 = vector.shape_cast %223 : vector<16x16xf32> to vector<2x8x16xf32>
    "tpu.trace_start"() <{level = 10 : i32, message = "bqd,bkd->bqk"}> : () -> ()
    %cst_171 = arith.constant dense<0.000000e+00> : vector<2x8x8xf32>
    %227 = tpu.matmul %224, %225, %cst_171 {dimension_numbers = #tpu.dot_dimension_numbers<[2], [2], [1], [1], [0, 0, 0, 1, 1, 1], [0], [0]>} : vector<2x8x16xf32>, vector<2x8x16xf32>, vector<2x8x8xf32> -> vector<2x8x8xf32>
    "tpu.trace_stop"() : () -> ()
    %cst_172 = arith.constant dense<0xFF800000> : vector<2x8xf32>
    %228 = vector.multi_reduction <maximumf>, %227, %cst_172 [2] : vector<2x8x8xf32> to vector<2x8xf32>
    %229 = vector.shape_cast %228 : vector<2x8xf32> to vector<2x8x1xf32>
    %230 = vector.broadcast %229 : vector<2x8x1xf32> to vector<2x8x8xf32>
    %231 = arith.subf %227, %230 : vector<2x8x8xf32>
    %232 = math.exp %231 : vector<2x8x8xf32>
    %cst_173 = arith.constant dense<0.000000e+00> : vector<2x8xf32>
    %233 = vector.multi_reduction <add>, %232, %cst_173 [2] : vector<2x8x8xf32> to vector<2x8xf32>
    %234 = vector.shape_cast %233 : vector<2x8xf32> to vector<2x8x1xf32>
    "tpu.trace_start"() <{level = 10 : i32, message = "bqk,bkd->bqd"}> : () -> ()
    %cst_174 = arith.constant dense<0.000000e+00> : vector<2x8x16xf32>
    %235 = tpu.matmul %232, %226, %cst_174 {dimension_numbers = #tpu.dot_dimension_numbers<[2], [1], [1], [2], [0, 0, 0, 1, 1, 2], [0], [0]>} : vector<2x8x8xf32>, vector<2x8x16xf32>, vector<2x8x16xf32> -> vector<2x8x16xf32>
    "tpu.trace_stop"() : () -> ()
    %236 = vector.broadcast %234 : vector<2x8x1xf32> to vector<2x8x16xf32>
    %237 = arith.divf %235, %236 : vector<2x8x16xf32>
    %238 = vector.shape_cast %237 : vector<2x8x16xf32> to vector<16x16xf32>
    %c1_175 = arith.constant 1 : index
    %c1_176 = arith.constant 1 : index
    %c0_177 = arith.constant 0 : index
    %c0_178 = arith.constant 0 : index
    %239 = vector.load %arg8[%c1_175, %c1_176, %c0_177, %c0_178] : memref<2x2x16x32xf32, #tpu.memory_space<vmem>>, vector<1x1x16x32xf32>
    %240 = vector.shape_cast %239 : vector<1x1x16x32xf32> to vector<16x32xf32>
    %cst_179 = arith.constant dense<0.000000e+00> : vector<16x32xf32>
    %241 = tpu.matmul %238, %240, %cst_179 {dimension_numbers = #tpu.dot_dimension_numbers<[1], [0], [0], [1], [0, 0, 1, 1], [], []>} : vector<16x16xf32>, vector<16x32xf32>, vector<16x32xf32> -> vector<16x32xf32>
    %242 = arith.addf %202, %241 : vector<16x32xf32>
    %c1_180 = arith.constant 1 : index
    %c0_181 = arith.constant 0 : index
    %c0_182 = arith.constant 0 : index
    %243 = vector.load %arg11[%c1_180, %c0_181, %c0_182] : memref<2x6x32xf32, #tpu.memory_space<vmem>>, vector<1x1x32xf32>
    %244 = vector.shape_cast %243 : vector<1x1x32xf32> to vector<1x32xf32>
    %245 = vector.broadcast %244 : vector<1x32xf32> to vector<16x32xf32>
    %246 = arith.addf %242, %245 : vector<16x32xf32>
    %247 = arith.addf %163, %246 : vector<16x32xf32>
    %c1_183 = arith.constant 1 : index
    %c1_184 = arith.constant 1 : index
    %c0_185 = arith.constant 0 : index
    %248 = vector.load %arg11[%c1_183, %c1_184, %c0_185] : memref<2x6x32xf32, #tpu.memory_space<vmem>>, vector<1x1x32xf32>
    %249 = vector.shape_cast %248 : vector<1x1x32xf32> to vector<1x32xf32>
    %c1_186 = arith.constant 1 : index
    %c2_187 = arith.constant 2 : index
    %c0_188 = arith.constant 0 : index
    %250 = vector.load %arg11[%c1_186, %c2_187, %c0_188] : memref<2x6x32xf32, #tpu.memory_space<vmem>>, vector<1x1x32xf32>
    %251 = vector.shape_cast %250 : vector<1x1x32xf32> to vector<1x32xf32>
    %cst_189 = arith.constant dense<0.000000e+00> : vector<16xf32>
    %252 = vector.multi_reduction <add>, %247, %cst_189 [1] : vector<16x32xf32> to vector<16xf32>
    %253 = vector.shape_cast %252 : vector<16xf32> to vector<16x1xf32>
    %cst_190 = arith.constant 3.200000e+01 : f32
    %254 = vector.broadcast %cst_190 : f32 to vector<16x1xf32>
    %255 = arith.divf %253, %254 : vector<16x1xf32>
    %256 = vector.broadcast %255 : vector<16x1xf32> to vector<16x32xf32>
    %257 = arith.subf %247, %256 : vector<16x32xf32>
    %258 = arith.mulf %257, %257 : vector<16x32xf32>
    %cst_191 = arith.constant dense<0.000000e+00> : vector<16xf32>
    %259 = vector.multi_reduction <add>, %258, %cst_191 [1] : vector<16x32xf32> to vector<16xf32>
    %260 = vector.shape_cast %259 : vector<16xf32> to vector<16x1xf32>
    %cst_192 = arith.constant 3.200000e+01 : f32
    %261 = vector.broadcast %cst_192 : f32 to vector<16x1xf32>
    %262 = arith.divf %260, %261 : vector<16x1xf32>
    %cst_193 = arith.constant 9.99999974E-6 : f32
    %263 = vector.broadcast %cst_193 : f32 to vector<16x1xf32>
    %264 = arith.addf %262, %263 : vector<16x1xf32>
    %265 = math.rsqrt %264 : vector<16x1xf32>
    %266 = vector.broadcast %265 : vector<16x1xf32> to vector<16x32xf32>
    %267 = arith.mulf %257, %266 : vector<16x32xf32>
    %268 = vector.broadcast %249 : vector<1x32xf32> to vector<16x32xf32>
    %269 = arith.mulf %267, %268 : vector<16x32xf32>
    %270 = vector.broadcast %251 : vector<1x32xf32> to vector<16x32xf32>
    %271 = arith.addf %269, %270 : vector<16x32xf32>
    %c1_194 = arith.constant 1 : index
    %c0_195 = arith.constant 0 : index
    %c0_196 = arith.constant 0 : index
    %272 = vector.load %arg9[%c1_194, %c0_195, %c0_196] : memref<2x32x64xf32, #tpu.memory_space<vmem>>, vector<1x32x64xf32>
    %273 = vector.shape_cast %272 : vector<1x32x64xf32> to vector<32x64xf32>
    %cst_197 = arith.constant dense<0.000000e+00> : vector<16x64xf32>
    %274 = tpu.matmul %271, %273, %cst_197 {dimension_numbers = #tpu.dot_dimension_numbers<[1], [0], [0], [1], [0, 0, 1, 1], [], []>} : vector<16x32xf32>, vector<32x64xf32>, vector<16x64xf32> -> vector<16x64xf32>
    %c1_198 = arith.constant 1 : index
    %c0_199 = arith.constant 0 : index
    %275 = vector.load %arg12[%c1_198, %c0_199] : memref<2x64xf32, #tpu.memory_space<vmem>>, vector<1x64xf32>
    %276 = vector.broadcast %275 : vector<1x64xf32> to vector<16x64xf32>
    %277 = arith.addf %274, %276 : vector<16x64xf32>
    %cst_200 = arith.constant 0.000000e+00 : f32
    %278 = vector.broadcast %cst_200 : f32 to vector<16x64xf32>
    %279 = arith.maximumf %277, %278 : vector<16x64xf32>
    %c1_201 = arith.constant 1 : index
    %c0_202 = arith.constant 0 : index
    %c0_203 = arith.constant 0 : index
    %280 = vector.load %arg10[%c1_201, %c0_202, %c0_203] : memref<2x64x32xf32, #tpu.memory_space<vmem>>, vector<1x64x32xf32>
    %281 = vector.shape_cast %280 : vector<1x64x32xf32> to vector<64x32xf32>
    %cst_204 = arith.constant dense<0.000000e+00> : vector<16x32xf32>
    %282 = tpu.matmul %279, %281, %cst_204 {dimension_numbers = #tpu.dot_dimension_numbers<[1], [0], [0], [1], [0, 0, 1, 1], [], []>} : vector<16x64xf32>, vector<64x32xf32>, vector<16x32xf32> -> vector<16x32xf32>
    %c1_205 = arith.constant 1 : index
    %c3_206 = arith.constant 3 : index
    %c0_207 = arith.constant 0 : index
    %283 = vector.load %arg11[%c1_205, %c3_206, %c0_207] : memref<2x6x32xf32, #tpu.memory_space<vmem>>, vector<1x1x32xf32>
    %284 = vector.shape_cast %283 : vector<1x1x32xf32> to vector<1x32xf32>
    %285 = vector.broadcast %284 : vector<1x32xf32> to vector<16x32xf32>
    %286 = arith.addf %282, %285 : vector<16x32xf32>
    %287 = arith.addf %271, %286 : vector<16x32xf32>
    %c1_208 = arith.constant 1 : index
    %c4_209 = arith.constant 4 : index
    %c0_210 = arith.constant 0 : index
    %288 = vector.load %arg11[%c1_208, %c4_209, %c0_210] : memref<2x6x32xf32, #tpu.memory_space<vmem>>, vector<1x1x32xf32>
    %289 = vector.shape_cast %288 : vector<1x1x32xf32> to vector<1x32xf32>
    %c1_211 = arith.constant 1 : index
    %c5_212 = arith.constant 5 : index
    %c0_213 = arith.constant 0 : index
    %290 = vector.load %arg11[%c1_211, %c5_212, %c0_213] : memref<2x6x32xf32, #tpu.memory_space<vmem>>, vector<1x1x32xf32>
    %291 = vector.shape_cast %290 : vector<1x1x32xf32> to vector<1x32xf32>
    %cst_214 = arith.constant dense<0.000000e+00> : vector<16xf32>
    %292 = vector.multi_reduction <add>, %287, %cst_214 [1] : vector<16x32xf32> to vector<16xf32>
    %293 = vector.shape_cast %292 : vector<16xf32> to vector<16x1xf32>
    %cst_215 = arith.constant 3.200000e+01 : f32
    %294 = vector.broadcast %cst_215 : f32 to vector<16x1xf32>
    %295 = arith.divf %293, %294 : vector<16x1xf32>
    %296 = vector.broadcast %295 : vector<16x1xf32> to vector<16x32xf32>
    %297 = arith.subf %287, %296 : vector<16x32xf32>
    %298 = arith.mulf %297, %297 : vector<16x32xf32>
    %cst_216 = arith.constant dense<0.000000e+00> : vector<16xf32>
    %299 = vector.multi_reduction <add>, %298, %cst_216 [1] : vector<16x32xf32> to vector<16xf32>
    %300 = vector.shape_cast %299 : vector<16xf32> to vector<16x1xf32>
    %cst_217 = arith.constant 3.200000e+01 : f32
    %301 = vector.broadcast %cst_217 : f32 to vector<16x1xf32>
    %302 = arith.divf %300, %301 : vector<16x1xf32>
    %cst_218 = arith.constant 9.99999974E-6 : f32
    %303 = vector.broadcast %cst_218 : f32 to vector<16x1xf32>
    %304 = arith.addf %302, %303 : vector<16x1xf32>
    %305 = math.rsqrt %304 : vector<16x1xf32>
    %306 = vector.broadcast %305 : vector<16x1xf32> to vector<16x32xf32>
    %307 = arith.mulf %297, %306 : vector<16x32xf32>
    %308 = vector.broadcast %289 : vector<1x32xf32> to vector<16x32xf32>
    %309 = arith.mulf %307, %308 : vector<16x32xf32>
    %310 = vector.broadcast %291 : vector<1x32xf32> to vector<16x32xf32>
    %311 = arith.addf %309, %310 : vector<16x32xf32>
    %c1_219 = arith.constant 1 : index
    %c0_220 = arith.constant 0 : index
    %c0_221 = arith.constant 0 : index
    %312 = vector.load %arg4[%c1_219, %c0_220, %c0_221] : memref<3x32x32xf32, #tpu.memory_space<vmem>>, vector<1x32x32xf32>
    %313 = vector.shape_cast %312 : vector<1x32x32xf32> to vector<32x32xf32>
    %cst_222 = arith.constant dense<0.000000e+00> : vector<16x32xf32>
    %314 = tpu.matmul %311, %313, %cst_222 {dimension_numbers = #tpu.dot_dimension_numbers<[1], [0], [0], [1], [0, 0, 1, 1], [], []>} : vector<16x32xf32>, vector<32x32xf32>, vector<16x32xf32> -> vector<16x32xf32>
    %c2_223 = arith.constant 2 : index
    %c0_224 = arith.constant 0 : index
    %315 = vector.load %arg5[%c2_223, %c0_224] : memref<6x32xf32, #tpu.memory_space<vmem>>, vector<1x32xf32>
    %316 = vector.broadcast %315 : vector<1x32xf32> to vector<16x32xf32>
    %317 = arith.addf %314, %316 : vector<16x32xf32>
    %c3_225 = arith.constant 3 : index
    %c0_226 = arith.constant 0 : index
    %318 = vector.load %arg5[%c3_225, %c0_226] : memref<6x32xf32, #tpu.memory_space<vmem>>, vector<1x32xf32>
    %c4_227 = arith.constant 4 : index
    %c0_228 = arith.constant 0 : index
    %319 = vector.load %arg5[%c4_227, %c0_228] : memref<6x32xf32, #tpu.memory_space<vmem>>, vector<1x32xf32>
    %cst_229 = arith.constant dense<0.000000e+00> : vector<16xf32>
    %320 = vector.multi_reduction <add>, %317, %cst_229 [1] : vector<16x32xf32> to vector<16xf32>
    %321 = vector.shape_cast %320 : vector<16xf32> to vector<16x1xf32>
    %cst_230 = arith.constant 3.200000e+01 : f32
    %322 = vector.broadcast %cst_230 : f32 to vector<16x1xf32>
    %323 = arith.divf %321, %322 : vector<16x1xf32>
    %324 = vector.broadcast %323 : vector<16x1xf32> to vector<16x32xf32>
    %325 = arith.subf %317, %324 : vector<16x32xf32>
    %326 = arith.mulf %325, %325 : vector<16x32xf32>
    %cst_231 = arith.constant dense<0.000000e+00> : vector<16xf32>
    %327 = vector.multi_reduction <add>, %326, %cst_231 [1] : vector<16x32xf32> to vector<16xf32>
    %328 = vector.shape_cast %327 : vector<16xf32> to vector<16x1xf32>
    %cst_232 = arith.constant 3.200000e+01 : f32
    %329 = vector.broadcast %cst_232 : f32 to vector<16x1xf32>
    %330 = arith.divf %328, %329 : vector<16x1xf32>
    %cst_233 = arith.constant 9.99999974E-6 : f32
    %331 = vector.broadcast %cst_233 : f32 to vector<16x1xf32>
    %332 = arith.addf %330, %331 : vector<16x1xf32>
    %333 = math.rsqrt %332 : vector<16x1xf32>
    %334 = vector.broadcast %333 : vector<16x1xf32> to vector<16x32xf32>
    %335 = arith.mulf %325, %334 : vector<16x32xf32>
    %336 = vector.broadcast %318 : vector<1x32xf32> to vector<16x32xf32>
    %337 = arith.mulf %335, %336 : vector<16x32xf32>
    %338 = vector.broadcast %319 : vector<1x32xf32> to vector<16x32xf32>
    %339 = arith.addf %337, %338 : vector<16x32xf32>
    %cst_234 = arith.constant 0.000000e+00 : f32
    %340 = vector.broadcast %cst_234 : f32 to vector<16x32xf32>
    %341 = arith.maximumf %339, %340 : vector<16x32xf32>
    %c2_235 = arith.constant 2 : index
    %c0_236 = arith.constant 0 : index
    %c0_237 = arith.constant 0 : index
    %342 = vector.load %arg4[%c2_235, %c0_236, %c0_237] : memref<3x32x32xf32, #tpu.memory_space<vmem>>, vector<1x32x32xf32>
    %343 = vector.shape_cast %342 : vector<1x32x32xf32> to vector<32x32xf32>
    %cst_238 = arith.constant dense<0.000000e+00> : vector<16x32xf32>
    %344 = tpu.matmul %341, %343, %cst_238 {dimension_numbers = #tpu.dot_dimension_numbers<[1], [0], [0], [1], [0, 0, 1, 1], [], []>} : vector<16x32xf32>, vector<32x32xf32>, vector<16x32xf32> -> vector<16x32xf32>
    %c5_239 = arith.constant 5 : index
    %c0_240 = arith.constant 0 : index
    %345 = vector.load %arg5[%c5_239, %c0_240] : memref<6x32xf32, #tpu.memory_space<vmem>>, vector<1x32xf32>
    %346 = vector.broadcast %345 : vector<1x32xf32> to vector<16x32xf32>
    %347 = arith.addf %344, %346 : vector<16x32xf32>
    %cst_241 = arith.constant 0.000000e+00 : f32
    %348 = vector.broadcast %cst_241 : f32 to vector<16x32xf32>
    %349 = arith.maximumf %347, %348 : vector<16x32xf32>
    %c0_242 = arith.constant 0 : index
    %c0_243 = arith.constant 0 : index
    %350 = vector.load %arg13[%c0_242, %c0_243] : memref<32x16xf32, #tpu.memory_space<vmem>>, vector<32x16xf32>
    %cst_244 = arith.constant dense<0.000000e+00> : vector<16x16xf32>
    %351 = tpu.matmul %349, %350, %cst_244 {dimension_numbers = #tpu.dot_dimension_numbers<[1], [0], [0], [1], [0, 0, 1, 1], [], []>} : vector<16x32xf32>, vector<32x16xf32>, vector<16x16xf32> -> vector<16x16xf32>
    %c0_245 = arith.constant 0 : index
    %c0_246 = arith.constant 0 : index
    %352 = vector.load %arg14[%c0_245, %c0_246] : memref<1x16xf32, #tpu.memory_space<vmem>>, vector<1x16xf32>
    %353 = vector.broadcast %352 : vector<1x16xf32> to vector<16x16xf32>
    %354 = arith.addf %351, %353 : vector<16x16xf32>
    %c0_247 = arith.constant 0 : index
    %c0_248 = arith.constant 0 : index
    %355 = vector.load %arg15[%c0_247, %c0_248] : memref<16x16xf32, #tpu.memory_space<vmem>>, vector<16x16xf32>
    tpu.vector_store %arg15[%c0_247, %c0_248], %354 {strides = array<i32>} : memref<16x16xf32, #tpu.memory_space<vmem>>, vector<16x16xf32>,
    return
  }
  func.func @transform_0(%arg0: i32) -> (i32, i32) {
    %c0_i32 = arith.constant 0 : i32
    %c0_i32_0 = arith.constant 0 : i32
    return %arg0, %c0_i32 : i32, i32
  }
  func.func @transform_1(%arg0: i32) -> (i32, i32) {
    %c0_i32 = arith.constant 0 : i32
    %c0_i32_0 = arith.constant 0 : i32
    %c0_i32_1 = arith.constant 0 : i32
    return %c0_i32, %c0_i32_0 : i32, i32
  }
  func.func @transform_2(%arg0: i32) -> (i32, i32) {
    %c0_i32 = arith.constant 0 : i32
    %c0_i32_0 = arith.constant 0 : i32
    %c0_i32_1 = arith.constant 0 : i32
    return %c0_i32, %c0_i32_0 : i32, i32
  }
  func.func @transform_3(%arg0: i32) -> (i32, i32, i32) {
    %c0_i32 = arith.constant 0 : i32
    %c0_i32_0 = arith.constant 0 : i32
    %c0_i32_1 = arith.constant 0 : i32
    %c0_i32_2 = arith.constant 0 : i32
    return %c0_i32, %c0_i32_0, %c0_i32_1 : i32, i32, i32
  }
  func.func @transform_4(%arg0: i32) -> (i32, i32) {
    %c0_i32 = arith.constant 0 : i32
    %c0_i32_0 = arith.constant 0 : i32
    %c0_i32_1 = arith.constant 0 : i32
    return %c0_i32, %c0_i32_0 : i32, i32
  }
  func.func @transform_5(%arg0: i32) -> (i32, i32, i32, i32) {
    %c0_i32 = arith.constant 0 : i32
    %c0_i32_0 = arith.constant 0 : i32
    %c0_i32_1 = arith.constant 0 : i32
    %c0_i32_2 = arith.constant 0 : i32
    %c0_i32_3 = arith.constant 0 : i32
    return %c0_i32, %c0_i32_0, %c0_i32_1, %c0_i32_2 : i32, i32, i32, i32
  }
  func.func @transform_6(%arg0: i32) -> (i32, i32, i32) {
    %c0_i32 = arith.constant 0 : i32
    %c0_i32_0 = arith.constant 0 : i32
    %c0_i32_1 = arith.constant 0 : i32
    %c0_i32_2 = arith.constant 0 : i32
    return %c0_i32, %c0_i32_0, %c0_i32_1 : i32, i32, i32
  }
  func.func @transform_7(%arg0: i32) -> (i32, i32, i32, i32) {
    %c0_i32 = arith.constant 0 : i32
    %c0_i32_0 = arith.constant 0 : i32
    %c0_i32_1 = arith.constant 0 : i32
    %c0_i32_2 = arith.constant 0 : i32
    %c0_i32_3 = arith.constant 0 : i32
    return %c0_i32, %c0_i32_0, %c0_i32_1, %c0_i32_2 : i32, i32, i32, i32
  }
  func.func @transform_8(%arg0: i32) -> (i32, i32, i32) {
    %c0_i32 = arith.constant 0 : i32
    %c0_i32_0 = arith.constant 0 : i32
    %c0_i32_1 = arith.constant 0 : i32
    %c0_i32_2 = arith.constant 0 : i32
    return %c0_i32, %c0_i32_0, %c0_i32_1 : i32, i32, i32
  }
  func.func @transform_9(%arg0: i32) -> (i32, i32, i32) {
    %c0_i32 = arith.constant 0 : i32
    %c0_i32_0 = arith.constant 0 : i32
    %c0_i32_1 = arith.constant 0 : i32
    %c0_i32_2 = arith.constant 0 : i32
    return %c0_i32, %c0_i32_0, %c0_i32_1 : i32, i32, i32
  }
  func.func @transform_10(%arg0: i32) -> (i32, i32, i32) {
    %c0_i32 = arith.constant 0 : i32
    %c0_i32_0 = arith.constant 0 : i32
    %c0_i32_1 = arith.constant 0 : i32
    %c0_i32_2 = arith.constant 0 : i32
    return %c0_i32, %c0_i32_0, %c0_i32_1 : i32, i32, i32
  }
  func.func @transform_11(%arg0: i32) -> (i32, i32) {
    %c0_i32 = arith.constant 0 : i32
    %c0_i32_0 = arith.constant 0 : i32
    %c0_i32_1 = arith.constant 0 : i32
    return %c0_i32, %c0_i32_0 : i32, i32
  }
  func.func @transform_12(%arg0: i32) -> (i32, i32) {
    %c0_i32 = arith.constant 0 : i32
    %c0_i32_0 = arith.constant 0 : i32
    %c0_i32_1 = arith.constant 0 : i32
    return %c0_i32, %c0_i32_0 : i32, i32
  }
  func.func @transform_13(%arg0: i32) -> (i32, i32) {
    %c0_i32 = arith.constant 0 : i32
    %c0_i32_0 = arith.constant 0 : i32
    %c0_i32_1 = arith.constant 0 : i32
    return %c0_i32, %c0_i32_0 : i32, i32
  }
  func.func @transform_14(%arg0: i32) -> (i32, i32) {
    %c0_i32 = arith.constant 0 : i32
    %c0_i32_0 = arith.constant 0 : i32
    return %arg0, %c0_i32 : i32, i32
  }
}

</mosaic_0001>

<llo_original>
// kernel: transformer_predictor_forward.1
$region0: #{transformer_predictor_forward.1}
  #allocation0 [shape = 'u32[]', space=smem, size = 0x4, offset = 0x4, fixed_abs, tag = 'smem constant byte address 0x4 - core index']
  #allocation1 [shape = 'u32[144,128]{1,0:T(1,128)}', space=vmem, size = 0x12000, scoped, tag = 'internal scratch']
  %s0 = inlined_call_operand.vmem [shape: f32[16,16], index: 0, kind: input, shape index: {}]
  %s1 = inlined_call_operand.vmem [shape: f32[16,32], index: 1, kind: input, shape index: {}]
  %s2 = inlined_call_operand.vmem [shape: f32[16,32], index: 2, kind: input, shape index: {}]
  %s3 = inlined_call_operand.vmem [shape: f32[3,32,32], index: 3, kind: input, shape index: {}]
  %s4 = inlined_call_operand.vmem [shape: f32[6,32], index: 4, kind: input, shape index: {}]
  %s5 = inlined_call_operand.vmem [shape: f32[2,6,32,16], index: 5, kind: input, shape index: {}]
  %s6 = inlined_call_operand.vmem [shape: f32[2,6,16], index: 6, kind: input, shape index: {}]
  %s7 = inlined_call_operand.vmem [shape: f32[2,2,16,32], index: 7, kind: input, shape index: {}]
  %s8 = inlined_call_operand.vmem [shape: f32[2,32,64], index: 8, kind: input, shape index: {}]
  %s9 = inlined_call_operand.vmem [shape: f32[2,64,32], index: 9, kind: input, shape index: {}]
  %s10 = inlined_call_operand.vmem [shape: f32[2,6,32], index: 10, kind: input, shape index: {}]
  %s11 = inlined_call_operand.vmem [shape: f32[2,64], index: 11, kind: input, shape index: {}]
  %s12 = inlined_call_operand.vmem [shape: f32[32,16], index: 12, kind: input, shape index: {}]
  %s13 = inlined_call_operand.vmem [shape: f32[1,16], index: 13, kind: input, shape index: {}]
  %s14 = inlined_call_operand.hbm [shape: f32[16,16], index: 14, kind: output, shape index: {}]
  %s15 = sld [smem:[#allocation0]]
  $region66: #{transformer_predictor_forward.1} parent=0
    _
  %s17 = ssub.s32 1, %s15
  %s18 = scalar_select 0, %s17, %s15
  $region1: #{transformer_predictor_forward.1} parent=0
    #allocation2 [shape = 'u8[8192]{0}', space=vmem, size = 0x2000, scoped, tag = 'output window, operand 0, single buffered']
    #allocation3 [shape = 's32[1]{0}', space=sflag, size = 0x4, scoped, tag = 'scoped memory for transformer_predictor_forward.1']
    %19 = vsyncpa [#allocation3], 0
    // Predicated region
    $region2: #{transformer_predictor_forward.1} parent=1 // pred_check
      _
    $region3: #{transformer_predictor_forward.1} parent=1 // pred_check_branch
      %21 = sbr.rel (0) target = $region5
    $region4: #{transformer_predictor_forward.1} parent=1 // pred_region
      _
    $region5: #{transformer_predictor_forward.1} parent=1 // pred_fallthru
      _
    // Predicated region
    $region6: #{transformer_predictor_forward.1} parent=1 // pred_check
      _
    $region7: #{transformer_predictor_forward.1} parent=1 // pred_check_branch
      %23 = sbr.rel (0) target = $region9
    $region8: #{transformer_predictor_forward.1} parent=1 // pred_region
      _
    $region9: #{transformer_predictor_forward.1} parent=1 // pred_fallthru
      _
    // Predicated region
    $region10: #{transformer_predictor_forward.1} parent=1 // pred_check
      _
    $region11: #{transformer_predictor_forward.1} parent=1 // pred_check_branch
      %25 = sbr.rel (0) target = $region13
    $region12: #{transformer_predictor_forward.1} parent=1 // pred_region
      _
    $region13: #{transformer_predictor_forward.1} parent=1 // pred_fallthru
      _
    // Predicated region
    $region14: #{transformer_predictor_forward.1} parent=1 // pred_check
      _
    $region15: #{transformer_predictor_forward.1} parent=1 // pred_check_branch
      %27 = sbr.rel (0) target = $region17
    $region16: #{transformer_predictor_forward.1} parent=1 // pred_region
      _
    $region17: #{transformer_predictor_forward.1} parent=1 // pred_fallthru
      _
    // Predicated region
    $region18: #{transformer_predictor_forward.1} parent=1 // pred_check
      _
    $region19: #{transformer_predictor_forward.1} parent=1 // pred_check_branch
      %29 = sbr.rel (0) target = $region21
    $region20: #{transformer_predictor_forward.1} parent=1 // pred_region
      _
    $region21: #{transformer_predictor_forward.1} parent=1 // pred_fallthru
      _
    // Predicated region
    $region22: #{transformer_predictor_forward.1} parent=1 // pred_check
      _
    $region23: #{transformer_predictor_forward.1} parent=1 // pred_check_branch
      %31 = sbr.rel (0) target = $region25
    $region24: #{transformer_predictor_forward.1} parent=1 // pred_region
      _
    $region25: #{transformer_predictor_forward.1} parent=1 // pred_fallthru
      _
    // Predicated region
    $region26: #{transformer_predictor_forward.1} parent=1 // pred_check
      _
    $region27: #{transformer_predictor_forward.1} parent=1 // pred_check_branch
      %33 = sbr.rel (0) target = $region29
    $region28: #{transformer_predictor_forward.1} parent=1 // pred_region
      _
    $region29: #{transformer_predictor_forward.1} parent=1 // pred_fallthru
      _
    // Predicated region
    $region30: #{transformer_predictor_forward.1} parent=1 // pred_check
      _
    $region31: #{transformer_predictor_forward.1} parent=1 // pred_check_branch
      %35 = sbr.rel (0) target = $region33
    $region32: #{transformer_predictor_forward.1} parent=1 // pred_region
      _
    $region33: #{transformer_predictor_forward.1} parent=1 // pred_fallthru
      _
    // Predicated region
    $region34: #{transformer_predictor_forward.1} parent=1 // pred_check
      _
    $region35: #{transformer_predictor_forward.1} parent=1 // pred_check_branch
      %37 = sbr.rel (0) target = $region37
    $region36: #{transformer_predictor_forward.1} parent=1 // pred_region
      _
    $region37: #{transformer_predictor_forward.1} parent=1 // pred_fallthru
      _
    // Predicated region
    $region38: #{transformer_predictor_forward.1} parent=1 // pred_check
      _
    $region39: #{transformer_predictor_forward.1} parent=1 // pred_check_branch
      %39 = sbr.rel (0) target = $region41
    $region40: #{transformer_predictor_forward.1} parent=1 // pred_region
      _
    $region41: #{transformer_predictor_forward.1} parent=1 // pred_fallthru
      _
    // Predicated region
    $region42: #{transformer_predictor_forward.1} parent=1 // pred_check
      _
    $region43: #{transformer_predictor_forward.1} parent=1 // pred_check_branch
      %41 = sbr.rel (0) target = $region45
    $region44: #{transformer_predictor_forward.1} parent=1 // pred_region
      _
    $region45: #{transformer_predictor_forward.1} parent=1 // pred_fallthru
      _
    // Predicated region
    $region46: #{transformer_predictor_forward.1} parent=1 // pred_check
      _
    $region47: #{transformer_predictor_forward.1} parent=1 // pred_check_branch
      %43 = sbr.rel (0) target = $region49
    $region48: #{transformer_predictor_forward.1} parent=1 // pred_region
      _
    $region49: #{transformer_predictor_forward.1} parent=1 // pred_fallthru
      _
    // Predicated region
    $region50: #{transformer_predictor_forward.1} parent=1 // pred_check
      _
    $region51: #{transformer_predictor_forward.1} parent=1 // pred_check_branch
      %45 = sbr.rel (0) target = $region53
    $region52: #{transformer_predictor_forward.1} parent=1 // pred_region
      _
    $region53: #{transformer_predictor_forward.1} parent=1 // pred_fallthru
      _
    // Predicated region
    $region54: #{transformer_predictor_forward.1} parent=1 // pred_check
      _
    $region55: #{transformer_predictor_forward.1} parent=1 // pred_check_branch
      %47 = sbr.rel (0) target = $region57
    $region56: #{transformer_predictor_forward.1} parent=1 // pred_region
      _
    $region57: #{transformer_predictor_forward.1} parent=1 // pred_fallthru
      _
    %v48 = vld [vmem:[%s0] sm:$0xff]
    %v49 = vld [vmem:[%s0 + $0x8] sm:$0xff]
    %v50 = vld [vmem:[%s2] sm:$0xff]
    %v51 = vld [vmem:[%s2 + $0x8] sm:$0xff]
    %v52 = vld [vmem:[%s4] sm:$0x1]
    %v53 = vlaneseq
    %v54 = vshrl.u32 %v53, 7
    %v55 = vsub.s32 0, %v54
    %v56 = vrot.slane %v52, %v55
    %vm57 = vcmask 130048
    %v59 = vsel %vm57, %v48, 0
    %v62 = vsel %vm57, %v49, 0
    %64 = vmatprep.subr.mxu0 0.0
    %65 = vmatpush1.msra.mxu0 %v50
    %66 = vmatprep.subr.mxu0 0.0
    %67 = vmatpush1.msra.mxu0 %v51
    %68 = vmatprep.subr.mxu0 0.0
    %69 = vmatpush1.msra.mxu0 0.0
    %70 = vmatprep.subr.mxu0 0.0
    %71 = vmatpush1.msra.mxu0 0.0
    %72 = vmatprep.subr.mxu0 0.0
    %73 = vmatpush1.msra.mxu0 0.0
    %74 = vmatprep.subr.mxu0 0.0
    %75 = vmatpush1.msra.mxu0 0.0
    %76 = vmatprep.subr.mxu0 0.0
    %77 = vmatpush1.msra.mxu0 0.0
    %78 = vmatprep.subr.mxu0 0.0
    %79 = vmatpush1.msra.mxu0 0.0
    %80 = vmatprep.subr.mxu0 0.0
    %81 = vmatpush1.msra.mxu0 0.0
    %82 = vmatprep.subr.mxu0 0.0
    %83 = vmatpush1.msra.mxu0 0.0
    %84 = vmatprep.subr.mxu0 0.0
    %85 = vmatpush1.msra.mxu0 0.0
    %86 = vmatprep.subr.mxu0 0.0
    %87 = vmatpush1.msra.mxu0 0.0
    %88 = vmatprep.subr.mxu0 0.0
    %89 = vmatpush1.msra.mxu0 0.0
    %90 = vmatprep.subr.mxu0 0.0
    %91 = vmatpush1.msra.mxu0 0.0
    %92 = vmatprep.subr.mxu0 0.0
    %93 = vmatpush1.msra.mxu0 0.0
    %94 = vmatprep.subr.mxu0 0.0
    %95 = vmatpush1.msra.mxu0 0.0
    %96 = vmatprep.subr.mxu0 0.0
    %97 = vmatpush1.msra.mxu0 0.0
    %98 = vmatprep.subr.mxu0 0.0
    %99 = vmatpush1.msra.mxu0 0.0
    %100 = vmatprep.subr.mxu0 0.0
    %101 = vmatpush1.msra.mxu0 0.0
    %102 = vmatprep.subr.mxu0 0.0
    %103 = vmatpush1.msra.mxu0 0.0
    %104 = vmatprep.subr.mxu0 0.0
    %105 = vmatpush1.msra.mxu0 0.0
    %106 = vmatprep.subr.mxu0 0.0
    %107 = vmatpush1.msra.mxu0 0.0
    %108 = vmatprep.subr.mxu0 0.0
    %109 = vmatpush1.msra.mxu0 0.0
    %110 = vmatprep.subr.mxu0 0.0
    %111 = vmatpush1.msra.mxu0 0.0
    %112 = vmatprep.subr.mxu0 0.0
    %113 = vmatpush1.msra.mxu0 0.0
    %114 = vmatprep.subr.mxu0 0.0
    %115 = vmatpush1.msra.mxu0 0.0
    %116 = vmatprep.subr.mxu0 0.0
    %117 = vmatpush1.msra.mxu0 0.0
    %118 = vmatprep.subr.mxu0 0.0
    %119 = vmatpush1.msra.mxu0 0.0
    %120 = vmatprep.subr.mxu0 0.0
    %121 = vmatpush1.msra.mxu0 0.0
    %122 = vmatprep.subr.mxu0 0.0
    %123 = vmatpush1.msra.mxu0 0.0
    %124 = vmatprep.subr.mxu0 0.0
    %125 = vmatpush1.msra.mxu0 0.0
    %126 = vmatprep.subr.mxu0 0.0
    %127 = vmatpush1.msra.mxu0 0.0
    %128 = vmatprep.mubr.f32.mxu0 0.0
    %129 = vmatmul.mubr.f32.gmra.mrb[0].mxu0 %v59
    %v130 = vpop.f32.mrb[0].mxu0
    %v131 = vadd.f32 %v56, %v130
    %v132 = vpop.f32.mrb[0].mxu0
    %133 = vmatprep.mubr.f32.mxu0 0.0
    %134 = vmatmul.mubr.f32.gmra.mrb[0].mxu0 %v62
    %v135 = vpop.f32.mrb[0].mxu0
    %v136 = vadd.f32 %v56, %v135
    %v137 = vpop.f32.mrb[0].mxu0
    %138 = vdwg.mxu0
    %v139 = vmax.f32 %v131, 0.0
    %v140 = vmax.f32 %v136, 0.0
    %v141 = vld [vmem:[%s3] sm:$0xff]
    %v142 = vld [vmem:[%s3 + $0x8] sm:$0xff]
    %v143 = vld [vmem:[%s3 + $0x10] sm:$0xff]
    %v144 = vld [vmem:[%s3 + $0x18] sm:$0xff]
    %v145 = vld [vmem:[%s4 + $0x1] sm:$0x1]
    %v146 = vlaneseq
    %v147 = vshrl.u32 %v146, 7
    %v148 = vsub.s32 0, %v147
    %v149 = vrot.slane %v145, %v148
    %vm150 = vcmask 261120
    %v152 = vsel %vm150, %v139, 0
    %v155 = vsel %vm150, %v140, 0
    %157 = vmatprep.subr.mxu0 0.0
    %158 = vmatpush1.msra.mxu0 %v141
    %159 = vmatprep.subr.mxu0 0.0
    %160 = vmatpush1.msra.mxu0 %v142
    %161 = vmatprep.subr.mxu0 0.0
    %162 = vmatpush1.msra.mxu0 %v143
    %163 = vmatprep.subr.mxu0 0.0
    %164 = vmatpush1.msra.mxu0 %v144
    %165 = vmatprep.subr.mxu0 0.0
    %166 = vmatpush1.msra.mxu0 0.0
    %167 = vmatprep.subr.mxu0 0.0
    %168 = vmatpush1.msra.mxu0 0.0
    %169 = vmatprep.subr.mxu0 0.0
    %170 = vmatpush1.msra.mxu0 0.0
    %171 = vmatprep.subr.mxu0 0.0
    %172 = vmatpush1.msra.mxu0 0.0
    %173 = vmatprep.subr.mxu0 0.0
    %174 = vmatpush1.msra.mxu0 0.0
    %175 = vmatprep.subr.mxu0 0.0
    %176 = vmatpush1.msra.mxu0 0.0
    %177 = vmatprep.subr.mxu0 0.0
    %178 = vmatpush1.msra.mxu0 0.0
    %179 = vmatprep.subr.mxu0 0.0
    %180 = vmatpush1.msra.mxu0 0.0
    %181 = vmatprep.subr.mxu0 0.0
    %182 = vmatpush1.msra.mxu0 0.0
    %183 = vmatprep.subr.mxu0 0.0
    %184 = vmatpush1.msra.mxu0 0.0
    %185 = vmatprep.subr.mxu0 0.0
    %186 = vmatpush1.msra.mxu0 0.0
    %187 = vmatprep.subr.mxu0 0.0
    %188 = vmatpush1.msra.mxu0 0.0
    %189 = vmatprep.subr.mxu0 0.0
    %190 = vmatpush1.msra.mxu0 0.0
    %191 = vmatprep.subr.mxu0 0.0
    %192 = vmatpush1.msra.mxu0 0.0
    %193 = vmatprep.subr.mxu0 0.0
    %194 = vmatpush1.msra.mxu0 0.0
    %195 = vmatprep.subr.mxu0 0.0
    %196 = vmatpush1.msra.mxu0 0.0
    %197 = vmatprep.subr.mxu0 0.0
    %198 = vmatpush1.msra.mxu0 0.0
    %199 = vmatprep.subr.mxu0 0.0
    %200 = vmatpush1.msra.mxu0 0.0
    %201 = vmatprep.subr.mxu0 0.0
    %202 = vmatpush1.msra.mxu0 0.0
    %203 = vmatprep.subr.mxu0 0.0
    %204 = vmatpush1.msra.mxu0 0.0
    %205 = vmatprep.subr.mxu0 0.0
    %206 = vmatpush1.msra.mxu0 0.0
    %207 = vmatprep.subr.mxu0 0.0
    %208 = vmatpush1.msra.mxu0 0.0
    %209 = vmatprep.subr.mxu0 0.0
    %210 = vmatpush1.msra.mxu0 0.0
    %211 = vmatprep.subr.mxu0 0.0
    %212 = vmatpush1.msra.mxu0 0.0
    %213 = vmatprep.subr.mxu0 0.0
    %214 = vmatpush1.msra.mxu0 0.0
    %215 = vmatprep.subr.mxu0 0.0
    %216 = vmatpush1.msra.mxu0 0.0
    %217 = vmatprep.subr.mxu0 0.0
    %218 = vmatpush1.msra.mxu0 0.0
    %219 = vmatprep.subr.mxu0 0.0
    %220 = vmatpush1.msra.mxu0 0.0
    %221 = vmatprep.mubr.f32.mxu0 0.0
    %222 = vmatmul.mubr.f32.gmra.mrb[0].mxu0 %v152
    %v223 = vpop.f32.mrb[0].mxu0
    %v224 = vadd.f32 %v149, %v223
    %v225 = vpop.f32.mrb[0].mxu0
    %226 = vmatprep.mubr.f32.mxu0 0.0
    %227 = vmatmul.mubr.f32.gmra.mrb[0].mxu0 %v155
    %v228 = vpop.f32.mrb[0].mxu0
    %v229 = vadd.f32 %v149, %v228
    %v230 = vpop.f32.mrb[0].mxu0
    %231 = vdwg.mxu0
    %v232 = vld [vmem:[%s1] sm:$0xff]
    %v233 = vld [vmem:[%s1 + $0x8] sm:$0xff]
    %v234 = vadd.f32 %v224, %v232
    %v235 = vadd.f32 %v229, %v233
    %v236 = vld [vmem:[%s5] sm:$0xff]
    %v237 = vld [vmem:[%s5 + $0x8] sm:$0xff]
    %v238 = vld [vmem:[%s5 + $0x10] sm:$0xff]
    %v239 = vld [vmem:[%s5 + $0x18] sm:$0xff]
    %v240 = vld [vmem:[%s6] sm:$0x1]
    %v241 = vlaneseq
    %v242 = vshrl.u32 %v241, 7
    %v243 = vsub.s32 0, %v242
    %v244 = vrot.slane %v240, %v243
    %v246 = vsel %vm150, %v234, 0
    %v249 = vsel %vm150, %v235, 0
    %251 = vmatprep.subr.mxu0 0.0
    %252 = vmatpush1.msra.mxu0 %v236
    %253 = vmatprep.subr.mxu0 0.0
    %254 = vmatpush1.msra.mxu0 %v237
    %255 = vmatprep.subr.mxu0 0.0
    %256 = vmatpush1.msra.mxu0 %v238
    %257 = vmatprep.subr.mxu0 0.0
    %258 = vmatpush1.msra.mxu0 %v239
    %259 = vmatprep.subr.mxu0 0.0
    %260 = vmatpush1.msra.mxu0 0.0
    %261 = vmatprep.subr.mxu0 0.0
    %262 = vmatpush1.msra.mxu0 0.0
    %263 = vmatprep.subr.mxu0 0.0
    %264 = vmatpush1.msra.mxu0 0.0
    %265 = vmatprep.subr.mxu0 0.0
    %266 = vmatpush1.msra.mxu0 0.0
    %267 = vmatprep.subr.mxu0 0.0
    %268 = vmatpush1.msra.mxu0 0.0
    %269 = vmatprep.subr.mxu0 0.0
    %270 = vmatpush1.msra.mxu0 0.0
    %271 = vmatprep.subr.mxu0 0.0
    %272 = vmatpush1.msra.mxu0 0.0
    %273 = vmatprep.subr.mxu0 0.0
    %274 = vmatpush1.msra.mxu0 0.0
    %275 = vmatprep.subr.mxu0 0.0
    %276 = vmatpush1.msra.mxu0 0.0
    %277 = vmatprep.subr.mxu0 0.0
    %278 = vmatpush1.msra.mxu0 0.0
    %279 = vmatprep.subr.mxu0 0.0
    %280 = vmatpush1.msra.mxu0 0.0
    %281 = vmatprep.subr.mxu0 0.0
    %282 = vmatpush1.msra.mxu0 0.0
    %283 = vmatprep.subr.mxu0 0.0
    %284 = vmatpush1.msra.mxu0 0.0
    %285 = vmatprep.subr.mxu0 0.0
    %286 = vmatpush1.msra.mxu0 0.0
    %287 = vmatprep.subr.mxu0 0.0
    %288 = vmatpush1.msra.mxu0 0.0
    %289 = vmatprep.subr.mxu0 0.0
    %290 = vmatpush1.msra.mxu0 0.0
    %291 = vmatprep.subr.mxu0 0.0
    %292 = vmatpush1.msra.mxu0 0.0
    %293 = vmatprep.subr.mxu0 0.0
    %294 = vmatpush1.msra.mxu0 0.0
    %295 = vmatprep.subr.mxu0 0.0
    %296 = vmatpush1.msra.mxu0 0.0
    %297 = vmatprep.subr.mxu0 0.0
    %298 = vmatpush1.msra.mxu0 0.0
    %299 = vmatprep.subr.mxu0 0.0
    %300 = vmatpush1.msra.mxu0 0.0
    %301 = vmatprep.subr.mxu0 0.0
    %302 = vmatpush1.msra.mxu0 0.0
    %303 = vmatprep.subr.mxu0 0.0
    %304 = vmatpush1.msra.mxu0 0.0
    %305 = vmatprep.subr.mxu0 0.0
    %306 = vmatpush1.msra.mxu0 0.0
    %307 = vmatprep.subr.mxu0 0.0
    %308 = vmatpush1.msra.mxu0 0.0
    %309 = vmatprep.subr.mxu0 0.0
    %310 = vmatpush1.msra.mxu0 0.0
    %311 = vmatprep.subr.mxu0 0.0
    %312 = vmatpush1.msra.mxu0 0.0
    %313 = vmatprep.subr.mxu0 0.0
    %314 = vmatpush1.msra.mxu0 0.0
    %315 = vmatprep.mubr.f32.mxu0 0.0
    %316 = vmatmul.mubr.f32.gmra.mrb[0].mxu0 %v246
    %v317 = vpop.f32.mrb[0].mxu0
    %v318 = vadd.f32 %v244, %v317
    %v319 = vpop.f32.mrb[0].mxu0
    %320 = vmatprep.mubr.f32.mxu0 0.0
    %321 = vmatmul.mubr.f32.gmra.mrb[0].mxu0 %v249
    %v322 = vpop.f32.mrb[0].mxu0
    %v323 = vadd.f32 %v244, %v322
    %v324 = vpop.f32.mrb[0].mxu0
    %325 = vdwg.mxu0
    %s326 = scalar_lea.vmem %s5, 64
    %v327 = vld [vmem:[%s326] sm:$0xff]
    %v328 = vld [vmem:[%s326 + $0x8] sm:$0xff]
    %v329 = vld [vmem:[%s326 + $0x10] sm:$0xff]
    %v330 = vld [vmem:[%s326 + $0x18] sm:$0xff]
    %v331 = vld [vmem:[%s6 + $0x2] sm:$0x1]
    %v332 = vlaneseq
    %v333 = vshrl.u32 %v332, 7
    %v334 = vsub.s32 0, %v333
    %v335 = vrot.slane %v331, %v334
    %336 = vmatprep.subr.mxu0 0.0
    %337 = vmatpush1.msra.mxu0 %v327
    %338 = vmatprep.subr.mxu0 0.0
    %339 = vmatpush1.msra.mxu0 %v328
    %340 = vmatprep.subr.mxu0 0.0
    %341 = vmatpush1.msra.mxu0 %v329
    %342 = vmatprep.subr.mxu0 0.0
    %343 = vmatpush1.msra.mxu0 %v330
    %344 = vmatprep.subr.mxu0 0.0
    %345 = vmatpush1.msra.mxu0 0.0
    %346 = vmatprep.subr.mxu0 0.0
    %347 = vmatpush1.msra.mxu0 0.0
    %348 = vmatprep.subr.mxu0 0.0
    %349 = vmatpush1.msra.mxu0 0.0
    %350 = vmatprep.subr.mxu0 0.0
    %351 = vmatpush1.msra.mxu0 0.0
    %352 = vmatprep.subr.mxu0 0.0
    %353 = vmatpush1.msra.mxu0 0.0
    %354 = vmatprep.subr.mxu0 0.0
    %355 = vmatpush1.msra.mxu0 0.0
    %356 = vmatprep.subr.mxu0 0.0
    %357 = vmatpush1.msra.mxu0 0.0
    %358 = vmatprep.subr.mxu0 0.0
    %359 = vmatpush1.msra.mxu0 0.0
    %360 = vmatprep.subr.mxu0 0.0
    %361 = vmatpush1.msra.mxu0 0.0
    %362 = vmatprep.subr.mxu0 0.0
    %363 = vmatpush1.msra.mxu0 0.0
    %364 = vmatprep.subr.mxu0 0.0
    %365 = vmatpush1.msra.mxu0 0.0
    %366 = vmatprep.subr.mxu0 0.0
    %367 = vmatpush1.msra.mxu0 0.0
    %368 = vmatprep.subr.mxu0 0.0
    %369 = vmatpush1.msra.mxu0 0.0
    %370 = vmatprep.subr.mxu0 0.0
    %371 = vmatpush1.msra.mxu0 0.0
    %372 = vmatprep.subr.mxu0 0.0
    %373 = vmatpush1.msra.mxu0 0.0
    %374 = vmatprep.subr.mxu0 0.0
    %375 = vmatpush1.msra.mxu0 0.0
    %376 = vmatprep.subr.mxu0 0.0
    %377 = vmatpush1.msra.mxu0 0.0
    %378 = vmatprep.subr.mxu0 0.0
    %379 = vmatpush1.msra.mxu0 0.0
    %380 = vmatprep.subr.mxu0 0.0
    %381 = vmatpush1.msra.mxu0 0.0
    %382 = vmatprep.subr.mxu0 0.0
    %383 = vmatpush1.msra.mxu0 0.0
    %384 = vmatprep.subr.mxu0 0.0
    %385 = vmatpush1.msra.mxu0 0.0
    %386 = vmatprep.subr.mxu0 0.0
    %387 = vmatpush1.msra.mxu0 0.0
    %388 = vmatprep.subr.mxu0 0.0
    %389 = vmatpush1.msra.mxu0 0.0
    %390 = vmatprep.subr.mxu0 0.0
    %391 = vmatpush1.msra.mxu0 0.0
    %392 = vmatprep.subr.mxu0 0.0
    %393 = vmatpush1.msra.mxu0 0.0
    %394 = vmatprep.subr.mxu0 0.0
    %395 = vmatpush1.msra.mxu0 0.0
    %396 = vmatprep.subr.mxu0 0.0
    %397 = vmatpush1.msra.mxu0 0.0
    %398 = vmatprep.subr.mxu0 0.0
    %399 = vmatpush1.msra.mxu0 0.0
    %400 = vmatprep.mubr.f32.mxu0 0.0
    %401 = vmatmul.mubr.f32.gmra.mrb[0].mxu0 %v246
    %v402 = vpop.f32.mrb[0].mxu0
    %v403 = vadd.f32 %v335, %v402
    %v404 = vpop.f32.mrb[0].mxu0
    %405 = vmatprep.mubr.f32.mxu0 0.0
    %406 = vmatmul.mubr.f32.gmra.mrb[0].mxu0 %v249
    %v407 = vpop.f32.mrb[0].mxu0
    %v408 = vadd.f32 %v335, %v407
    %v409 = vpop.f32.mrb[0].mxu0
    %410 = vdwg.mxu0
    %s411 = scalar_lea.vmem %s5, 128
    %v412 = vld [vmem:[%s411] sm:$0xff]
    %v413 = vld [vmem:[%s411 + $0x8] sm:$0xff]
    %v414 = vld [vmem:[%s411 + $0x10] sm:$0xff]
    %v415 = vld [vmem:[%s411 + $0x18] sm:$0xff]
    %v416 = vld [vmem:[%s6 + $0x4] sm:$0x1]
    %v417 = vlaneseq
    %v418 = vshrl.u32 %v417, 7
    %v419 = vsub.s32 0, %v418
    %v420 = vrot.slane %v416, %v419
    %421 = vmatprep.subr.mxu0 0.0
    %422 = vmatpush1.msra.mxu0 %v412
    %423 = vmatprep.subr.mxu0 0.0
    %424 = vmatpush1.msra.mxu0 %v413
    %425 = vmatprep.subr.mxu0 0.0
    %426 = vmatpush1.msra.mxu0 %v414
    %427 = vmatprep.subr.mxu0 0.0
    %428 = vmatpush1.msra.mxu0 %v415
    %429 = vmatprep.subr.mxu0 0.0
    %430 = vmatpush1.msra.mxu0 0.0
    %431 = vmatprep.subr.mxu0 0.0
    %432 = vmatpush1.msra.mxu0 0.0
    %433 = vmatprep.subr.mxu0 0.0
    %434 = vmatpush1.msra.mxu0 0.0
    %435 = vmatprep.subr.mxu0 0.0
    %436 = vmatpush1.msra.mxu0 0.0
    %437 = vmatprep.subr.mxu0 0.0
    %438 = vmatpush1.msra.mxu0 0.0
    %439 = vmatprep.subr.mxu0 0.0
    %440 = vmatpush1.msra.mxu0 0.0
    %441 = vmatprep.subr.mxu0 0.0
    %442 = vmatpush1.msra.mxu0 0.0
    %443 = vmatprep.subr.mxu0 0.0
    %444 = vmatpush1.msra.mxu0 0.0
    %445 = vmatprep.subr.mxu0 0.0
    %446 = vmatpush1.msra.mxu0 0.0
    %447 = vmatprep.subr.mxu0 0.0
    %448 = vmatpush1.msra.mxu0 0.0
    %449 = vmatprep.subr.mxu0 0.0
    %450 = vmatpush1.msra.mxu0 0.0
    %451 = vmatprep.subr.mxu0 0.0
    %452 = vmatpush1.msra.mxu0 0.0
    %453 = vmatprep.subr.mxu0 0.0
    %454 = vmatpush1.msra.mxu0 0.0
    %455 = vmatprep.subr.mxu0 0.0
    %456 = vmatpush1.msra.mxu0 0.0
    %457 = vmatprep.subr.mxu0 0.0
    %458 = vmatpush1.msra.mxu0 0.0
    %459 = vmatprep.subr.mxu0 0.0
    %460 = vmatpush1.msra.mxu0 0.0
    %461 = vmatprep.subr.mxu0 0.0
    %462 = vmatpush1.msra.mxu0 0.0
    %463 = vmatprep.subr.mxu0 0.0
    %464 = vmatpush1.msra.mxu0 0.0
    %465 = vmatprep.subr.mxu0 0.0
    %466 = vmatpush1.msra.mxu0 0.0
    %467 = vmatprep.subr.mxu0 0.0
    %468 = vmatpush1.msra.mxu0 0.0
    %469 = vmatprep.subr.mxu0 0.0
    %470 = vmatpush1.msra.mxu0 0.0
    %471 = vmatprep.subr.mxu0 0.0
    %472 = vmatpush1.msra.mxu0 0.0
    %473 = vmatprep.subr.mxu0 0.0
    %474 = vmatpush1.msra.mxu0 0.0
    %475 = vmatprep.subr.mxu0 0.0
    %476 = vmatpush1.msra.mxu0 0.0
    %477 = vmatprep.subr.mxu0 0.0
    %478 = vmatpush1.msra.mxu0 0.0
    %479 = vmatprep.subr.mxu0 0.0
    %480 = vmatpush1.msra.mxu0 0.0
    %481 = vmatprep.subr.mxu0 0.0
    %482 = vmatpush1.msra.mxu0 0.0
    %483 = vmatprep.subr.mxu0 0.0
    %484 = vmatpush1.msra.mxu0 0.0
    %485 = vmatprep.mubr.f32.mxu0 0.0
    %486 = vmatmul.mubr.f32.gmra.mrb[0].mxu0 %v246
    %v487 = vpop.f32.mrb[0].mxu0
    %v488 = vadd.f32 %v420, %v487
    %v489 = vpop.f32.mrb[0].mxu0
    %490 = vmatprep.mubr.f32.mxu0 0.0
    %491 = vmatmul.mubr.f32.gmra.mrb[0].mxu0 %v249
    %v492 = vpop.f32.mrb[0].mxu0
    %v493 = vadd.f32 %v420, %v492
    %v494 = vpop.f32.mrb[0].mxu0
    %495 = vdwg.mxu0
    %v497 = vsel %vm57, %v318, 0
    %v500 = vsel %vm57, %v403, 0
    %502 = vmatprep.subr.mxu0 0.0
    %503 = vmatpush1.xpose.msra.mxu0 %v500
    %504 = vmatprep.subr.mxu0 0.0
    %505 = vmatpush1.xpose.msra.mxu0 0.0
    %506 = vmatprep.subr.mxu0 0.0
    %507 = vmatpush1.xpose.msra.mxu0 0.0
    %508 = vmatprep.subr.mxu0 0.0
    %509 = vmatpush1.xpose.msra.mxu0 0.0
    %510 = vmatprep.subr.mxu0 0.0
    %511 = vmatpush1.xpose.msra.mxu0 0.0
    %512 = vmatprep.subr.mxu0 0.0
    %513 = vmatpush1.xpose.msra.mxu0 0.0
    %514 = vmatprep.subr.mxu0 0.0
    %515 = vmatpush1.xpose.msra.mxu0 0.0
    %516 = vmatprep.subr.mxu0 0.0
    %517 = vmatpush1.xpose.msra.mxu0 0.0
    %518 = vmatprep.subr.mxu0 0.0
    %519 = vmatpush1.xpose.msra.mxu0 0.0
    %520 = vmatprep.subr.mxu0 0.0
    %521 = vmatpush1.xpose.msra.mxu0 0.0
    %522 = vmatprep.subr.mxu0 0.0
    %523 = vmatpush1.xpose.msra.mxu0 0.0
    %524 = vmatprep.subr.mxu0 0.0
    %525 = vmatpush1.xpose.msra.mxu0 0.0
    %526 = vmatprep.subr.mxu0 0.0
    %527 = vmatpush1.xpose.msra.mxu0 0.0
    %528 = vmatprep.subr.mxu0 0.0
    %529 = vmatpush1.xpose.msra.mxu0 0.0
    %530 = vmatprep.subr.mxu0 0.0
    %531 = vmatpush1.xpose.msra.mxu0 0.0
    %532 = vmatprep.subr.mxu0 0.0
    %533 = vmatpush1.xpose.msra.mxu0 0.0
    %534 = vmatprep.subr.mxu0 0.0
    %535 = vmatpush1.xpose.msra.mxu0 0.0
    %536 = vmatprep.subr.mxu0 0.0
    %537 = vmatpush1.xpose.msra.mxu0 0.0
    %538 = vmatprep.subr.mxu0 0.0
    %539 = vmatpush1.xpose.msra.mxu0 0.0
    %540 = vmatprep.subr.mxu0 0.0
    %541 = vmatpush1.xpose.msra.mxu0 0.0
    %542 = vmatprep.subr.mxu0 0.0
    %543 = vmatpush1.xpose.msra.mxu0 0.0
    %544 = vmatprep.subr.mxu0 0.0
    %545 = vmatpush1.xpose.msra.mxu0 0.0
    %546 = vmatprep.subr.mxu0 0.0
    %547 = vmatpush1.xpose.msra.mxu0 0.0
    %548 = vmatprep.subr.mxu0 0.0
    %549 = vmatpush1.xpose.msra.mxu0 0.0
    %550 = vmatprep.subr.mxu0 0.0
    %551 = vmatpush1.xpose.msra.mxu0 0.0
    %552 = vmatprep.subr.mxu0 0.0
    %553 = vmatpush1.xpose.msra.mxu0 0.0
    %554 = vmatprep.subr.mxu0 0.0
    %555 = vmatpush1.xpose.msra.mxu0 0.0
    %556 = vmatprep.subr.mxu0 0.0
    %557 = vmatpush1.xpose.msra.mxu0 0.0
    %558 = vmatprep.subr.mxu0 0.0
    %559 = vmatpush1.xpose.msra.mxu0 0.0
    %560 = vmatprep.subr.mxu0 0.0
    %561 = vmatpush1.xpose.msra.mxu0 0.0
    %562 = vmatprep.subr.mxu0 0.0
    %563 = vmatpush1.xpose.msra.mxu0 0.0
    %564 = vmatprep.subr.mxu0 0.0
    %565 = vmatpush1.xpose.msra.mxu0 0.0
    %566 = vmatprep.mubr.f32.mxu0 0.0
    %567 = vmatmul.mubr.f32.gmra.mrb[0].mxu0 %v497
    %v568 = vpop.f32.mrb[0].mxu0
    %v569 = vadd.f32 0.0, %v568
    %v570 = vpop.f32.mrb[0].mxu0
    %571 = vdwg.mxu0
    %v573 = vsel %vm57, %v323, 0
    %v576 = vsel %vm57, %v408, 0
    %578 = vmatprep.subr.mxu0 0.0
    %579 = vmatpush1.xpose.msra.mxu0 %v576
    %580 = vmatprep.subr.mxu0 0.0
    %581 = vmatpush1.xpose.msra.mxu0 0.0
    %582 = vmatprep.subr.mxu0 0.0
    %583 = vmatpush1.xpose.msra.mxu0 0.0
    %584 = vmatprep.subr.mxu0 0.0
    %585 = vmatpush1.xpose.msra.mxu0 0.0
    %586 = vmatprep.subr.mxu0 0.0
    %587 = vmatpush1.xpose.msra.mxu0 0.0
    %588 = vmatprep.subr.mxu0 0.0
    %589 = vmatpush1.xpose.msra.mxu0 0.0
    %590 = vmatprep.subr.mxu0 0.0
    %591 = vmatpush1.xpose.msra.mxu0 0.0
    %592 = vmatprep.subr.mxu0 0.0
    %593 = vmatpush1.xpose.msra.mxu0 0.0
    %594 = vmatprep.subr.mxu0 0.0
    %595 = vmatpush1.xpose.msra.mxu0 0.0
    %596 = vmatprep.subr.mxu0 0.0
    %597 = vmatpush1.xpose.msra.mxu0 0.0
    %598 = vmatprep.subr.mxu0 0.0
    %599 = vmatpush1.xpose.msra.mxu0 0.0
    %600 = vmatprep.subr.mxu0 0.0
    %601 = vmatpush1.xpose.msra.mxu0 0.0
    %602 = vmatprep.subr.mxu0 0.0
    %603 = vmatpush1.xpose.msra.mxu0 0.0
    %604 = vmatprep.subr.mxu0 0.0
    %605 = vmatpush1.xpose.msra.mxu0 0.0
    %606 = vmatprep.subr.mxu0 0.0
    %607 = vmatpush1.xpose.msra.mxu0 0.0
    %608 = vmatprep.subr.mxu0 0.0
    %609 = vmatpush1.xpose.msra.mxu0 0.0
    %610 = vmatprep.subr.mxu0 0.0
    %611 = vmatpush1.xpose.msra.mxu0 0.0
    %612 = vmatprep.subr.mxu0 0.0
    %613 = vmatpush1.xpose.msra.mxu0 0.0
    %614 = vmatprep.subr.mxu0 0.0
    %615 = vmatpush1.xpose.msra.mxu0 0.0
    %616 = vmatprep.subr.mxu0 0.0
    %617 = vmatpush1.xpose.msra.mxu0 0.0
    %618 = vmatprep.subr.mxu0 0.0
    %619 = vmatpush1.xpose.msra.mxu0 0.0
    %620 = vmatprep.subr.mxu0 0.0
    %621 = vmatpush1.xpose.msra.mxu0 0.0
    %622 = vmatprep.subr.mxu0 0.0
    %623 = vmatpush1.xpose.msra.mxu0 0.0
    %624 = vmatprep.subr.mxu0 0.0
    %625 = vmatpush1.xpose.msra.mxu0 0.0
    %626 = vmatprep.subr.mxu0 0.0
    %627 = vmatpush1.xpose.msra.mxu0 0.0
    %628 = vmatprep.subr.mxu0 0.0
    %629 = vmatpush1.xpose.msra.mxu0 0.0
    %630 = vmatprep.subr.mxu0 0.0
    %631 = vmatpush1.xpose.msra.mxu0 0.0
    %632 = vmatprep.subr.mxu0 0.0
    %633 = vmatpush1.xpose.msra.mxu0 0.0
    %634 = vmatprep.subr.mxu0 0.0
    %635 = vmatpush1.xpose.msra.mxu0 0.0
    %636 = vmatprep.subr.mxu0 0.0
    %637 = vmatpush1.xpose.msra.mxu0 0.0
    %638 = vmatprep.subr.mxu0 0.0
    %639 = vmatpush1.xpose.msra.mxu0 0.0
    %640 = vmatprep.subr.mxu0 0.0
    %641 = vmatpush1.xpose.msra.mxu0 0.0
    %642 = vmatprep.mubr.f32.mxu0 0.0
    %643 = vmatmul.mubr.f32.gmra.mrb[0].mxu0 %v573
    %v644 = vpop.f32.mrb[0].mxu0
    %v645 = vadd.f32 0.0, %v644
    %v646 = vpop.f32.mrb[0].mxu0
    %647 = vdwg.mxu0
    %vm648 = vcmask 64512
    %v649 = vsel %vm648, %v569, -inf
    %650 = vmax.xlane.f32.xlu0 %v649
    %v651 = vpop.xlane.xlu0 %650
    %v652 = vsel %vm648, %v645, -inf
    %653 = vmax.xlane.f32.xlu0 %v652
    %v654 = vpop.xlane.xlu0 %653
    %v655 = vsub.f32 %v569, %v651
    %v656 = vsub.f32 %v645, %v654
    %v657 = vmul.f32 %v655, 1.442695
    %v658 = vpow.pop %v657
    %v659 = vmul.f32 %v656, 1.442695
    %v660 = vpow.pop %v659
    %v661 = vsel %vm648, %v658, 0.0
    %662 = vadd.xlane.f32.xlu0 %v661
    %v663 = vpop.xlane.xlu0 %662
    %v664 = vsel %vm648, %v660, 0.0
    %665 = vadd.xlane.f32.xlu0 %v664
    %v666 = vpop.xlane.xlu0 %665
    %v668 = vsel %vm648, %v658, 0
    %670 = vmatprep.subr.mxu0 0.0
    %671 = vmatpush1.msra.mxu0 %v488
    %672 = vmatprep.subr.mxu0 0.0
    %673 = vmatpush1.msra.mxu0 0.0
    %674 = vmatprep.subr.mxu0 0.0
    %675 = vmatpush1.msra.mxu0 0.0
    %676 = vmatprep.subr.mxu0 0.0
    %677 = vmatpush1.msra.mxu0 0.0
    %678 = vmatprep.subr.mxu0 0.0
    %679 = vmatpush1.msra.mxu0 0.0
    %680 = vmatprep.subr.mxu0 0.0
    %681 = vmatpush1.msra.mxu0 0.0
    %682 = vmatprep.subr.mxu0 0.0
    %683 = vmatpush1.msra.mxu0 0.0
    %684 = vmatprep.subr.mxu0 0.0
    %685 = vmatpush1.msra.mxu0 0.0
    %686 = vmatprep.subr.mxu0 0.0
    %687 = vmatpush1.msra.mxu0 0.0
    %688 = vmatprep.subr.mxu0 0.0
    %689 = vmatpush1.msra.mxu0 0.0
    %690 = vmatprep.subr.mxu0 0.0
    %691 = vmatpush1.msra.mxu0 0.0
    %692 = vmatprep.subr.mxu0 0.0
    %693 = vmatpush1.msra.mxu0 0.0
    %694 = vmatprep.subr.mxu0 0.0
    %695 = vmatpush1.msra.mxu0 0.0
    %696 = vmatprep.subr.mxu0 0.0
    %697 = vmatpush1.msra.mxu0 0.0
    %698 = vmatprep.subr.mxu0 0.0
    %699 = vmatpush1.msra.mxu0 0.0
    %700 = vmatprep.subr.mxu0 0.0
    %701 = vmatpush1.msra.mxu0 0.0
    %702 = vmatprep.subr.mxu0 0.0
    %703 = vmatpush1.msra.mxu0 0.0
    %704 = vmatprep.subr.mxu0 0.0
    %705 = vmatpush1.msra.mxu0 0.0
    %706 = vmatprep.subr.mxu0 0.0
    %707 = vmatpush1.msra.mxu0 0.0
    %708 = vmatprep.subr.mxu0 0.0
    %709 = vmatpush1.msra.mxu0 0.0
    %710 = vmatprep.subr.mxu0 0.0
    %711 = vmatpush1.msra.mxu0 0.0
    %712 = vmatprep.subr.mxu0 0.0
    %713 = vmatpush1.msra.mxu0 0.0
    %714 = vmatprep.subr.mxu0 0.0
    %715 = vmatpush1.msra.mxu0 0.0
    %716 = vmatprep.subr.mxu0 0.0
    %717 = vmatpush1.msra.mxu0 0.0
    %718 = vmatprep.subr.mxu0 0.0
    %719 = vmatpush1.msra.mxu0 0.0
    %720 = vmatprep.subr.mxu0 0.0
    %721 = vmatpush1.msra.mxu0 0.0
    %722 = vmatprep.subr.mxu0 0.0
    %723 = vmatpush1.msra.mxu0 0.0
    %724 = vmatprep.subr.mxu0 0.0
    %725 = vmatpush1.msra.mxu0 0.0
    %726 = vmatprep.subr.mxu0 0.0
    %727 = vmatpush1.msra.mxu0 0.0
    %728 = vmatprep.subr.mxu0 0.0
    %729 = vmatpush1.msra.mxu0 0.0
    %730 = vmatprep.subr.mxu0 0.0
    %731 = vmatpush1.msra.mxu0 0.0
    %732 = vmatprep.subr.mxu0 0.0
    %733 = vmatpush1.msra.mxu0 0.0
    %734 = vmatprep.mubr.f32.mxu0 0.0
    %735 = vmatmul.mubr.f32.gmra.mrb[0].mxu0 %v668
    %v736 = vpop.f32.mrb[0].mxu0
    %v737 = vadd.f32 0.0, %v736
    %v738 = vpop.f32.mrb[0].mxu0
    %739 = vdwg.mxu0
    %v741 = vsel %vm648, %v660, 0
    %743 = vmatprep.subr.mxu0 0.0
    %744 = vmatpush1.msra.mxu0 %v493
    %745 = vmatprep.subr.mxu0 0.0
    %746 = vmatpush1.msra.mxu0 0.0
    %747 = vmatprep.subr.mxu0 0.0
    %748 = vmatpush1.msra.mxu0 0.0
    %749 = vmatprep.subr.mxu0 0.0
    %750 = vmatpush1.msra.mxu0 0.0
    %751 = vmatprep.subr.mxu0 0.0
    %752 = vmatpush1.msra.mxu0 0.0
    %753 = vmatprep.subr.mxu0 0.0
    %754 = vmatpush1.msra.mxu0 0.0
    %755 = vmatprep.subr.mxu0 0.0
    %756 = vmatpush1.msra.mxu0 0.0
    %757 = vmatprep.subr.mxu0 0.0
    %758 = vmatpush1.msra.mxu0 0.0
    %759 = vmatprep.subr.mxu0 0.0
    %760 = vmatpush1.msra.mxu0 0.0
    %761 = vmatprep.subr.mxu0 0.0
    %762 = vmatpush1.msra.mxu0 0.0
    %763 = vmatprep.subr.mxu0 0.0
    %764 = vmatpush1.msra.mxu0 0.0
    %765 = vmatprep.subr.mxu0 0.0
    %766 = vmatpush1.msra.mxu0 0.0
    %767 = vmatprep.subr.mxu0 0.0
    %768 = vmatpush1.msra.mxu0 0.0
    %769 = vmatprep.subr.mxu0 0.0
    %770 = vmatpush1.msra.mxu0 0.0
    %771 = vmatprep.subr.mxu0 0.0
    %772 = vmatpush1.msra.mxu0 0.0
    %773 = vmatprep.subr.mxu0 0.0
    %774 = vmatpush1.msra.mxu0 0.0
    %775 = vmatprep.subr.mxu0 0.0
    %776 = vmatpush1.msra.mxu0 0.0
    %777 = vmatprep.subr.mxu0 0.0
    %778 = vmatpush1.msra.mxu0 0.0
    %779 = vmatprep.subr.mxu0 0.0
    %780 = vmatpush1.msra.mxu0 0.0
    %781 = vmatprep.subr.mxu0 0.0
    %782 = vmatpush1.msra.mxu0 0.0
    %783 = vmatprep.subr.mxu0 0.0
    %784 = vmatpush1.msra.mxu0 0.0
    %785 = vmatprep.subr.mxu0 0.0
    %786 = vmatpush1.msra.mxu0 0.0
    %787 = vmatprep.subr.mxu0 0.0
    %788 = vmatpush1.msra.mxu0 0.0
    %789 = vmatprep.subr.mxu0 0.0
    %790 = vmatpush1.msra.mxu0 0.0
    %791 = vmatprep.subr.mxu0 0.0
    %792 = vmatpush1.msra.mxu0 0.0
    %793 = vmatprep.subr.mxu0 0.0
    %794 = vmatpush1.msra.mxu0 0.0
    %795 = vmatprep.subr.mxu0 0.0
    %796 = vmatpush1.msra.mxu0 0.0
    %797 = vmatprep.subr.mxu0 0.0
    %798 = vmatpush1.msra.mxu0 0.0
    %799 = vmatprep.subr.mxu0 0.0
    %800 = vmatpush1.msra.mxu0 0.0
    %801 = vmatprep.subr.mxu0 0.0
    %802 = vmatpush1.msra.mxu0 0.0
    %803 = vmatprep.subr.mxu0 0.0
    %804 = vmatpush1.msra.mxu0 0.0
    %805 = vmatprep.subr.mxu0 0.0
    %806 = vmatpush1.msra.mxu0 0.0
    %807 = vmatprep.mubr.f32.mxu0 0.0
    %808 = vmatmul.mubr.f32.gmra.mrb[0].mxu0 %v741
    %v809 = vpop.f32.mrb[0].mxu0
    %v810 = vadd.f32 0.0, %v809
    %v811 = vpop.f32.mrb[0].mxu0
    %812 = vdwg.mxu0
    %v813 = vrcp.pop %v663
    %v814 = vmul.f32 %v737, %v813
    %v815 = vrcp.pop %v666
    %v816 = vmul.f32 %v810, %v815
    %v817 = vld [vmem:[%s7] sm:$0xff]
    %v818 = vld [vmem:[%s7 + $0x8] sm:$0xff]
    %s819 = scalar_lea.vmem %s5, 32
    %v820 = vld [vmem:[%s819] sm:$0xff]
    %v821 = vld [vmem:[%s819 + $0x8] sm:$0xff]
    %v822 = vld [vmem:[%s819 + $0x10] sm:$0xff]
    %v823 = vld [vmem:[%s819 + $0x18] sm:$0xff]
    %v824 = vld [vmem:[%s6 + $0x1] sm:$0x1]
    %v825 = vlaneseq
    %v826 = vshrl.u32 %v825, 7
    %v827 = vsub.s32 0, %v826
    %v828 = vrot.slane %v824, %v827
    %829 = vmatprep.subr.mxu0 0.0
    %830 = vmatpush1.msra.mxu0 %v820
    %831 = vmatprep.subr.mxu0 0.0
    %832 = vmatpush1.msra.mxu0 %v821
    %833 = vmatprep.subr.mxu0 0.0
    %834 = vmatpush1.msra.mxu0 %v822
    %835 = vmatprep.subr.mxu0 0.0
    %836 = vmatpush1.msra.mxu0 %v823
    %837 = vmatprep.subr.mxu0 0.0
    %838 = vmatpush1.msra.mxu0 0.0
    %839 = vmatprep.subr.mxu0 0.0
    %840 = vmatpush1.msra.mxu0 0.0
    %841 = vmatprep.subr.mxu0 0.0
    %842 = vmatpush1.msra.mxu0 0.0
    %843 = vmatprep.subr.mxu0 0.0
    %844 = vmatpush1.msra.mxu0 0.0
    %845 = vmatprep.subr.mxu0 0.0
    %846 = vmatpush1.msra.mxu0 0.0
    %847 = vmatprep.subr.mxu0 0.0
    %848 = vmatpush1.msra.mxu0 0.0
    %849 = vmatprep.subr.mxu0 0.0
    %850 = vmatpush1.msra.mxu0 0.0
    %851 = vmatprep.subr.mxu0 0.0
    %852 = vmatpush1.msra.mxu0 0.0
    %853 = vmatprep.subr.mxu0 0.0
    %854 = vmatpush1.msra.mxu0 0.0
    %855 = vmatprep.subr.mxu0 0.0
    %856 = vmatpush1.msra.mxu0 0.0
    %857 = vmatprep.subr.mxu0 0.0
    %858 = vmatpush1.msra.mxu0 0.0
    %859 = vmatprep.subr.mxu0 0.0
    %860 = vmatpush1.msra.mxu0 0.0
    %861 = vmatprep.subr.mxu0 0.0
    %862 = vmatpush1.msra.mxu0 0.0
    %863 = vmatprep.subr.mxu0 0.0
    %864 = vmatpush1.msra.mxu0 0.0
    %865 = vmatprep.subr.mxu0 0.0
    %866 = vmatpush1.msra.mxu0 0.0
    %867 = vmatprep.subr.mxu0 0.0
    %868 = vmatpush1.msra.mxu0 0.0
    %869 = vmatprep.subr.mxu0 0.0
    %870 = vmatpush1.msra.mxu0 0.0
    %871 = vmatprep.subr.mxu0 0.0
    %872 = vmatpush1.msra.mxu0 0.0
    %873 = vmatprep.subr.mxu0 0.0
    %874 = vmatpush1.msra.mxu0 0.0
    %875 = vmatprep.subr.mxu0 0.0
    %876 = vmatpush1.msra.mxu0 0.0
    %877 = vmatprep.subr.mxu0 0.0
    %878 = vmatpush1.msra.mxu0 0.0
    %879 = vmatprep.subr.mxu0 0.0
    %880 = vmatpush1.msra.mxu0 0.0
    %881 = vmatprep.subr.mxu0 0.0
    %882 = vmatpush1.msra.mxu0 0.0
    %883 = vmatprep.subr.mxu0 0.0
    %884 = vmatpush1.msra.mxu0 0.0
    %885 = vmatprep.subr.mxu0 0.0
    %886 = vmatpush1.msra.mxu0 0.0
    %887 = vmatprep.subr.mxu0 0.0
    %888 = vmatpush1.msra.mxu0 0.0
    %889 = vmatprep.subr.mxu0 0.0
    %890 = vmatpush1.msra.mxu0 0.0
    %891 = vmatprep.subr.mxu0 0.0
    %892 = vmatpush1.msra.mxu0 0.0
    %893 = vmatprep.mubr.f32.mxu0 0.0
    %894 = vmatmul.mubr.f32.gmra.mrb[0].mxu0 %v246
    %v895 = vpop.f32.mrb[0].mxu0
    %v896 = vadd.f32 %v828, %v895
    %v897 = vpop.f32.mrb[0].mxu0
    %898 = vmatprep.mubr.f32.mxu0 0.0
    %899 = vmatmul.mubr.f32.gmra.mrb[0].mxu0 %v249
    %v900 = vpop.f32.mrb[0].mxu0
    %v901 = vadd.f32 %v828, %v900
    %v902 = vpop.f32.mrb[0].mxu0
    %903 = vdwg.mxu0
    %s904 = scalar_lea.vmem %s5, 96
    %v905 = vld [vmem:[%s904] sm:$0xff]
    %v906 = vld [vmem:[%s904 + $0x8] sm:$0xff]
    %v907 = vld [vmem:[%s904 + $0x10] sm:$0xff]
    %v908 = vld [vmem:[%s904 + $0x18] sm:$0xff]
    %v909 = vld [vmem:[%s6 + $0x3] sm:$0x1]
    %v910 = vlaneseq
    %v911 = vshrl.u32 %v910, 7
    %v912 = vsub.s32 0, %v911
    %v913 = vrot.slane %v909, %v912
    %914 = vmatprep.subr.mxu0 0.0
    %915 = vmatpush1.msra.mxu0 %v905
    %916 = vmatprep.subr.mxu0 0.0
    %917 = vmatpush1.msra.mxu0 %v906
    %918 = vmatprep.subr.mxu0 0.0
    %919 = vmatpush1.msra.mxu0 %v907
    %920 = vmatprep.subr.mxu0 0.0
    %921 = vmatpush1.msra.mxu0 %v908
    %922 = vmatprep.subr.mxu0 0.0
    %923 = vmatpush1.msra.mxu0 0.0
    %924 = vmatprep.subr.mxu0 0.0
    %925 = vmatpush1.msra.mxu0 0.0
    %926 = vmatprep.subr.mxu0 0.0
    %927 = vmatpush1.msra.mxu0 0.0
    %928 = vmatprep.subr.mxu0 0.0
    %929 = vmatpush1.msra.mxu0 0.0
    %930 = vmatprep.subr.mxu0 0.0
    %931 = vmatpush1.msra.mxu0 0.0
    %932 = vmatprep.subr.mxu0 0.0
    %933 = vmatpush1.msra.mxu0 0.0
    %934 = vmatprep.subr.mxu0 0.0
    %935 = vmatpush1.msra.mxu0 0.0
    %936 = vmatprep.subr.mxu0 0.0
    %937 = vmatpush1.msra.mxu0 0.0
    %938 = vmatprep.subr.mxu0 0.0
    %939 = vmatpush1.msra.mxu0 0.0
    %940 = vmatprep.subr.mxu0 0.0
    %941 = vmatpush1.msra.mxu0 0.0
    %942 = vmatprep.subr.mxu0 0.0
    %943 = vmatpush1.msra.mxu0 0.0
    %944 = vmatprep.subr.mxu0 0.0
    %945 = vmatpush1.msra.mxu0 0.0
    %946 = vmatprep.subr.mxu0 0.0
    %947 = vmatpush1.msra.mxu0 0.0
    %948 = vmatprep.subr.mxu0 0.0
    %949 = vmatpush1.msra.mxu0 0.0
    %950 = vmatprep.subr.mxu0 0.0
    %951 = vmatpush1.msra.mxu0 0.0
    %952 = vmatprep.subr.mxu0 0.0
    %953 = vmatpush1.msra.mxu0 0.0
    %954 = vmatprep.subr.mxu0 0.0
    %955 = vmatpush1.msra.mxu0 0.0
    %956 = vmatprep.subr.mxu0 0.0
    %957 = vmatpush1.msra.mxu0 0.0
    %958 = vmatprep.subr.mxu0 0.0
    %959 = vmatpush1.msra.mxu0 0.0
    %960 = vmatprep.subr.mxu0 0.0
    %961 = vmatpush1.msra.mxu0 0.0
    %962 = vmatprep.subr.mxu0 0.0
    %963 = vmatpush1.msra.mxu0 0.0
    %964 = vmatprep.subr.mxu0 0.0
    %965 = vmatpush1.msra.mxu0 0.0
    %966 = vmatprep.subr.mxu0 0.0
    %967 = vmatpush1.msra.mxu0 0.0
    %968 = vmatprep.subr.mxu0 0.0
    %969 = vmatpush1.msra.mxu0 0.0
    %970 = vmatprep.subr.mxu0 0.0
    %971 = vmatpush1.msra.mxu0 0.0
    %972 = vmatprep.subr.mxu0 0.0
    %973 = vmatpush1.msra.mxu0 0.0
    %974 = vmatprep.subr.mxu0 0.0
    %975 = vmatpush1.msra.mxu0 0.0
    %976 = vmatprep.subr.mxu0 0.0
    %977 = vmatpush1.msra.mxu0 0.0
    %978 = vmatprep.mubr.f32.mxu0 0.0
    %979 = vmatmul.mubr.f32.gmra.mrb[0].mxu0 %v246
    %v980 = vpop.f32.mrb[0].mxu0
    %v981 = vadd.f32 %v913, %v980
    %v982 = vpop.f32.mrb[0].mxu0
    %983 = vmatprep.mubr.f32.mxu0 0.0
    %984 = vmatmul.mubr.f32.gmra.mrb[0].mxu0 %v249
    %v985 = vpop.f32.mrb[0].mxu0
    %v986 = vadd.f32 %v913, %v985
    %v987 = vpop.f32.mrb[0].mxu0
    %988 = vdwg.mxu0
    %s989 = scalar_lea.vmem %s5, 160
    %v990 = vld [vmem:[%s989] sm:$0xff]
    %v991 = vld [vmem:[%s989 + $0x8] sm:$0xff]
    %v992 = vld [vmem:[%s989 + $0x10] sm:$0xff]
    %v993 = vld [vmem:[%s989 + $0x18] sm:$0xff]
    %v994 = vld [vmem:[%s6 + $0x5] sm:$0x1]
    %v995 = vlaneseq
    %v996 = vshrl.u32 %v995, 7
    %v997 = vsub.s32 0, %v996
    %v998 = vrot.slane %v994, %v997
    %999 = vmatprep.subr.mxu0 0.0
    %1000 = vmatpush1.msra.mxu0 %v990
    %1001 = vmatprep.subr.mxu0 0.0
    %1002 = vmatpush1.msra.mxu0 %v991
    %1003 = vmatprep.subr.mxu0 0.0
    %1004 = vmatpush1.msra.mxu0 %v992
    %1005 = vmatprep.subr.mxu0 0.0
    %1006 = vmatpush1.msra.mxu0 %v993
    %1007 = vmatprep.subr.mxu0 0.0
    %1008 = vmatpush1.msra.mxu0 0.0
    %1009 = vmatprep.subr.mxu0 0.0
    %1010 = vmatpush1.msra.mxu0 0.0
    %1011 = vmatprep.subr.mxu0 0.0
    %1012 = vmatpush1.msra.mxu0 0.0
    %1013 = vmatprep.subr.mxu0 0.0
    %1014 = vmatpush1.msra.mxu0 0.0
    %1015 = vmatprep.subr.mxu0 0.0
    %1016 = vmatpush1.msra.mxu0 0.0
    %1017 = vmatprep.subr.mxu0 0.0
    %1018 = vmatpush1.msra.mxu0 0.0
    %1019 = vmatprep.subr.mxu0 0.0
    %1020 = vmatpush1.msra.mxu0 0.0
    %1021 = vmatprep.subr.mxu0 0.0
    %1022 = vmatpush1.msra.mxu0 0.0
    %1023 = vmatprep.subr.mxu0 0.0
    %1024 = vmatpush1.msra.mxu0 0.0
    %1025 = vmatprep.subr.mxu0 0.0
    %1026 = vmatpush1.msra.mxu0 0.0
    %1027 = vmatprep.subr.mxu0 0.0
    %1028 = vmatpush1.msra.mxu0 0.0
    %1029 = vmatprep.subr.mxu0 0.0
    %1030 = vmatpush1.msra.mxu0 0.0
    %1031 = vmatprep.subr.mxu0 0.0
    %1032 = vmatpush1.msra.mxu0 0.0
    %1033 = vmatprep.subr.mxu0 0.0
    %1034 = vmatpush1.msra.mxu0 0.0
    %1035 = vmatprep.subr.mxu0 0.0
    %1036 = vmatpush1.msra.mxu0 0.0
    %1037 = vmatprep.subr.mxu0 0.0
    %1038 = vmatpush1.msra.mxu0 0.0
    %1039 = vmatprep.subr.mxu0 0.0
    %1040 = vmatpush1.msra.mxu0 0.0
    %1041 = vmatprep.subr.mxu0 0.0
    %1042 = vmatpush1.msra.mxu0 0.0
    %1043 = vmatprep.subr.mxu0 0.0
    %1044 = vmatpush1.msra.mxu0 0.0
    %1045 = vmatprep.subr.mxu0 0.0
    %1046 = vmatpush1.msra.mxu0 0.0
    %1047 = vmatprep.subr.mxu0 0.0
    %1048 = vmatpush1.msra.mxu0 0.0
    %1049 = vmatprep.subr.mxu0 0.0
    %1050 = vmatpush1.msra.mxu0 0.0
    %1051 = vmatprep.subr.mxu0 0.0
    %1052 = vmatpush1.msra.mxu0 0.0
    %1053 = vmatprep.subr.mxu0 0.0
    %1054 = vmatpush1.msra.mxu0 0.0
    %1055 = vmatprep.subr.mxu0 0.0
    %1056 = vmatpush1.msra.mxu0 0.0
    %1057 = vmatprep.subr.mxu0 0.0
    %1058 = vmatpush1.msra.mxu0 0.0
    %1059 = vmatprep.subr.mxu0 0.0
    %1060 = vmatpush1.msra.mxu0 0.0
    %1061 = vmatprep.subr.mxu0 0.0
    %1062 = vmatpush1.msra.mxu0 0.0
    %1063 = vmatprep.mubr.f32.mxu0 0.0
    %1064 = vmatmul.mubr.f32.gmra.mrb[0].mxu0 %v246
    %v1065 = vpop.f32.mrb[0].mxu0
    %v1066 = vadd.f32 %v998, %v1065
    %v1067 = vpop.f32.mrb[0].mxu0
    %1068 = vmatprep.mubr.f32.mxu0 0.0
    %1069 = vmatmul.mubr.f32.gmra.mrb[0].mxu0 %v249
    %v1070 = vpop.f32.mrb[0].mxu0
    %v1071 = vadd.f32 %v998, %v1070
    %v1072 = vpop.f32.mrb[0].mxu0
    %1073 = vdwg.mxu0
    %v1075 = vsel %vm57, %v896, 0
    %v1078 = vsel %vm57, %v981, 0
    %1080 = vmatprep.subr.mxu0 0.0
    %1081 = vmatpush1.xpose.msra.mxu0 %v1078
    %1082 = vmatprep.subr.mxu0 0.0
    %1083 = vmatpush1.xpose.msra.mxu0 0.0
    %1084 = vmatprep.subr.mxu0 0.0
    %1085 = vmatpush1.xpose.msra.mxu0 0.0
    %1086 = vmatprep.subr.mxu0 0.0
    %1087 = vmatpush1.xpose.msra.mxu0 0.0
    %1088 = vmatprep.subr.mxu0 0.0
    %1089 = vmatpush1.xpose.msra.mxu0 0.0
    %1090 = vmatprep.subr.mxu0 0.0
    %1091 = vmatpush1.xpose.msra.mxu0 0.0
    %1092 = vmatprep.subr.mxu0 0.0
    %1093 = vmatpush1.xpose.msra.mxu0 0.0
    %1094 = vmatprep.subr.mxu0 0.0
    %1095 = vmatpush1.xpose.msra.mxu0 0.0
    %1096 = vmatprep.subr.mxu0 0.0
    %1097 = vmatpush1.xpose.msra.mxu0 0.0
    %1098 = vmatprep.subr.mxu0 0.0
    %1099 = vmatpush1.xpose.msra.mxu0 0.0
    %1100 = vmatprep.subr.mxu0 0.0
    %1101 = vmatpush1.xpose.msra.mxu0 0.0
    %1102 = vmatprep.subr.mxu0 0.0
    %1103 = vmatpush1.xpose.msra.mxu0 0.0
    %1104 = vmatprep.subr.mxu0 0.0
    %1105 = vmatpush1.xpose.msra.mxu0 0.0
    %1106 = vmatprep.subr.mxu0 0.0
    %1107 = vmatpush1.xpose.msra.mxu0 0.0
    %1108 = vmatprep.subr.mxu0 0.0
    %1109 = vmatpush1.xpose.msra.mxu0 0.0
    %1110 = vmatprep.subr.mxu0 0.0
    %1111 = vmatpush1.xpose.msra.mxu0 0.0
    %1112 = vmatprep.subr.mxu0 0.0
    %1113 = vmatpush1.xpose.msra.mxu0 0.0
    %1114 = vmatprep.subr.mxu0 0.0
    %1115 = vmatpush1.xpose.msra.mxu0 0.0
    %1116 = vmatprep.subr.mxu0 0.0
    %1117 = vmatpush1.xpose.msra.mxu0 0.0
    %1118 = vmatprep.subr.mxu0 0.0
    %1119 = vmatpush1.xpose.msra.mxu0 0.0
    %1120 = vmatprep.subr.mxu0 0.0
    %1121 = vmatpush1.xpose.msra.mxu0 0.0
    %1122 = vmatprep.subr.mxu0 0.0
    %1123 = vmatpush1.xpose.msra.mxu0 0.0
    %1124 = vmatprep.subr.mxu0 0.0
    %1125 = vmatpush1.xpose.msra.mxu0 0.0
    %1126 = vmatprep.subr.mxu0 0.0
    %1127 = vmatpush1.xpose.msra.mxu0 0.0
    %1128 = vmatprep.subr.mxu0 0.0
    %1129 = vmatpush1.xpose.msra.mxu0 0.0
    %1130 = vmatprep.subr.mxu0 0.0
    %1131 = vmatpush1.xpose.msra.mxu0 0.0
    %1132 = vmatprep.subr.mxu0 0.0
    %1133 = vmatpush1.xpose.msra.mxu0 0.0
    %1134 = vmatprep.subr.mxu0 0.0
    %1135 = vmatpush1.xpose.msra.mxu0 0.0
    %1136 = vmatprep.subr.mxu0 0.0
    %1137 = vmatpush1.xpose.msra.mxu0 0.0
    %1138 = vmatprep.subr.mxu0 0.0
    %1139 = vmatpush1.xpose.msra.mxu0 0.0
    %1140 = vmatprep.subr.mxu0 0.0
    %1141 = vmatpush1.xpose.msra.mxu0 0.0
    %1142 = vmatprep.subr.mxu0 0.0
    %1143 = vmatpush1.xpose.msra.mxu0 0.0
    %1144 = vmatprep.mubr.f32.mxu0 0.0
    %1145 = vmatmul.mubr.f32.gmra.mrb[0].mxu0 %v1075
    %v1146 = vpop.f32.mrb[0].mxu0
    %v1147 = vadd.f32 0.0, %v1146
    %v1148 = vpop.f32.mrb[0].mxu0
    %1149 = vdwg.mxu0
    %v1151 = vsel %vm57, %v901, 0
    %v1154 = vsel %vm57, %v986, 0
    %1156 = vmatprep.subr.mxu0 0.0
    %1157 = vmatpush1.xpose.msra.mxu0 %v1154
    %1158 = vmatprep.subr.mxu0 0.0
    %1159 = vmatpush1.xpose.msra.mxu0 0.0
    %1160 = vmatprep.subr.mxu0 0.0
    %1161 = vmatpush1.xpose.msra.mxu0 0.0
    %1162 = vmatprep.subr.mxu0 0.0
    %1163 = vmatpush1.xpose.msra.mxu0 0.0
    %1164 = vmatprep.subr.mxu0 0.0
    %1165 = vmatpush1.xpose.msra.mxu0 0.0
    %1166 = vmatprep.subr.mxu0 0.0
    %1167 = vmatpush1.xpose.msra.mxu0 0.0
    %1168 = vmatprep.subr.mxu0 0.0
    %1169 = vmatpush1.xpose.msra.mxu0 0.0
    %1170 = vmatprep.subr.mxu0 0.0
    %1171 = vmatpush1.xpose.msra.mxu0 0.0
    %1172 = vmatprep.subr.mxu0 0.0
    %1173 = vmatpush1.xpose.msra.mxu0 0.0
    %1174 = vmatprep.subr.mxu0 0.0
    %1175 = vmatpush1.xpose.msra.mxu0 0.0
    %1176 = vmatprep.subr.mxu0 0.0
    %1177 = vmatpush1.xpose.msra.mxu0 0.0
    %1178 = vmatprep.subr.mxu0 0.0
    %1179 = vmatpush1.xpose.msra.mxu0 0.0
    %1180 = vmatprep.subr.mxu0 0.0
    %1181 = vmatpush1.xpose.msra.mxu0 0.0
    %1182 = vmatprep.subr.mxu0 0.0
    %1183 = vmatpush1.xpose.msra.mxu0 0.0
    %1184 = vmatprep.subr.mxu0 0.0
    %1185 = vmatpush1.xpose.msra.mxu0 0.0
    %1186 = vmatprep.subr.mxu0 0.0
    %1187 = vmatpush1.xpose.msra.mxu0 0.0
    %1188 = vmatprep.subr.mxu0 0.0
    %1189 = vmatpush1.xpose.msra.mxu0 0.0
    %1190 = vmatprep.subr.mxu0 0.0
    %1191 = vmatpush1.xpose.msra.mxu0 0.0
    %1192 = vmatprep.subr.mxu0 0.0
    %1193 = vmatpush1.xpose.msra.mxu0 0.0
    %1194 = vmatprep.subr.mxu0 0.0
    %1195 = vmatpush1.xpose.msra.mxu0 0.0
    %1196 = vmatprep.subr.mxu0 0.0
    %1197 = vmatpush1.xpose.msra.mxu0 0.0
    %1198 = vmatprep.subr.mxu0 0.0
    %1199 = vmatpush1.xpose.msra.mxu0 0.0
    %1200 = vmatprep.subr.mxu0 0.0
    %1201 = vmatpush1.xpose.msra.mxu0 0.0
    %1202 = vmatprep.subr.mxu0 0.0
    %1203 = vmatpush1.xpose.msra.mxu0 0.0
    %1204 = vmatprep.subr.mxu0 0.0
    %1205 = vmatpush1.xpose.msra.mxu0 0.0
    %1206 = vmatprep.subr.mxu0 0.0
    %1207 = vmatpush1.xpose.msra.mxu0 0.0
    %1208 = vmatprep.subr.mxu0 0.0
    %1209 = vmatpush1.xpose.msra.mxu0 0.0
    %1210 = vmatprep.subr.mxu0 0.0
    %1211 = vmatpush1.xpose.msra.mxu0 0.0
    %1212 = vmatprep.subr.mxu0 0.0
    %1213 = vmatpush1.xpose.msra.mxu0 0.0
    %1214 = vmatprep.subr.mxu0 0.0
    %1215 = vmatpush1.xpose.msra.mxu0 0.0
    %1216 = vmatprep.subr.mxu0 0.0
    %1217 = vmatpush1.xpose.msra.mxu0 0.0
    %1218 = vmatprep.subr.mxu0 0.0
    %1219 = vmatpush1.xpose.msra.mxu0 0.0
    %1220 = vmatprep.mubr.f32.mxu0 0.0
    %1221 = vmatmul.mubr.f32.gmra.mrb[0].mxu0 %v1151
    %v1222 = vpop.f32.mrb[0].mxu0
    %v1223 = vadd.f32 0.0, %v1222
    %v1224 = vpop.f32.mrb[0].mxu0
    %1225 = vdwg.mxu0
    %v1226 = vsel %vm648, %v1147, -inf
    %1227 = vmax.xlane.f32.xlu0 %v1226
    %v1228 = vpop.xlane.xlu0 %1227
    %v1229 = vsel %vm648, %v1223, -inf
    %1230 = vmax.xlane.f32.xlu0 %v1229
    %v1231 = vpop.xlane.xlu0 %1230
    %v1232 = vsub.f32 %v1147, %v1228
    %v1233 = vsub.f32 %v1223, %v1231
    %v1234 = vmul.f32 %v1232, 1.442695
    %v1235 = vpow.pop %v1234
    %v1236 = vmul.f32 %v1233, 1.442695
    %v1237 = vpow.pop %v1236
    %v1238 = vsel %vm648, %v1235, 0.0
    %1239 = vadd.xlane.f32.xlu0 %v1238
    %v1240 = vpop.xlane.xlu0 %1239
    %v1241 = vsel %vm648, %v1237, 0.0
    %1242 = vadd.xlane.f32.xlu0 %v1241
    %v1243 = vpop.xlane.xlu0 %1242
    %v1245 = vsel %vm648, %v1235, 0
    %1247 = vmatprep.subr.mxu0 0.0
    %1248 = vmatpush1.msra.mxu0 %v1066
    %1249 = vmatprep.subr.mxu0 0.0
    %1250 = vmatpush1.msra.mxu0 0.0
    %1251 = vmatprep.subr.mxu0 0.0
    %1252 = vmatpush1.msra.mxu0 0.0
    %1253 = vmatprep.subr.mxu0 0.0
    %1254 = vmatpush1.msra.mxu0 0.0
    %1255 = vmatprep.subr.mxu0 0.0
    %1256 = vmatpush1.msra.mxu0 0.0
    %1257 = vmatprep.subr.mxu0 0.0
    %1258 = vmatpush1.msra.mxu0 0.0
    %1259 = vmatprep.subr.mxu0 0.0
    %1260 = vmatpush1.msra.mxu0 0.0
    %1261 = vmatprep.subr.mxu0 0.0
    %1262 = vmatpush1.msra.mxu0 0.0
    %1263 = vmatprep.subr.mxu0 0.0
    %1264 = vmatpush1.msra.mxu0 0.0
    %1265 = vmatprep.subr.mxu0 0.0
    %1266 = vmatpush1.msra.mxu0 0.0
    %1267 = vmatprep.subr.mxu0 0.0
    %1268 = vmatpush1.msra.mxu0 0.0
    %1269 = vmatprep.subr.mxu0 0.0
    %1270 = vmatpush1.msra.mxu0 0.0
    %1271 = vmatprep.subr.mxu0 0.0
    %1272 = vmatpush1.msra.mxu0 0.0
    %1273 = vmatprep.subr.mxu0 0.0
    %1274 = vmatpush1.msra.mxu0 0.0
    %1275 = vmatprep.subr.mxu0 0.0
    %1276 = vmatpush1.msra.mxu0 0.0
    %1277 = vmatprep.subr.mxu0 0.0
    %1278 = vmatpush1.msra.mxu0 0.0
    %1279 = vmatprep.subr.mxu0 0.0
    %1280 = vmatpush1.msra.mxu0 0.0
    %1281 = vmatprep.subr.mxu0 0.0
    %1282 = vmatpush1.msra.mxu0 0.0
    %1283 = vmatprep.subr.mxu0 0.0
    %1284 = vmatpush1.msra.mxu0 0.0
    %1285 = vmatprep.subr.mxu0 0.0
    %1286 = vmatpush1.msra.mxu0 0.0
    %1287 = vmatprep.subr.mxu0 0.0
    %1288 = vmatpush1.msra.mxu0 0.0
    %1289 = vmatprep.subr.mxu0 0.0
    %1290 = vmatpush1.msra.mxu0 0.0
    %1291 = vmatprep.subr.mxu0 0.0
    %1292 = vmatpush1.msra.mxu0 0.0
    %1293 = vmatprep.subr.mxu0 0.0
    %1294 = vmatpush1.msra.mxu0 0.0
    %1295 = vmatprep.subr.mxu0 0.0
    %1296 = vmatpush1.msra.mxu0 0.0
    %1297 = vmatprep.subr.mxu0 0.0
    %1298 = vmatpush1.msra.mxu0 0.0
    %1299 = vmatprep.subr.mxu0 0.0
    %1300 = vmatpush1.msra.mxu0 0.0
    %1301 = vmatprep.subr.mxu0 0.0
    %1302 = vmatpush1.msra.mxu0 0.0
    %1303 = vmatprep.subr.mxu0 0.0
    %1304 = vmatpush1.msra.mxu0 0.0
    %1305 = vmatprep.subr.mxu0 0.0
    %1306 = vmatpush1.msra.mxu0 0.0
    %1307 = vmatprep.subr.mxu0 0.0
    %1308 = vmatpush1.msra.mxu0 0.0
    %1309 = vmatprep.subr.mxu0 0.0
    %1310 = vmatpush1.msra.mxu0 0.0
    %1311 = vmatprep.mubr.f32.mxu0 0.0
    %1312 = vmatmul.mubr.f32.gmra.mrb[0].mxu0 %v1245
    %v1313 = vpop.f32.mrb[0].mxu0
    %v1314 = vadd.f32 0.0, %v1313
    %v1315 = vpop.f32.mrb[0].mxu0
    %1316 = vdwg.mxu0
    %v1318 = vsel %vm648, %v1237, 0
    %1320 = vmatprep.subr.mxu0 0.0
    %1321 = vmatpush1.msra.mxu0 %v1071
    %1322 = vmatprep.subr.mxu0 0.0
    %1323 = vmatpush1.msra.mxu0 0.0
    %1324 = vmatprep.subr.mxu0 0.0
    %1325 = vmatpush1.msra.mxu0 0.0
    %1326 = vmatprep.subr.mxu0 0.0
    %1327 = vmatpush1.msra.mxu0 0.0
    %1328 = vmatprep.subr.mxu0 0.0
    %1329 = vmatpush1.msra.mxu0 0.0
    %1330 = vmatprep.subr.mxu0 0.0
    %1331 = vmatpush1.msra.mxu0 0.0
    %1332 = vmatprep.subr.mxu0 0.0
    %1333 = vmatpush1.msra.mxu0 0.0
    %1334 = vmatprep.subr.mxu0 0.0
    %1335 = vmatpush1.msra.mxu0 0.0
    %1336 = vmatprep.subr.mxu0 0.0
    %1337 = vmatpush1.msra.mxu0 0.0
    %1338 = vmatprep.subr.mxu0 0.0
    %1339 = vmatpush1.msra.mxu0 0.0
    %1340 = vmatprep.subr.mxu0 0.0
    %1341 = vmatpush1.msra.mxu0 0.0
    %1342 = vmatprep.subr.mxu0 0.0
    %1343 = vmatpush1.msra.mxu0 0.0
    %1344 = vmatprep.subr.mxu0 0.0
    %1345 = vmatpush1.msra.mxu0 0.0
    %1346 = vmatprep.subr.mxu0 0.0
    %1347 = vmatpush1.msra.mxu0 0.0
    %1348 = vmatprep.subr.mxu0 0.0
    %1349 = vmatpush1.msra.mxu0 0.0
    %1350 = vmatprep.subr.mxu0 0.0
    %1351 = vmatpush1.msra.mxu0 0.0
    %1352 = vmatprep.subr.mxu0 0.0
    %1353 = vmatpush1.msra.mxu0 0.0
    %1354 = vmatprep.subr.mxu0 0.0
    %1355 = vmatpush1.msra.mxu0 0.0
    %1356 = vmatprep.subr.mxu0 0.0
    %1357 = vmatpush1.msra.mxu0 0.0
    %1358 = vmatprep.subr.mxu0 0.0
    %1359 = vmatpush1.msra.mxu0 0.0
    %1360 = vmatprep.subr.mxu0 0.0
    %1361 = vmatpush1.msra.mxu0 0.0
    %1362 = vmatprep.subr.mxu0 0.0
    %1363 = vmatpush1.msra.mxu0 0.0
    %1364 = vmatprep.subr.mxu0 0.0
    %1365 = vmatpush1.msra.mxu0 0.0
    %1366 = vmatprep.subr.mxu0 0.0
    %1367 = vmatpush1.msra.mxu0 0.0
    %1368 = vmatprep.subr.mxu0 0.0
    %1369 = vmatpush1.msra.mxu0 0.0
    %1370 = vmatprep.subr.mxu0 0.0
    %1371 = vmatpush1.msra.mxu0 0.0
    %1372 = vmatprep.subr.mxu0 0.0
    %1373 = vmatpush1.msra.mxu0 0.0
    %1374 = vmatprep.subr.mxu0 0.0
    %1375 = vmatpush1.msra.mxu0 0.0
    %1376 = vmatprep.subr.mxu0 0.0
    %1377 = vmatpush1.msra.mxu0 0.0
    %1378 = vmatprep.subr.mxu0 0.0
    %1379 = vmatpush1.msra.mxu0 0.0
    %1380 = vmatprep.subr.mxu0 0.0
    %1381 = vmatpush1.msra.mxu0 0.0
    %1382 = vmatprep.subr.mxu0 0.0
    %1383 = vmatpush1.msra.mxu0 0.0
    %1384 = vmatprep.mubr.f32.mxu0 0.0
    %1385 = vmatmul.mubr.f32.gmra.mrb[0].mxu0 %v1318
    %v1386 = vpop.f32.mrb[0].mxu0
    %v1387 = vadd.f32 0.0, %v1386
    %v1388 = vpop.f32.mrb[0].mxu0
    %1389 = vdwg.mxu0
    %v1390 = vrcp.pop %v1240
    %v1391 = vmul.f32 %v1314, %v1390
    %v1392 = vrcp.pop %v1243
    %v1393 = vmul.f32 %v1387, %v1392
    %s1394 = scalar_lea.vmem %s7, 16
    %v1395 = vld [vmem:[%s1394] sm:$0xff]
    %v1396 = vld [vmem:[%s1394 + $0x8] sm:$0xff]
    %v1398 = vsel %vm57, %v1391, 0
    %v1401 = vsel %vm57, %v1393, 0
    %1403 = vmatprep.subr.mxu0 0.0
    %1404 = vmatpush1.msra.mxu0 %v1395
    %1405 = vmatprep.subr.mxu0 0.0
    %1406 = vmatpush1.msra.mxu0 %v1396
    %1407 = vmatprep.subr.mxu0 0.0
    %1408 = vmatpush1.msra.mxu0 0.0
    %1409 = vmatprep.subr.mxu0 0.0
    %1410 = vmatpush1.msra.mxu0 0.0
    %1411 = vmatprep.subr.mxu0 0.0
    %1412 = vmatpush1.msra.mxu0 0.0
    %1413 = vmatprep.subr.mxu0 0.0
    %1414 = vmatpush1.msra.mxu0 0.0
    %1415 = vmatprep.subr.mxu0 0.0
    %1416 = vmatpush1.msra.mxu0 0.0
    %1417 = vmatprep.subr.mxu0 0.0
    %1418 = vmatpush1.msra.mxu0 0.0
    %1419 = vmatprep.subr.mxu0 0.0
    %1420 = vmatpush1.msra.mxu0 0.0
    %1421 = vmatprep.subr.mxu0 0.0
    %1422 = vmatpush1.msra.mxu0 0.0
    %1423 = vmatprep.subr.mxu0 0.0
    %1424 = vmatpush1.msra.mxu0 0.0
    %1425 = vmatprep.subr.mxu0 0.0
    %1426 = vmatpush1.msra.mxu0 0.0
    %1427 = vmatprep.subr.mxu0 0.0
    %1428 = vmatpush1.msra.mxu0 0.0
    %1429 = vmatprep.subr.mxu0 0.0
    %1430 = vmatpush1.msra.mxu0 0.0
    %1431 = vmatprep.subr.mxu0 0.0
    %1432 = vmatpush1.msra.mxu0 0.0
    %1433 = vmatprep.subr.mxu0 0.0
    %1434 = vmatpush1.msra.mxu0 0.0
    %1435 = vmatprep.subr.mxu0 0.0
    %1436 = vmatpush1.msra.mxu0 0.0
    %1437 = vmatprep.subr.mxu0 0.0
    %1438 = vmatpush1.msra.mxu0 0.0
    %1439 = vmatprep.subr.mxu0 0.0
    %1440 = vmatpush1.msra.mxu0 0.0
    %1441 = vmatprep.subr.mxu0 0.0
    %1442 = vmatpush1.msra.mxu0 0.0
    %1443 = vmatprep.subr.mxu0 0.0
    %1444 = vmatpush1.msra.mxu0 0.0
    %1445 = vmatprep.subr.mxu0 0.0
    %1446 = vmatpush1.msra.mxu0 0.0
    %1447 = vmatprep.subr.mxu0 0.0
    %1448 = vmatpush1.msra.mxu0 0.0
    %1449 = vmatprep.subr.mxu0 0.0
    %1450 = vmatpush1.msra.mxu0 0.0
    %1451 = vmatprep.subr.mxu0 0.0
    %1452 = vmatpush1.msra.mxu0 0.0
    %1453 = vmatprep.subr.mxu0 0.0
    %1454 = vmatpush1.msra.mxu0 0.0
    %1455 = vmatprep.subr.mxu0 0.0
    %1456 = vmatpush1.msra.mxu0 0.0
    %1457 = vmatprep.subr.mxu0 0.0
    %1458 = vmatpush1.msra.mxu0 0.0
    %1459 = vmatprep.subr.mxu0 0.0
    %1460 = vmatpush1.msra.mxu0 0.0
    %1461 = vmatprep.subr.mxu0 0.0
    %1462 = vmatpush1.msra.mxu0 0.0
    %1463 = vmatprep.subr.mxu0 0.0
    %1464 = vmatpush1.msra.mxu0 0.0
    %1465 = vmatprep.subr.mxu0 0.0
    %1466 = vmatpush1.msra.mxu0 0.0
    %1467 = vmatprep.mubr.f32.mxu0 0.0
    %1468 = vmatmul.mubr.f32.gmra.mrb[0].mxu0 %v1398
    %v1469 = vpop.f32.mrb[0].mxu0
    %v1470 = vadd.f32 0.0, %v1469
    %v1471 = vpop.f32.mrb[0].mxu0
    %1472 = vmatprep.mubr.f32.mxu0 0.0
    %1473 = vmatmul.mubr.f32.gmra.mrb[0].mxu0 %v1401
    %v1474 = vpop.f32.mrb[0].mxu0
    %v1475 = vadd.f32 0.0, %v1474
    %v1476 = vpop.f32.mrb[0].mxu0
    %1477 = vdwg.mxu0
    %v1479 = vsel %vm57, %v814, 0
    %v1482 = vsel %vm57, %v816, 0
    %1484 = vmatprep.subr.mxu0 0.0
    %1485 = vmatpush1.msra.mxu0 %v817
    %1486 = vmatprep.subr.mxu0 0.0
    %1487 = vmatpush1.msra.mxu0 %v818
    %1488 = vmatprep.subr.mxu0 0.0
    %1489 = vmatpush1.msra.mxu0 0.0
    %1490 = vmatprep.subr.mxu0 0.0
    %1491 = vmatpush1.msra.mxu0 0.0
    %1492 = vmatprep.subr.mxu0 0.0
    %1493 = vmatpush1.msra.mxu0 0.0
    %1494 = vmatprep.subr.mxu0 0.0
    %1495 = vmatpush1.msra.mxu0 0.0
    %1496 = vmatprep.subr.mxu0 0.0
    %1497 = vmatpush1.msra.mxu0 0.0
    %1498 = vmatprep.subr.mxu0 0.0
    %1499 = vmatpush1.msra.mxu0 0.0
    %1500 = vmatprep.subr.mxu0 0.0
    %1501 = vmatpush1.msra.mxu0 0.0
    %1502 = vmatprep.subr.mxu0 0.0
    %1503 = vmatpush1.msra.mxu0 0.0
    %1504 = vmatprep.subr.mxu0 0.0
    %1505 = vmatpush1.msra.mxu0 0.0
    %1506 = vmatprep.subr.mxu0 0.0
    %1507 = vmatpush1.msra.mxu0 0.0
    %1508 = vmatprep.subr.mxu0 0.0
    %1509 = vmatpush1.msra.mxu0 0.0
    %1510 = vmatprep.subr.mxu0 0.0
    %1511 = vmatpush1.msra.mxu0 0.0
    %1512 = vmatprep.subr.mxu0 0.0
    %1513 = vmatpush1.msra.mxu0 0.0
    %1514 = vmatprep.subr.mxu0 0.0
    %1515 = vmatpush1.msra.mxu0 0.0
    %1516 = vmatprep.subr.mxu0 0.0
    %1517 = vmatpush1.msra.mxu0 0.0
    %1518 = vmatprep.subr.mxu0 0.0
    %1519 = vmatpush1.msra.mxu0 0.0
    %1520 = vmatprep.subr.mxu0 0.0
    %1521 = vmatpush1.msra.mxu0 0.0
    %1522 = vmatprep.subr.mxu0 0.0
    %1523 = vmatpush1.msra.mxu0 0.0
    %1524 = vmatprep.subr.mxu0 0.0
    %1525 = vmatpush1.msra.mxu0 0.0
    %1526 = vmatprep.subr.mxu0 0.0
    %1527 = vmatpush1.msra.mxu0 0.0
    %1528 = vmatprep.subr.mxu0 0.0
    %1529 = vmatpush1.msra.mxu0 0.0
    %1530 = vmatprep.subr.mxu0 0.0
    %1531 = vmatpush1.msra.mxu0 0.0
    %1532 = vmatprep.subr.mxu0 0.0
    %1533 = vmatpush1.msra.mxu0 0.0
    %1534 = vmatprep.subr.mxu0 0.0
    %1535 = vmatpush1.msra.mxu0 0.0
    %1536 = vmatprep.subr.mxu0 0.0
    %1537 = vmatpush1.msra.mxu0 0.0
    %1538 = vmatprep.subr.mxu0 0.0
    %1539 = vmatpush1.msra.mxu0 0.0
    %1540 = vmatprep.subr.mxu0 0.0
    %1541 = vmatpush1.msra.mxu0 0.0
    %1542 = vmatprep.subr.mxu0 0.0
    %1543 = vmatpush1.msra.mxu0 0.0
    %1544 = vmatprep.subr.mxu0 0.0
    %1545 = vmatpush1.msra.mxu0 0.0
    %1546 = vmatprep.subr.mxu0 0.0
    %1547 = vmatpush1.msra.mxu0 0.0
    %1548 = vmatprep.mubr.f32.mxu0 0.0
    %1549 = vmatmul.mubr.f32.gmra.mrb[0].mxu0 %v1479
    %v1550 = vpop.f32.mrb[0].mxu0
    %v1551 = vadd.f32 %v1470, %v1550
    %v1552 = vpop.f32.mrb[0].mxu0
    %1553 = vmatprep.mubr.f32.mxu0 0.0
    %1554 = vmatmul.mubr.f32.gmra.mrb[0].mxu0 %v1482
    %v1555 = vpop.f32.mrb[0].mxu0
    %v1556 = vadd.f32 %v1475, %v1555
    %v1557 = vpop.f32.mrb[0].mxu0
    %1558 = vdwg.mxu0
    %v1559 = vld [vmem:[%s10] sm:$0x1]
    %v1560 = vlaneseq
    %v1561 = vshrl.u32 %v1560, 7
    %v1562 = vsub.s32 0, %v1561
    %v1563 = vrot.slane %v1559, %v1562
    %v1564 = vadd.f32 %v1551, %v1563
    %v1565 = vadd.f32 %v1556, %v1563
    %v1566 = vadd.f32 %v234, %v1564
    %v1567 = vadd.f32 %v235, %v1565
    %v1568 = vld [vmem:[%s10 + $0x1] sm:$0x1]
    %v1569 = vld [vmem:[%s10 + $0x2] sm:$0x1]
    %v1570 = vsel %vm150, %v1566, 0.0
    %1571 = vadd.xlane.f32.xlu0 %v1570
    %v1572 = vpop.xlane.xlu0 %1571
    %v1573 = vsel %vm150, %v1567, 0.0
    %1574 = vadd.xlane.f32.xlu0 %v1573
    %v1575 = vpop.xlane.xlu0 %1574
    %v1576 = vrcp.pop 32.0
    %v1577 = vmul.f32 %v1572, %v1576
    %v1578 = vmul.f32 %v1575, %v1576
    %v1579 = vsub.f32 %v1566, %v1577
    %v1580 = vsub.f32 %v1567, %v1578
    %v1581 = vmul.f32 %v1579, %v1579
    %v1582 = vmul.f32 %v1580, %v1580
    %v1583 = vsel %vm150, %v1581, 0.0
    %1584 = vadd.xlane.f32.xlu0 %v1583
    %v1585 = vpop.xlane.xlu0 %1584
    %v1586 = vsel %vm150, %v1582, 0.0
    %1587 = vadd.xlane.f32.xlu0 %v1586
    %v1588 = vpop.xlane.xlu0 %1587
    %v1589 = vmul.f32 %v1585, %v1576
    %v1590 = vmul.f32 %v1588, %v1576
    %v1591 = vadd.f32 %v1589, 1e-05
    %v1592 = vadd.f32 %v1590, 1e-05
    %v1593 = vrsqrt.pop %v1591
    %v1594 = vrsqrt.pop %v1592
    %v1595 = vmul.f32 %v1579, %v1593
    %v1596 = vmul.f32 %v1580, %v1594
    %v1597 = vlaneseq
    %v1598 = vshrl.u32 %v1597, 7
    %v1599 = vsub.s32 0, %v1598
    %v1600 = vrot.slane %v1568, %v1599
    %v1601 = vmul.f32 %v1595, %v1600
    %v1602 = vmul.f32 %v1596, %v1600
    %v1603 = vlaneseq
    %v1604 = vshrl.u32 %v1603, 7
    %v1605 = vsub.s32 0, %v1604
    %v1606 = vrot.slane %v1569, %v1605
    %v1607 = vadd.f32 %v1601, %v1606
    %v1608 = vadd.f32 %v1602, %v1606
    %v1609 = vld [vmem:[%s8] sm:$0xff]
    %v1610 = vld [vmem:[%s8 + $0x8] sm:$0xff]
    %v1611 = vld [vmem:[%s8 + $0x10] sm:$0xff]
    %v1612 = vld [vmem:[%s8 + $0x18] sm:$0xff]
    %v1613 = vld [vmem:[%s11] sm:$0x1]
    %v1614 = vlaneseq
    %v1615 = vshrl.u32 %v1614, 7
    %v1616 = vsub.s32 0, %v1615
    %v1617 = vrot.slane %v1613, %v1616
    %v1619 = vsel %vm150, %v1607, 0
    %v1622 = vsel %vm150, %v1608, 0
    %1624 = vmatprep.subr.mxu0 0.0
    %1625 = vmatpush1.msra.mxu0 %v1609
    %1626 = vmatprep.subr.mxu0 0.0
    %1627 = vmatpush1.msra.mxu0 %v1610
    %1628 = vmatprep.subr.mxu0 0.0
    %1629 = vmatpush1.msra.mxu0 %v1611
    %1630 = vmatprep.subr.mxu0 0.0
    %1631 = vmatpush1.msra.mxu0 %v1612
    %1632 = vmatprep.subr.mxu0 0.0
    %1633 = vmatpush1.msra.mxu0 0.0
    %1634 = vmatprep.subr.mxu0 0.0
    %1635 = vmatpush1.msra.mxu0 0.0
    %1636 = vmatprep.subr.mxu0 0.0
    %1637 = vmatpush1.msra.mxu0 0.0
    %1638 = vmatprep.subr.mxu0 0.0
    %1639 = vmatpush1.msra.mxu0 0.0
    %1640 = vmatprep.subr.mxu0 0.0
    %1641 = vmatpush1.msra.mxu0 0.0
    %1642 = vmatprep.subr.mxu0 0.0
    %1643 = vmatpush1.msra.mxu0 0.0
    %1644 = vmatprep.subr.mxu0 0.0
    %1645 = vmatpush1.msra.mxu0 0.0
    %1646 = vmatprep.subr.mxu0 0.0
    %1647 = vmatpush1.msra.mxu0 0.0
    %1648 = vmatprep.subr.mxu0 0.0
    %1649 = vmatpush1.msra.mxu0 0.0
    %1650 = vmatprep.subr.mxu0 0.0
    %1651 = vmatpush1.msra.mxu0 0.0
    %1652 = vmatprep.subr.mxu0 0.0
    %1653 = vmatpush1.msra.mxu0 0.0
    %1654 = vmatprep.subr.mxu0 0.0
    %1655 = vmatpush1.msra.mxu0 0.0
    %1656 = vmatprep.subr.mxu0 0.0
    %1657 = vmatpush1.msra.mxu0 0.0
    %1658 = vmatprep.subr.mxu0 0.0
    %1659 = vmatpush1.msra.mxu0 0.0
    %1660 = vmatprep.subr.mxu0 0.0
    %1661 = vmatpush1.msra.mxu0 0.0
    %1662 = vmatprep.subr.mxu0 0.0
    %1663 = vmatpush1.msra.mxu0 0.0
    %1664 = vmatprep.subr.mxu0 0.0
    %1665 = vmatpush1.msra.mxu0 0.0
    %1666 = vmatprep.subr.mxu0 0.0
    %1667 = vmatpush1.msra.mxu0 0.0
    %1668 = vmatprep.subr.mxu0 0.0
    %1669 = vmatpush1.msra.mxu0 0.0
    %1670 = vmatprep.subr.mxu0 0.0
    %1671 = vmatpush1.msra.mxu0 0.0
    %1672 = vmatprep.subr.mxu0 0.0
    %1673 = vmatpush1.msra.mxu0 0.0
    %1674 = vmatprep.subr.mxu0 0.0
    %1675 = vmatpush1.msra.mxu0 0.0
    %1676 = vmatprep.subr.mxu0 0.0
    %1677 = vmatpush1.msra.mxu0 0.0
    %1678 = vmatprep.subr.mxu0 0.0
    %1679 = vmatpush1.msra.mxu0 0.0
    %1680 = vmatprep.subr.mxu0 0.0
    %1681 = vmatpush1.msra.mxu0 0.0
    %1682 = vmatprep.subr.mxu0 0.0
    %1683 = vmatpush1.msra.mxu0 0.0
    %1684 = vmatprep.subr.mxu0 0.0
    %1685 = vmatpush1.msra.mxu0 0.0
    %1686 = vmatprep.subr.mxu0 0.0
    %1687 = vmatpush1.msra.mxu0 0.0
    %1688 = vmatprep.mubr.f32.mxu0 0.0
    %1689 = vmatmul.mubr.f32.gmra.mrb[0].mxu0 %v1619
    %v1690 = vpop.f32.mrb[0].mxu0
    %v1691 = vadd.f32 %v1617, %v1690
    %v1692 = vpop.f32.mrb[0].mxu0
    %1693 = vmatprep.mubr.f32.mxu0 0.0
    %1694 = vmatmul.mubr.f32.gmra.mrb[0].mxu0 %v1622
    %v1695 = vpop.f32.mrb[0].mxu0
    %v1696 = vadd.f32 %v1617, %v1695
    %v1697 = vpop.f32.mrb[0].mxu0
    %1698 = vdwg.mxu0
    %v1699 = vmax.f32 %v1691, 0.0
    %v1700 = vmax.f32 %v1696, 0.0
    %v1701 = vld [vmem:[%s9] sm:$0xff]
    %v1702 = vld [vmem:[%s9 + $0x8] sm:$0xff]
    %v1703 = vld [vmem:[%s9 + $0x10] sm:$0xff]
    %v1704 = vld [vmem:[%s9 + $0x18] sm:$0xff]
    %v1705 = vld [vmem:[%s9 + $0x20] sm:$0xff]
    %v1706 = vld [vmem:[%s9 + $0x28] sm:$0xff]
    %v1707 = vld [vmem:[%s9 + $0x30] sm:$0xff]
    %v1708 = vld [vmem:[%s9 + $0x38] sm:$0xff]
    %v1709 = vld [vmem:[%s10 + $0x3] sm:$0x1]
    %v1710 = vlaneseq
    %v1711 = vshrl.u32 %v1710, 7
    %v1712 = vsub.s32 0, %v1711
    %v1713 = vrot.slane %v1709, %v1712
    %vm1714 = vcmask 523264
    %v1716 = vsel %vm1714, %v1699, 0
    %v1719 = vsel %vm1714, %v1700, 0
    %1721 = vmatprep.subr.mxu0 0.0
    %1722 = vmatpush1.msra.mxu0 %v1701
    %1723 = vmatprep.subr.mxu0 0.0
    %1724 = vmatpush1.msra.mxu0 %v1702
    %1725 = vmatprep.subr.mxu0 0.0
    %1726 = vmatpush1.msra.mxu0 %v1703
    %1727 = vmatprep.subr.mxu0 0.0
    %1728 = vmatpush1.msra.mxu0 %v1704
    %1729 = vmatprep.subr.mxu0 0.0
    %1730 = vmatpush1.msra.mxu0 %v1705
    %1731 = vmatprep.subr.mxu0 0.0
    %1732 = vmatpush1.msra.mxu0 %v1706
    %1733 = vmatprep.subr.mxu0 0.0
    %1734 = vmatpush1.msra.mxu0 %v1707
    %1735 = vmatprep.subr.mxu0 0.0
    %1736 = vmatpush1.msra.mxu0 %v1708
    %1737 = vmatprep.subr.mxu0 0.0
    %1738 = vmatpush1.msra.mxu0 0.0
    %1739 = vmatprep.subr.mxu0 0.0
    %1740 = vmatpush1.msra.mxu0 0.0
    %1741 = vmatprep.subr.mxu0 0.0
    %1742 = vmatpush1.msra.mxu0 0.0
    %1743 = vmatprep.subr.mxu0 0.0
    %1744 = vmatpush1.msra.mxu0 0.0
    %1745 = vmatprep.subr.mxu0 0.0
    %1746 = vmatpush1.msra.mxu0 0.0
    %1747 = vmatprep.subr.mxu0 0.0
    %1748 = vmatpush1.msra.mxu0 0.0
    %1749 = vmatprep.subr.mxu0 0.0
    %1750 = vmatpush1.msra.mxu0 0.0
    %1751 = vmatprep.subr.mxu0 0.0
    %1752 = vmatpush1.msra.mxu0 0.0
    %1753 = vmatprep.subr.mxu0 0.0
    %1754 = vmatpush1.msra.mxu0 0.0
    %1755 = vmatprep.subr.mxu0 0.0
    %1756 = vmatpush1.msra.mxu0 0.0
    %1757 = vmatprep.subr.mxu0 0.0
    %1758 = vmatpush1.msra.mxu0 0.0
    %1759 = vmatprep.subr.mxu0 0.0
    %1760 = vmatpush1.msra.mxu0 0.0
    %1761 = vmatprep.subr.mxu0 0.0
    %1762 = vmatpush1.msra.mxu0 0.0
    %1763 = vmatprep.subr.mxu0 0.0
    %1764 = vmatpush1.msra.mxu0 0.0
    %1765 = vmatprep.subr.mxu0 0.0
    %1766 = vmatpush1.msra.mxu0 0.0
    %1767 = vmatprep.subr.mxu0 0.0
    %1768 = vmatpush1.msra.mxu0 0.0
    %1769 = vmatprep.subr.mxu0 0.0
    %1770 = vmatpush1.msra.mxu0 0.0
    %1771 = vmatprep.subr.mxu0 0.0
    %1772 = vmatpush1.msra.mxu0 0.0
    %1773 = vmatprep.subr.mxu0 0.0
    %1774 = vmatpush1.msra.mxu0 0.0
    %1775 = vmatprep.subr.mxu0 0.0
    %1776 = vmatpush1.msra.mxu0 0.0
    %1777 = vmatprep.subr.mxu0 0.0
    %1778 = vmatpush1.msra.mxu0 0.0
    %1779 = vmatprep.subr.mxu0 0.0
    %1780 = vmatpush1.msra.mxu0 0.0
    %1781 = vmatprep.subr.mxu0 0.0
    %1782 = vmatpush1.msra.mxu0 0.0
    %1783 = vmatprep.subr.mxu0 0.0
    %1784 = vmatpush1.msra.mxu0 0.0
    %1785 = vmatprep.mubr.f32.mxu0 0.0
    %1786 = vmatmul.mubr.f32.gmra.mrb[0].mxu0 %v1716
    %v1787 = vpop.f32.mrb[0].mxu0
    %v1788 = vadd.f32 %v1713, %v1787
    %v1789 = vpop.f32.mrb[0].mxu0
    %1790 = vmatprep.mubr.f32.mxu0 0.0
    %1791 = vmatmul.mubr.f32.gmra.mrb[0].mxu0 %v1719
    %v1792 = vpop.f32.mrb[0].mxu0
    %v1793 = vadd.f32 %v1713, %v1792
    %v1794 = vpop.f32.mrb[0].mxu0
    %1795 = vdwg.mxu0
    %v1796 = vadd.f32 %v1607, %v1788
    %v1797 = vadd.f32 %v1608, %v1793
    %v1798 = vld [vmem:[%s10 + $0x4] sm:$0x1]
    %v1799 = vld [vmem:[%s10 + $0x5] sm:$0x1]
    %v1800 = vsel %vm150, %v1796, 0.0
    %1801 = vadd.xlane.f32.xlu0 %v1800
    %v1802 = vpop.xlane.xlu0 %1801
    %v1803 = vsel %vm150, %v1797, 0.0
    %1804 = vadd.xlane.f32.xlu0 %v1803
    %v1805 = vpop.xlane.xlu0 %1804
    %v1806 = vmul.f32 %v1802, %v1576
    %v1807 = vmul.f32 %v1805, %v1576
    %v1808 = vsub.f32 %v1796, %v1806
    %v1809 = vsub.f32 %v1797, %v1807
    %v1810 = vmul.f32 %v1808, %v1808
    %v1811 = vmul.f32 %v1809, %v1809
    %v1812 = vsel %vm150, %v1810, 0.0
    %1813 = vadd.xlane.f32.xlu0 %v1812
    %v1814 = vpop.xlane.xlu0 %1813
    %v1815 = vsel %vm150, %v1811, 0.0
    %1816 = vadd.xlane.f32.xlu0 %v1815
    %v1817 = vpop.xlane.xlu0 %1816
    %v1818 = vmul.f32 %v1814, %v1576
    %v1819 = vmul.f32 %v1817, %v1576
    %v1820 = vadd.f32 %v1818, 1e-05
    %v1821 = vadd.f32 %v1819, 1e-05
    %v1822 = vrsqrt.pop %v1820
    %v1823 = vrsqrt.pop %v1821
    %v1824 = vmul.f32 %v1808, %v1822
    %v1825 = vmul.f32 %v1809, %v1823
    %v1826 = vlaneseq
    %v1827 = vshrl.u32 %v1826, 7
    %v1828 = vsub.s32 0, %v1827
    %v1829 = vrot.slane %v1798, %v1828
    %v1830 = vmul.f32 %v1824, %v1829
    %v1831 = vmul.f32 %v1825, %v1829
    %v1832 = vlaneseq
    %v1833 = vshrl.u32 %v1832, 7
    %v1834 = vsub.s32 0, %v1833
    %v1835 = vrot.slane %v1799, %v1834
    %v1836 = vadd.f32 %v1830, %v1835
    %v1837 = vadd.f32 %v1831, %v1835
    %s1838 = scalar_lea.vmem %s5, 192
    %v1839 = vld [vmem:[%s1838] sm:$0xff]
    %v1840 = vld [vmem:[%s1838 + $0x8] sm:$0xff]
    %v1841 = vld [vmem:[%s1838 + $0x10] sm:$0xff]
    %v1842 = vld [vmem:[%s1838 + $0x18] sm:$0xff]
    %s1843 = scalar_lea.vmem %s6, 8
    %v1844 = vld [vmem:[%s1843] sm:$0x1]
    %v1845 = vlaneseq
    %v1846 = vshrl.u32 %v1845, 7
    %v1847 = vsub.s32 0, %v1846
    %v1848 = vrot.slane %v1844, %v1847
    %v1850 = vsel %vm150, %v1836, 0
    %v1853 = vsel %vm150, %v1837, 0
    %1855 = vmatprep.subr.mxu0 0.0
    %1856 = vmatpush1.msra.mxu0 %v1839
    %1857 = vmatprep.subr.mxu0 0.0
    %1858 = vmatpush1.msra.mxu0 %v1840
    %1859 = vmatprep.subr.mxu0 0.0
    %1860 = vmatpush1.msra.mxu0 %v1841
    %1861 = vmatprep.subr.mxu0 0.0
    %1862 = vmatpush1.msra.mxu0 %v1842
    %1863 = vmatprep.subr.mxu0 0.0
    %1864 = vmatpush1.msra.mxu0 0.0
    %1865 = vmatprep.subr.mxu0 0.0
    %1866 = vmatpush1.msra.mxu0 0.0
    %1867 = vmatprep.subr.mxu0 0.0
    %1868 = vmatpush1.msra.mxu0 0.0
    %1869 = vmatprep.subr.mxu0 0.0
    %1870 = vmatpush1.msra.mxu0 0.0
    %1871 = vmatprep.subr.mxu0 0.0
    %1872 = vmatpush1.msra.mxu0 0.0
    %1873 = vmatprep.subr.mxu0 0.0
    %1874 = vmatpush1.msra.mxu0 0.0
    %1875 = vmatprep.subr.mxu0 0.0
    %1876 = vmatpush1.msra.mxu0 0.0
    %1877 = vmatprep.subr.mxu0 0.0
    %1878 = vmatpush1.msra.mxu0 0.0
    %1879 = vmatprep.subr.mxu0 0.0
    %1880 = vmatpush1.msra.mxu0 0.0
    %1881 = vmatprep.subr.mxu0 0.0
    %1882 = vmatpush1.msra.mxu0 0.0
    %1883 = vmatprep.subr.mxu0 0.0
    %1884 = vmatpush1.msra.mxu0 0.0
    %1885 = vmatprep.subr.mxu0 0.0
    %1886 = vmatpush1.msra.mxu0 0.0
    %1887 = vmatprep.subr.mxu0 0.0
    %1888 = vmatpush1.msra.mxu0 0.0
    %1889 = vmatprep.subr.mxu0 0.0
    %1890 = vmatpush1.msra.mxu0 0.0
    %1891 = vmatprep.subr.mxu0 0.0
    %1892 = vmatpush1.msra.mxu0 0.0
    %1893 = vmatprep.subr.mxu0 0.0
    %1894 = vmatpush1.msra.mxu0 0.0
    %1895 = vmatprep.subr.mxu0 0.0
    %1896 = vmatpush1.msra.mxu0 0.0
    %1897 = vmatprep.subr.mxu0 0.0
    %1898 = vmatpush1.msra.mxu0 0.0
    %1899 = vmatprep.subr.mxu0 0.0
    %1900 = vmatpush1.msra.mxu0 0.0
    %1901 = vmatprep.subr.mxu0 0.0
    %1902 = vmatpush1.msra.mxu0 0.0
    %1903 = vmatprep.subr.mxu0 0.0
    %1904 = vmatpush1.msra.mxu0 0.0
    %1905 = vmatprep.subr.mxu0 0.0
    %1906 = vmatpush1.msra.mxu0 0.0
    %1907 = vmatprep.subr.mxu0 0.0
    %1908 = vmatpush1.msra.mxu0 0.0
    %1909 = vmatprep.subr.mxu0 0.0
    %1910 = vmatpush1.msra.mxu0 0.0
    %1911 = vmatprep.subr.mxu0 0.0
    %1912 = vmatpush1.msra.mxu0 0.0
    %1913 = vmatprep.subr.mxu0 0.0
    %1914 = vmatpush1.msra.mxu0 0.0
    %1915 = vmatprep.subr.mxu0 0.0
    %1916 = vmatpush1.msra.mxu0 0.0
    %1917 = vmatprep.subr.mxu0 0.0
    %1918 = vmatpush1.msra.mxu0 0.0
    %1919 = vmatprep.mubr.f32.mxu0 0.0
    %1920 = vmatmul.mubr.f32.gmra.mrb[0].mxu0 %v1850
    %v1921 = vpop.f32.mrb[0].mxu0
    %v1922 = vadd.f32 %v1848, %v1921
    %v1923 = vpop.f32.mrb[0].mxu0
    %1924 = vmatprep.mubr.f32.mxu0 0.0
    %1925 = vmatmul.mubr.f32.gmra.mrb[0].mxu0 %v1853
    %v1926 = vpop.f32.mrb[0].mxu0
    %v1927 = vadd.f32 %v1848, %v1926
    %v1928 = vpop.f32.mrb[0].mxu0
    %1929 = vdwg.mxu0
    %s1930 = scalar_lea.vmem %s5, 256
    %v1931 = vld [vmem:[%s1930] sm:$0xff]
    %v1932 = vld [vmem:[%s1930 + $0x8] sm:$0xff]
    %v1933 = vld [vmem:[%s1930 + $0x10] sm:$0xff]
    %v1934 = vld [vmem:[%s1930 + $0x18] sm:$0xff]
    %v1935 = vld [vmem:[%s1843 + $0x2] sm:$0x1]
    %v1936 = vlaneseq
    %v1937 = vshrl.u32 %v1936, 7
    %v1938 = vsub.s32 0, %v1937
    %v1939 = vrot.slane %v1935, %v1938
    %1940 = vmatprep.subr.mxu0 0.0
    %1941 = vmatpush1.msra.mxu0 %v1931
    %1942 = vmatprep.subr.mxu0 0.0
    %1943 = vmatpush1.msra.mxu0 %v1932
    %1944 = vmatprep.subr.mxu0 0.0
    %1945 = vmatpush1.msra.mxu0 %v1933
    %1946 = vmatprep.subr.mxu0 0.0
    %1947 = vmatpush1.msra.mxu0 %v1934
    %1948 = vmatprep.subr.mxu0 0.0
    %1949 = vmatpush1.msra.mxu0 0.0
    %1950 = vmatprep.subr.mxu0 0.0
    %1951 = vmatpush1.msra.mxu0 0.0
    %1952 = vmatprep.subr.mxu0 0.0
    %1953 = vmatpush1.msra.mxu0 0.0
    %1954 = vmatprep.subr.mxu0 0.0
    %1955 = vmatpush1.msra.mxu0 0.0
    %1956 = vmatprep.subr.mxu0 0.0
    %1957 = vmatpush1.msra.mxu0 0.0
    %1958 = vmatprep.subr.mxu0 0.0
    %1959 = vmatpush1.msra.mxu0 0.0
    %1960 = vmatprep.subr.mxu0 0.0
    %1961 = vmatpush1.msra.mxu0 0.0
    %1962 = vmatprep.subr.mxu0 0.0
    %1963 = vmatpush1.msra.mxu0 0.0
    %1964 = vmatprep.subr.mxu0 0.0
    %1965 = vmatpush1.msra.mxu0 0.0
    %1966 = vmatprep.subr.mxu0 0.0
    %1967 = vmatpush1.msra.mxu0 0.0
    %1968 = vmatprep.subr.mxu0 0.0
    %1969 = vmatpush1.msra.mxu0 0.0
    %1970 = vmatprep.subr.mxu0 0.0
    %1971 = vmatpush1.msra.mxu0 0.0
    %1972 = vmatprep.subr.mxu0 0.0
    %1973 = vmatpush1.msra.mxu0 0.0
    %1974 = vmatprep.subr.mxu0 0.0
    %1975 = vmatpush1.msra.mxu0 0.0
    %1976 = vmatprep.subr.mxu0 0.0
    %1977 = vmatpush1.msra.mxu0 0.0
    %1978 = vmatprep.subr.mxu0 0.0
    %1979 = vmatpush1.msra.mxu0 0.0
    %1980 = vmatprep.subr.mxu0 0.0
    %1981 = vmatpush1.msra.mxu0 0.0
    %1982 = vmatprep.subr.mxu0 0.0
    %1983 = vmatpush1.msra.mxu0 0.0
    %1984 = vmatprep.subr.mxu0 0.0
    %1985 = vmatpush1.msra.mxu0 0.0
    %1986 = vmatprep.subr.mxu0 0.0
    %1987 = vmatpush1.msra.mxu0 0.0
    %1988 = vmatprep.subr.mxu0 0.0
    %1989 = vmatpush1.msra.mxu0 0.0
    %1990 = vmatprep.subr.mxu0 0.0
    %1991 = vmatpush1.msra.mxu0 0.0
    %1992 = vmatprep.subr.mxu0 0.0
    %1993 = vmatpush1.msra.mxu0 0.0
    %1994 = vmatprep.subr.mxu0 0.0
    %1995 = vmatpush1.msra.mxu0 0.0
    %1996 = vmatprep.subr.mxu0 0.0
    %1997 = vmatpush1.msra.mxu0 0.0
    %1998 = vmatprep.subr.mxu0 0.0
    %1999 = vmatpush1.msra.mxu0 0.0
    %2000 = vmatprep.subr.mxu0 0.0
    %2001 = vmatpush1.msra.mxu0 0.0
    %2002 = vmatprep.subr.mxu0 0.0
    %2003 = vmatpush1.msra.mxu0 0.0
    %2004 = vmatprep.mubr.f32.mxu0 0.0
    %2005 = vmatmul.mubr.f32.gmra.mrb[0].mxu0 %v1850
    %v2006 = vpop.f32.mrb[0].mxu0
    %v2007 = vadd.f32 %v1939, %v2006
    %v2008 = vpop.f32.mrb[0].mxu0
    %2009 = vmatprep.mubr.f32.mxu0 0.0
    %2010 = vmatmul.mubr.f32.gmra.mrb[0].mxu0 %v1853
    %v2011 = vpop.f32.mrb[0].mxu0
    %v2012 = vadd.f32 %v1939, %v2011
    %v2013 = vpop.f32.mrb[0].mxu0
    %2014 = vdwg.mxu0
    %s2015 = scalar_lea.vmem %s5, 320
    %v2016 = vld [vmem:[%s2015] sm:$0xff]
    %v2017 = vld [vmem:[%s2015 + $0x8] sm:$0xff]
    %v2018 = vld [vmem:[%s2015 + $0x10] sm:$0xff]
    %v2019 = vld [vmem:[%s2015 + $0x18] sm:$0xff]
    %v2020 = vld [vmem:[%s1843 + $0x4] sm:$0x1]
    %v2021 = vlaneseq
    %v2022 = vshrl.u32 %v2021, 7
    %v2023 = vsub.s32 0, %v2022
    %v2024 = vrot.slane %v2020, %v2023
    %2025 = vmatprep.subr.mxu0 0.0
    %2026 = vmatpush1.msra.mxu0 %v2016
    %2027 = vmatprep.subr.mxu0 0.0
    %2028 = vmatpush1.msra.mxu0 %v2017
    %2029 = vmatprep.subr.mxu0 0.0
    %2030 = vmatpush1.msra.mxu0 %v2018
    %2031 = vmatprep.subr.mxu0 0.0
    %2032 = vmatpush1.msra.mxu0 %v2019
    %2033 = vmatprep.subr.mxu0 0.0
    %2034 = vmatpush1.msra.mxu0 0.0
    %2035 = vmatprep.subr.mxu0 0.0
    %2036 = vmatpush1.msra.mxu0 0.0
    %2037 = vmatprep.subr.mxu0 0.0
    %2038 = vmatpush1.msra.mxu0 0.0
    %2039 = vmatprep.subr.mxu0 0.0
    %2040 = vmatpush1.msra.mxu0 0.0
    %2041 = vmatprep.subr.mxu0 0.0
    %2042 = vmatpush1.msra.mxu0 0.0
    %2043 = vmatprep.subr.mxu0 0.0
    %2044 = vmatpush1.msra.mxu0 0.0
    %2045 = vmatprep.subr.mxu0 0.0
    %2046 = vmatpush1.msra.mxu0 0.0
    %2047 = vmatprep.subr.mxu0 0.0
    %2048 = vmatpush1.msra.mxu0 0.0
    %2049 = vmatprep.subr.mxu0 0.0
    %2050 = vmatpush1.msra.mxu0 0.0
    %2051 = vmatprep.subr.mxu0 0.0
    %2052 = vmatpush1.msra.mxu0 0.0
    %2053 = vmatprep.subr.mxu0 0.0
    %2054 = vmatpush1.msra.mxu0 0.0
    %2055 = vmatprep.subr.mxu0 0.0
    %2056 = vmatpush1.msra.mxu0 0.0
    %2057 = vmatprep.subr.mxu0 0.0
    %2058 = vmatpush1.msra.mxu0 0.0
    %2059 = vmatprep.subr.mxu0 0.0
    %2060 = vmatpush1.msra.mxu0 0.0
    %2061 = vmatprep.subr.mxu0 0.0
    %2062 = vmatpush1.msra.mxu0 0.0
    %2063 = vmatprep.subr.mxu0 0.0
    %2064 = vmatpush1.msra.mxu0 0.0
    %2065 = vmatprep.subr.mxu0 0.0
    %2066 = vmatpush1.msra.mxu0 0.0
    %2067 = vmatprep.subr.mxu0 0.0
    %2068 = vmatpush1.msra.mxu0 0.0
    %2069 = vmatprep.subr.mxu0 0.0
    %2070 = vmatpush1.msra.mxu0 0.0
    %2071 = vmatprep.subr.mxu0 0.0
    %2072 = vmatpush1.msra.mxu0 0.0
    %2073 = vmatprep.subr.mxu0 0.0
    %2074 = vmatpush1.msra.mxu0 0.0
    %2075 = vmatprep.subr.mxu0 0.0
    %2076 = vmatpush1.msra.mxu0 0.0
    %2077 = vmatprep.subr.mxu0 0.0
    %2078 = vmatpush1.msra.mxu0 0.0
    %2079 = vmatprep.subr.mxu0 0.0
    %2080 = vmatpush1.msra.mxu0 0.0
    %2081 = vmatprep.subr.mxu0 0.0
    %2082 = vmatpush1.msra.mxu0 0.0
    %2083 = vmatprep.subr.mxu0 0.0
    %2084 = vmatpush1.msra.mxu0 0.0
    %2085 = vmatprep.subr.mxu0 0.0
    %2086 = vmatpush1.msra.mxu0 0.0
    %2087 = vmatprep.subr.mxu0 0.0
    %2088 = vmatpush1.msra.mxu0 0.0
    %2089 = vmatprep.mubr.f32.mxu0 0.0
    %2090 = vmatmul.mubr.f32.gmra.mrb[0].mxu0 %v1850
    %v2091 = vpop.f32.mrb[0].mxu0
    %v2092 = vadd.f32 %v2024, %v2091
    %v2093 = vpop.f32.mrb[0].mxu0
    %2094 = vmatprep.mubr.f32.mxu0 0.0
    %2095 = vmatmul.mubr.f32.gmra.mrb[0].mxu0 %v1853
    %v2096 = vpop.f32.mrb[0].mxu0
    %v2097 = vadd.f32 %v2024, %v2096
    %v2098 = vpop.f32.mrb[0].mxu0
    %2099 = vdwg.mxu0
    %v2101 = vsel %vm57, %v1922, 0
    %v2104 = vsel %vm57, %v2007, 0
    %2106 = vmatprep.subr.mxu0 0.0
    %2107 = vmatpush1.xpose.msra.mxu0 %v2104
    %2108 = vmatprep.subr.mxu0 0.0
    %2109 = vmatpush1.xpose.msra.mxu0 0.0
    %2110 = vmatprep.subr.mxu0 0.0
    %2111 = vmatpush1.xpose.msra.mxu0 0.0
    %2112 = vmatprep.subr.mxu0 0.0
    %2113 = vmatpush1.xpose.msra.mxu0 0.0
    %2114 = vmatprep.subr.mxu0 0.0
    %2115 = vmatpush1.xpose.msra.mxu0 0.0
    %2116 = vmatprep.subr.mxu0 0.0
    %2117 = vmatpush1.xpose.msra.mxu0 0.0
    %2118 = vmatprep.subr.mxu0 0.0
    %2119 = vmatpush1.xpose.msra.mxu0 0.0
    %2120 = vmatprep.subr.mxu0 0.0
    %2121 = vmatpush1.xpose.msra.mxu0 0.0
    %2122 = vmatprep.subr.mxu0 0.0
    %2123 = vmatpush1.xpose.msra.mxu0 0.0
    %2124 = vmatprep.subr.mxu0 0.0
    %2125 = vmatpush1.xpose.msra.mxu0 0.0
    %2126 = vmatprep.subr.mxu0 0.0
    %2127 = vmatpush1.xpose.msra.mxu0 0.0
    %2128 = vmatprep.subr.mxu0 0.0
    %2129 = vmatpush1.xpose.msra.mxu0 0.0
    %2130 = vmatprep.subr.mxu0 0.0
    %2131 = vmatpush1.xpose.msra.mxu0 0.0
    %2132 = vmatprep.subr.mxu0 0.0
    %2133 = vmatpush1.xpose.msra.mxu0 0.0
    %2134 = vmatprep.subr.mxu0 0.0
    %2135 = vmatpush1.xpose.msra.mxu0 0.0
    %2136 = vmatprep.subr.mxu0 0.0
    %2137 = vmatpush1.xpose.msra.mxu0 0.0
    %2138 = vmatprep.subr.mxu0 0.0
    %2139 = vmatpush1.xpose.msra.mxu0 0.0
    %2140 = vmatprep.subr.mxu0 0.0
    %2141 = vmatpush1.xpose.msra.mxu0 0.0
    %2142 = vmatprep.subr.mxu0 0.0
    %2143 = vmatpush1.xpose.msra.mxu0 0.0
    %2144 = vmatprep.subr.mxu0 0.0
    %2145 = vmatpush1.xpose.msra.mxu0 0.0
    %2146 = vmatprep.subr.mxu0 0.0
    %2147 = vmatpush1.xpose.msra.mxu0 0.0
    %2148 = vmatprep.subr.mxu0 0.0
    %2149 = vmatpush1.xpose.msra.mxu0 0.0
    %2150 = vmatprep.subr.mxu0 0.0
    %2151 = vmatpush1.xpose.msra.mxu0 0.0
    %2152 = vmatprep.subr.mxu0 0.0
    %2153 = vmatpush1.xpose.msra.mxu0 0.0
    %2154 = vmatprep.subr.mxu0 0.0
    %2155 = vmatpush1.xpose.msra.mxu0 0.0
    %2156 = vmatprep.subr.mxu0 0.0
    %2157 = vmatpush1.xpose.msra.mxu0 0.0
    %2158 = vmatprep.subr.mxu0 0.0
    %2159 = vmatpush1.xpose.msra.mxu0 0.0
    %2160 = vmatprep.subr.mxu0 0.0
    %2161 = vmatpush1.xpose.msra.mxu0 0.0
    %2162 = vmatprep.subr.mxu0 0.0
    %2163 = vmatpush1.xpose.msra.mxu0 0.0
    %2164 = vmatprep.subr.mxu0 0.0
    %2165 = vmatpush1.xpose.msra.mxu0 0.0
    %2166 = vmatprep.subr.mxu0 0.0
    %2167 = vmatpush1.xpose.msra.mxu0 0.0
    %2168 = vmatprep.subr.mxu0 0.0
    %2169 = vmatpush1.xpose.msra.mxu0 0.0
    %2170 = vmatprep.mubr.f32.mxu0 0.0
    %2171 = vmatmul.mubr.f32.gmra.mrb[0].mxu0 %v2101
    %v2172 = vpop.f32.mrb[0].mxu0
    %v2173 = vadd.f32 0.0, %v2172
    %v2174 = vpop.f32.mrb[0].mxu0
    %2175 = vdwg.mxu0
    %v2177 = vsel %vm57, %v1927, 0
    %v2180 = vsel %vm57, %v2012, 0
    %2182 = vmatprep.subr.mxu0 0.0
    %2183 = vmatpush1.xpose.msra.mxu0 %v2180
    %2184 = vmatprep.subr.mxu0 0.0
    %2185 = vmatpush1.xpose.msra.mxu0 0.0
    %2186 = vmatprep.subr.mxu0 0.0
    %2187 = vmatpush1.xpose.msra.mxu0 0.0
    %2188 = vmatprep.subr.mxu0 0.0
    %2189 = vmatpush1.xpose.msra.mxu0 0.0
    %2190 = vmatprep.subr.mxu0 0.0
    %2191 = vmatpush1.xpose.msra.mxu0 0.0
    %2192 = vmatprep.subr.mxu0 0.0
    %2193 = vmatpush1.xpose.msra.mxu0 0.0
    %2194 = vmatprep.subr.mxu0 0.0
    %2195 = vmatpush1.xpose.msra.mxu0 0.0
    %2196 = vmatprep.subr.mxu0 0.0
    %2197 = vmatpush1.xpose.msra.mxu0 0.0
    %2198 = vmatprep.subr.mxu0 0.0
    %2199 = vmatpush1.xpose.msra.mxu0 0.0
    %2200 = vmatprep.subr.mxu0 0.0
    %2201 = vmatpush1.xpose.msra.mxu0 0.0
    %2202 = vmatprep.subr.mxu0 0.0
    %2203 = vmatpush1.xpose.msra.mxu0 0.0
    %2204 = vmatprep.subr.mxu0 0.0
    %2205 = vmatpush1.xpose.msra.mxu0 0.0
    %2206 = vmatprep.subr.mxu0 0.0
    %2207 = vmatpush1.xpose.msra.mxu0 0.0
    %2208 = vmatprep.subr.mxu0 0.0
    %2209 = vmatpush1.xpose.msra.mxu0 0.0
    %2210 = vmatprep.subr.mxu0 0.0
    %2211 = vmatpush1.xpose.msra.mxu0 0.0
    %2212 = vmatprep.subr.mxu0 0.0
    %2213 = vmatpush1.xpose.msra.mxu0 0.0
    %2214 = vmatprep.subr.mxu0 0.0
    %2215 = vmatpush1.xpose.msra.mxu0 0.0
    %2216 = vmatprep.subr.mxu0 0.0
    %2217 = vmatpush1.xpose.msra.mxu0 0.0
    %2218 = vmatprep.subr.mxu0 0.0
    %2219 = vmatpush1.xpose.msra.mxu0 0.0
    %2220 = vmatprep.subr.mxu0 0.0
    %2221 = vmatpush1.xpose.msra.mxu0 0.0
    %2222 = vmatprep.subr.mxu0 0.0
    %2223 = vmatpush1.xpose.msra.mxu0 0.0
    %2224 = vmatprep.subr.mxu0 0.0
    %2225 = vmatpush1.xpose.msra.mxu0 0.0
    %2226 = vmatprep.subr.mxu0 0.0
    %2227 = vmatpush1.xpose.msra.mxu0 0.0
    %2228 = vmatprep.subr.mxu0 0.0
    %2229 = vmatpush1.xpose.msra.mxu0 0.0
    %2230 = vmatprep.subr.mxu0 0.0
    %2231 = vmatpush1.xpose.msra.mxu0 0.0
    %2232 = vmatprep.subr.mxu0 0.0
    %2233 = vmatpush1.xpose.msra.mxu0 0.0
    %2234 = vmatprep.subr.mxu0 0.0
    %2235 = vmatpush1.xpose.msra.mxu0 0.0
    %2236 = vmatprep.subr.mxu0 0.0
    %2237 = vmatpush1.xpose.msra.mxu0 0.0
    %2238 = vmatprep.subr.mxu0 0.0
    %2239 = vmatpush1.xpose.msra.mxu0 0.0
    %2240 = vmatprep.subr.mxu0 0.0
    %2241 = vmatpush1.xpose.msra.mxu0 0.0
    %2242 = vmatprep.subr.mxu0 0.0
    %2243 = vmatpush1.xpose.msra.mxu0 0.0
    %2244 = vmatprep.subr.mxu0 0.0
    %2245 = vmatpush1.xpose.msra.mxu0 0.0
    %2246 = vmatprep.mubr.f32.mxu0 0.0
    %2247 = vmatmul.mubr.f32.gmra.mrb[0].mxu0 %v2177
    %v2248 = vpop.f32.mrb[0].mxu0
    %v2249 = vadd.f32 0.0, %v2248
    %v2250 = vpop.f32.mrb[0].mxu0
    %2251 = vdwg.mxu0
    %v2252 = vsel %vm648, %v2173, -inf
    %2253 = vmax.xlane.f32.xlu0 %v2252
    %v2254 = vpop.xlane.xlu0 %2253
    %v2255 = vsel %vm648, %v2249, -inf
    %2256 = vmax.xlane.f32.xlu0 %v2255
    %v2257 = vpop.xlane.xlu0 %2256
    %v2258 = vsub.f32 %v2173, %v2254
    %v2259 = vsub.f32 %v2249, %v2257
    %v2260 = vmul.f32 %v2258, 1.442695
    %v2261 = vpow.pop %v2260
    %v2262 = vmul.f32 %v2259, 1.442695
    %v2263 = vpow.pop %v2262
    %v2264 = vsel %vm648, %v2261, 0.0
    %2265 = vadd.xlane.f32.xlu0 %v2264
    %v2266 = vpop.xlane.xlu0 %2265
    %v2267 = vsel %vm648, %v2263, 0.0
    %2268 = vadd.xlane.f32.xlu0 %v2267
    %v2269 = vpop.xlane.xlu0 %2268
    %v2271 = vsel %vm648, %v2261, 0
    %2273 = vmatprep.subr.mxu0 0.0
    %2274 = vmatpush1.msra.mxu0 %v2092
    %2275 = vmatprep.subr.mxu0 0.0
    %2276 = vmatpush1.msra.mxu0 0.0
    %2277 = vmatprep.subr.mxu0 0.0
    %2278 = vmatpush1.msra.mxu0 0.0
    %2279 = vmatprep.subr.mxu0 0.0
    %2280 = vmatpush1.msra.mxu0 0.0
    %2281 = vmatprep.subr.mxu0 0.0
    %2282 = vmatpush1.msra.mxu0 0.0
    %2283 = vmatprep.subr.mxu0 0.0
    %2284 = vmatpush1.msra.mxu0 0.0
    %2285 = vmatprep.subr.mxu0 0.0
    %2286 = vmatpush1.msra.mxu0 0.0
    %2287 = vmatprep.subr.mxu0 0.0
    %2288 = vmatpush1.msra.mxu0 0.0
    %2289 = vmatprep.subr.mxu0 0.0
    %2290 = vmatpush1.msra.mxu0 0.0
    %2291 = vmatprep.subr.mxu0 0.0
    %2292 = vmatpush1.msra.mxu0 0.0
    %2293 = vmatprep.subr.mxu0 0.0
    %2294 = vmatpush1.msra.mxu0 0.0
    %2295 = vmatprep.subr.mxu0 0.0
    %2296 = vmatpush1.msra.mxu0 0.0
    %2297 = vmatprep.subr.mxu0 0.0
    %2298 = vmatpush1.msra.mxu0 0.0
    %2299 = vmatprep.subr.mxu0 0.0
    %2300 = vmatpush1.msra.mxu0 0.0
    %2301 = vmatprep.subr.mxu0 0.0
    %2302 = vmatpush1.msra.mxu0 0.0
    %2303 = vmatprep.subr.mxu0 0.0
    %2304 = vmatpush1.msra.mxu0 0.0
    %2305 = vmatprep.subr.mxu0 0.0
    %2306 = vmatpush1.msra.mxu0 0.0
    %2307 = vmatprep.subr.mxu0 0.0
    %2308 = vmatpush1.msra.mxu0 0.0
    %2309 = vmatprep.subr.mxu0 0.0
    %2310 = vmatpush1.msra.mxu0 0.0
    %2311 = vmatprep.subr.mxu0 0.0
    %2312 = vmatpush1.msra.mxu0 0.0
    %2313 = vmatprep.subr.mxu0 0.0
    %2314 = vmatpush1.msra.mxu0 0.0
    %2315 = vmatprep.subr.mxu0 0.0
    %2316 = vmatpush1.msra.mxu0 0.0
    %2317 = vmatprep.subr.mxu0 0.0
    %2318 = vmatpush1.msra.mxu0 0.0
    %2319 = vmatprep.subr.mxu0 0.0
    %2320 = vmatpush1.msra.mxu0 0.0
    %2321 = vmatprep.subr.mxu0 0.0
    %2322 = vmatpush1.msra.mxu0 0.0
    %2323 = vmatprep.subr.mxu0 0.0
    %2324 = vmatpush1.msra.mxu0 0.0
    %2325 = vmatprep.subr.mxu0 0.0
    %2326 = vmatpush1.msra.mxu0 0.0
    %2327 = vmatprep.subr.mxu0 0.0
    %2328 = vmatpush1.msra.mxu0 0.0
    %2329 = vmatprep.subr.mxu0 0.0
    %2330 = vmatpush1.msra.mxu0 0.0
    %2331 = vmatprep.subr.mxu0 0.0
    %2332 = vmatpush1.msra.mxu0 0.0
    %2333 = vmatprep.subr.mxu0 0.0
    %2334 = vmatpush1.msra.mxu0 0.0
    %2335 = vmatprep.subr.mxu0 0.0
    %2336 = vmatpush1.msra.mxu0 0.0
    %2337 = vmatprep.mubr.f32.mxu0 0.0
    %2338 = vmatmul.mubr.f32.gmra.mrb[0].mxu0 %v2271
    %v2339 = vpop.f32.mrb[0].mxu0
    %v2340 = vadd.f32 0.0, %v2339
    %v2341 = vpop.f32.mrb[0].mxu0
    %2342 = vdwg.mxu0
    %v2344 = vsel %vm648, %v2263, 0
    %2346 = vmatprep.subr.mxu0 0.0
    %2347 = vmatpush1.msra.mxu0 %v2097
    %2348 = vmatprep.subr.mxu0 0.0
    %2349 = vmatpush1.msra.mxu0 0.0
    %2350 = vmatprep.subr.mxu0 0.0
    %2351 = vmatpush1.msra.mxu0 0.0
    %2352 = vmatprep.subr.mxu0 0.0
    %2353 = vmatpush1.msra.mxu0 0.0
    %2354 = vmatprep.subr.mxu0 0.0
    %2355 = vmatpush1.msra.mxu0 0.0
    %2356 = vmatprep.subr.mxu0 0.0
    %2357 = vmatpush1.msra.mxu0 0.0
    %2358 = vmatprep.subr.mxu0 0.0
    %2359 = vmatpush1.msra.mxu0 0.0
    %2360 = vmatprep.subr.mxu0 0.0
    %2361 = vmatpush1.msra.mxu0 0.0
    %2362 = vmatprep.subr.mxu0 0.0
    %2363 = vmatpush1.msra.mxu0 0.0
    %2364 = vmatprep.subr.mxu0 0.0
    %2365 = vmatpush1.msra.mxu0 0.0
    %2366 = vmatprep.subr.mxu0 0.0
    %2367 = vmatpush1.msra.mxu0 0.0
    %2368 = vmatprep.subr.mxu0 0.0
    %2369 = vmatpush1.msra.mxu0 0.0
    %2370 = vmatprep.subr.mxu0 0.0
    %2371 = vmatpush1.msra.mxu0 0.0
    %2372 = vmatprep.subr.mxu0 0.0
    %2373 = vmatpush1.msra.mxu0 0.0
    %2374 = vmatprep.subr.mxu0 0.0
    %2375 = vmatpush1.msra.mxu0 0.0
    %2376 = vmatprep.subr.mxu0 0.0
    %2377 = vmatpush1.msra.mxu0 0.0
    %2378 = vmatprep.subr.mxu0 0.0
    %2379 = vmatpush1.msra.mxu0 0.0
    %2380 = vmatprep.subr.mxu0 0.0
    %2381 = vmatpush1.msra.mxu0 0.0
    %2382 = vmatprep.subr.mxu0 0.0
    %2383 = vmatpush1.msra.mxu0 0.0
    %2384 = vmatprep.subr.mxu0 0.0
    %2385 = vmatpush1.msra.mxu0 0.0
    %2386 = vmatprep.subr.mxu0 0.0
    %2387 = vmatpush1.msra.mxu0 0.0
    %2388 = vmatprep.subr.mxu0 0.0
    %2389 = vmatpush1.msra.mxu0 0.0
    %2390 = vmatprep.subr.mxu0 0.0
    %2391 = vmatpush1.msra.mxu0 0.0
    %2392 = vmatprep.subr.mxu0 0.0
    %2393 = vmatpush1.msra.mxu0 0.0
    %2394 = vmatprep.subr.mxu0 0.0
    %2395 = vmatpush1.msra.mxu0 0.0
    %2396 = vmatprep.subr.mxu0 0.0
    %2397 = vmatpush1.msra.mxu0 0.0
    %2398 = vmatprep.subr.mxu0 0.0
    %2399 = vmatpush1.msra.mxu0 0.0
    %2400 = vmatprep.subr.mxu0 0.0
    %2401 = vmatpush1.msra.mxu0 0.0
    %2402 = vmatprep.subr.mxu0 0.0
    %2403 = vmatpush1.msra.mxu0 0.0
    %2404 = vmatprep.subr.mxu0 0.0
    %2405 = vmatpush1.msra.mxu0 0.0
    %2406 = vmatprep.subr.mxu0 0.0
    %2407 = vmatpush1.msra.mxu0 0.0
    %2408 = vmatprep.subr.mxu0 0.0
    %2409 = vmatpush1.msra.mxu0 0.0
    %2410 = vmatprep.mubr.f32.mxu0 0.0
    %2411 = vmatmul.mubr.f32.gmra.mrb[0].mxu0 %v2344
    %v2412 = vpop.f32.mrb[0].mxu0
    %v2413 = vadd.f32 0.0, %v2412
    %v2414 = vpop.f32.mrb[0].mxu0
    %2415 = vdwg.mxu0
    %v2416 = vrcp.pop %v2266
    %v2417 = vmul.f32 %v2340, %v2416
    %v2418 = vrcp.pop %v2269
    %v2419 = vmul.f32 %v2413, %v2418
    %s2420 = scalar_lea.vmem %s7, 32
    %v2421 = vld [vmem:[%s2420] sm:$0xff]
    %v2422 = vld [vmem:[%s2420 + $0x8] sm:$0xff]
    %s2423 = scalar_lea.vmem %s5, 224
    %v2424 = vld [vmem:[%s2423] sm:$0xff]
    %v2425 = vld [vmem:[%s2423 + $0x8] sm:$0xff]
    %v2426 = vld [vmem:[%s2423 + $0x10] sm:$0xff]
    %v2427 = vld [vmem:[%s2423 + $0x18] sm:$0xff]
    %v2428 = vld [vmem:[%s1843 + $0x1] sm:$0x1]
    %v2429 = vlaneseq
    %v2430 = vshrl.u32 %v2429, 7
    %v2431 = vsub.s32 0, %v2430
    %v2432 = vrot.slane %v2428, %v2431
    %2433 = vmatprep.subr.mxu0 0.0
    %2434 = vmatpush1.msra.mxu0 %v2424
    %2435 = vmatprep.subr.mxu0 0.0
    %2436 = vmatpush1.msra.mxu0 %v2425
    %2437 = vmatprep.subr.mxu0 0.0
    %2438 = vmatpush1.msra.mxu0 %v2426
    %2439 = vmatprep.subr.mxu0 0.0
    %2440 = vmatpush1.msra.mxu0 %v2427
    %2441 = vmatprep.subr.mxu0 0.0
    %2442 = vmatpush1.msra.mxu0 0.0
    %2443 = vmatprep.subr.mxu0 0.0
    %2444 = vmatpush1.msra.mxu0 0.0
    %2445 = vmatprep.subr.mxu0 0.0
    %2446 = vmatpush1.msra.mxu0 0.0
    %2447 = vmatprep.subr.mxu0 0.0
    %2448 = vmatpush1.msra.mxu0 0.0
    %2449 = vmatprep.subr.mxu0 0.0
    %2450 = vmatpush1.msra.mxu0 0.0
    %2451 = vmatprep.subr.mxu0 0.0
    %2452 = vmatpush1.msra.mxu0 0.0
    %2453 = vmatprep.subr.mxu0 0.0
    %2454 = vmatpush1.msra.mxu0 0.0
    %2455 = vmatprep.subr.mxu0 0.0
    %2456 = vmatpush1.msra.mxu0 0.0
    %2457 = vmatprep.subr.mxu0 0.0
    %2458 = vmatpush1.msra.mxu0 0.0
    %2459 = vmatprep.subr.mxu0 0.0
    %2460 = vmatpush1.msra.mxu0 0.0
    %2461 = vmatprep.subr.mxu0 0.0
    %2462 = vmatpush1.msra.mxu0 0.0
    %2463 = vmatprep.subr.mxu0 0.0
    %2464 = vmatpush1.msra.mxu0 0.0
    %2465 = vmatprep.subr.mxu0 0.0
    %2466 = vmatpush1.msra.mxu0 0.0
    %2467 = vmatprep.subr.mxu0 0.0
    %2468 = vmatpush1.msra.mxu0 0.0
    %2469 = vmatprep.subr.mxu0 0.0
    %2470 = vmatpush1.msra.mxu0 0.0
    %2471 = vmatprep.subr.mxu0 0.0
    %2472 = vmatpush1.msra.mxu0 0.0
    %2473 = vmatprep.subr.mxu0 0.0
    %2474 = vmatpush1.msra.mxu0 0.0
    %2475 = vmatprep.subr.mxu0 0.0
    %2476 = vmatpush1.msra.mxu0 0.0
    %2477 = vmatprep.subr.mxu0 0.0
    %2478 = vmatpush1.msra.mxu0 0.0
    %2479 = vmatprep.subr.mxu0 0.0
    %2480 = vmatpush1.msra.mxu0 0.0
    %2481 = vmatprep.subr.mxu0 0.0
    %2482 = vmatpush1.msra.mxu0 0.0
    %2483 = vmatprep.subr.mxu0 0.0
    %2484 = vmatpush1.msra.mxu0 0.0
    %2485 = vmatprep.subr.mxu0 0.0
    %2486 = vmatpush1.msra.mxu0 0.0
    %2487 = vmatprep.subr.mxu0 0.0
    %2488 = vmatpush1.msra.mxu0 0.0
    %2489 = vmatprep.subr.mxu0 0.0
    %2490 = vmatpush1.msra.mxu0 0.0
    %2491 = vmatprep.subr.mxu0 0.0
    %2492 = vmatpush1.msra.mxu0 0.0
    %2493 = vmatprep.subr.mxu0 0.0
    %2494 = vmatpush1.msra.mxu0 0.0
    %2495 = vmatprep.subr.mxu0 0.0
    %2496 = vmatpush1.msra.mxu0 0.0
    %2497 = vmatprep.mubr.f32.mxu0 0.0
    %2498 = vmatmul.mubr.f32.gmra.mrb[0].mxu0 %v1850
    %v2499 = vpop.f32.mrb[0].mxu0
    %v2500 = vadd.f32 %v2432, %v2499
    %v2501 = vpop.f32.mrb[0].mxu0
    %2502 = vmatprep.mubr.f32.mxu0 0.0
    %2503 = vmatmul.mubr.f32.gmra.mrb[0].mxu0 %v1853
    %v2504 = vpop.f32.mrb[0].mxu0
    %v2505 = vadd.f32 %v2432, %v2504
    %v2506 = vpop.f32.mrb[0].mxu0
    %2507 = vdwg.mxu0
    %s2508 = scalar_lea.vmem %s5, 288
    %v2509 = vld [vmem:[%s2508] sm:$0xff]
    %v2510 = vld [vmem:[%s2508 + $0x8] sm:$0xff]
    %v2511 = vld [vmem:[%s2508 + $0x10] sm:$0xff]
    %v2512 = vld [vmem:[%s2508 + $0x18] sm:$0xff]
    %v2513 = vld [vmem:[%s1843 + $0x3] sm:$0x1]
    %v2514 = vlaneseq
    %v2515 = vshrl.u32 %v2514, 7
    %v2516 = vsub.s32 0, %v2515
    %v2517 = vrot.slane %v2513, %v2516
    %2518 = vmatprep.subr.mxu0 0.0
    %2519 = vmatpush1.msra.mxu0 %v2509
    %2520 = vmatprep.subr.mxu0 0.0
    %2521 = vmatpush1.msra.mxu0 %v2510
    %2522 = vmatprep.subr.mxu0 0.0
    %2523 = vmatpush1.msra.mxu0 %v2511
    %2524 = vmatprep.subr.mxu0 0.0
    %2525 = vmatpush1.msra.mxu0 %v2512
    %2526 = vmatprep.subr.mxu0 0.0
    %2527 = vmatpush1.msra.mxu0 0.0
    %2528 = vmatprep.subr.mxu0 0.0
    %2529 = vmatpush1.msra.mxu0 0.0
    %2530 = vmatprep.subr.mxu0 0.0
    %2531 = vmatpush1.msra.mxu0 0.0
    %2532 = vmatprep.subr.mxu0 0.0
    %2533 = vmatpush1.msra.mxu0 0.0
    %2534 = vmatprep.subr.mxu0 0.0
    %2535 = vmatpush1.msra.mxu0 0.0
    %2536 = vmatprep.subr.mxu0 0.0
    %2537 = vmatpush1.msra.mxu0 0.0
    %2538 = vmatprep.subr.mxu0 0.0
    %2539 = vmatpush1.msra.mxu0 0.0
    %2540 = vmatprep.subr.mxu0 0.0
    %2541 = vmatpush1.msra.mxu0 0.0
    %2542 = vmatprep.subr.mxu0 0.0
    %2543 = vmatpush1.msra.mxu0 0.0
    %2544 = vmatprep.subr.mxu0 0.0
    %2545 = vmatpush1.msra.mxu0 0.0
    %2546 = vmatprep.subr.mxu0 0.0
    %2547 = vmatpush1.msra.mxu0 0.0
    %2548 = vmatprep.subr.mxu0 0.0
    %2549 = vmatpush1.msra.mxu0 0.0
    %2550 = vmatprep.subr.mxu0 0.0
    %2551 = vmatpush1.msra.mxu0 0.0
    %2552 = vmatprep.subr.mxu0 0.0
    %2553 = vmatpush1.msra.mxu0 0.0
    %2554 = vmatprep.subr.mxu0 0.0
    %2555 = vmatpush1.msra.mxu0 0.0
    %2556 = vmatprep.subr.mxu0 0.0
    %2557 = vmatpush1.msra.mxu0 0.0
    %2558 = vmatprep.subr.mxu0 0.0
    %2559 = vmatpush1.msra.mxu0 0.0
    %2560 = vmatprep.subr.mxu0 0.0
    %2561 = vmatpush1.msra.mxu0 0.0
    %2562 = vmatprep.subr.mxu0 0.0
    %2563 = vmatpush1.msra.mxu0 0.0
    %2564 = vmatprep.subr.mxu0 0.0
    %2565 = vmatpush1.msra.mxu0 0.0
    %2566 = vmatprep.subr.mxu0 0.0
    %2567 = vmatpush1.msra.mxu0 0.0
    %2568 = vmatprep.subr.mxu0 0.0
    %2569 = vmatpush1.msra.mxu0 0.0
    %2570 = vmatprep.subr.mxu0 0.0
    %2571 = vmatpush1.msra.mxu0 0.0
    %2572 = vmatprep.subr.mxu0 0.0
    %2573 = vmatpush1.msra.mxu0 0.0
    %2574 = vmatprep.subr.mxu0 0.0
    %2575 = vmatpush1.msra.mxu0 0.0
    %2576 = vmatprep.subr.mxu0 0.0
    %2577 = vmatpush1.msra.mxu0 0.0
    %2578 = vmatprep.subr.mxu0 0.0
    %2579 = vmatpush1.msra.mxu0 0.0
    %2580 = vmatprep.subr.mxu0 0.0
    %2581 = vmatpush1.msra.mxu0 0.0
    %2582 = vmatprep.mubr.f32.mxu0 0.0
    %2583 = vmatmul.mubr.f32.gmra.mrb[0].mxu0 %v1850
    %v2584 = vpop.f32.mrb[0].mxu0
    %v2585 = vadd.f32 %v2517, %v2584
    %v2586 = vpop.f32.mrb[0].mxu0
    %2587 = vmatprep.mubr.f32.mxu0 0.0
    %2588 = vmatmul.mubr.f32.gmra.mrb[0].mxu0 %v1853
    %v2589 = vpop.f32.mrb[0].mxu0
    %v2590 = vadd.f32 %v2517, %v2589
    %v2591 = vpop.f32.mrb[0].mxu0
    %2592 = vdwg.mxu0
    %s2593 = scalar_lea.vmem %s5, 352
    %v2594 = vld [vmem:[%s2593] sm:$0xff]
    %v2595 = vld [vmem:[%s2593 + $0x8] sm:$0xff]
    %v2596 = vld [vmem:[%s2593 + $0x10] sm:$0xff]
    %v2597 = vld [vmem:[%s2593 + $0x18] sm:$0xff]
    %v2598 = vld [vmem:[%s1843 + $0x5] sm:$0x1]
    %v2599 = vlaneseq
    %v2600 = vshrl.u32 %v2599, 7
    %v2601 = vsub.s32 0, %v2600
    %v2602 = vrot.slane %v2598, %v2601
    %2603 = vmatprep.subr.mxu0 0.0
    %2604 = vmatpush1.msra.mxu0 %v2594
    %2605 = vmatprep.subr.mxu0 0.0
    %2606 = vmatpush1.msra.mxu0 %v2595
    %2607 = vmatprep.subr.mxu0 0.0
    %2608 = vmatpush1.msra.mxu0 %v2596
    %2609 = vmatprep.subr.mxu0 0.0
    %2610 = vmatpush1.msra.mxu0 %v2597
    %2611 = vmatprep.subr.mxu0 0.0
    %2612 = vmatpush1.msra.mxu0 0.0
    %2613 = vmatprep.subr.mxu0 0.0
    %2614 = vmatpush1.msra.mxu0 0.0
    %2615 = vmatprep.subr.mxu0 0.0
    %2616 = vmatpush1.msra.mxu0 0.0
    %2617 = vmatprep.subr.mxu0 0.0
    %2618 = vmatpush1.msra.mxu0 0.0
    %2619 = vmatprep.subr.mxu0 0.0
    %2620 = vmatpush1.msra.mxu0 0.0
    %2621 = vmatprep.subr.mxu0 0.0
    %2622 = vmatpush1.msra.mxu0 0.0
    %2623 = vmatprep.subr.mxu0 0.0
    %2624 = vmatpush1.msra.mxu0 0.0
    %2625 = vmatprep.subr.mxu0 0.0
    %2626 = vmatpush1.msra.mxu0 0.0
    %2627 = vmatprep.subr.mxu0 0.0
    %2628 = vmatpush1.msra.mxu0 0.0
    %2629 = vmatprep.subr.mxu0 0.0
    %2630 = vmatpush1.msra.mxu0 0.0
    %2631 = vmatprep.subr.mxu0 0.0
    %2632 = vmatpush1.msra.mxu0 0.0
    %2633 = vmatprep.subr.mxu0 0.0
    %2634 = vmatpush1.msra.mxu0 0.0
    %2635 = vmatprep.subr.mxu0 0.0
    %2636 = vmatpush1.msra.mxu0 0.0
    %2637 = vmatprep.subr.mxu0 0.0
    %2638 = vmatpush1.msra.mxu0 0.0
    %2639 = vmatprep.subr.mxu0 0.0
    %2640 = vmatpush1.msra.mxu0 0.0
    %2641 = vmatprep.subr.mxu0 0.0
    %2642 = vmatpush1.msra.mxu0 0.0
    %2643 = vmatprep.subr.mxu0 0.0
    %2644 = vmatpush1.msra.mxu0 0.0
    %2645 = vmatprep.subr.mxu0 0.0
    %2646 = vmatpush1.msra.mxu0 0.0
    %2647 = vmatprep.subr.mxu0 0.0
    %2648 = vmatpush1.msra.mxu0 0.0
    %2649 = vmatprep.subr.mxu0 0.0
    %2650 = vmatpush1.msra.mxu0 0.0
    %2651 = vmatprep.subr.mxu0 0.0
    %2652 = vmatpush1.msra.mxu0 0.0
    %2653 = vmatprep.subr.mxu0 0.0
    %2654 = vmatpush1.msra.mxu0 0.0
    %2655 = vmatprep.subr.mxu0 0.0
    %2656 = vmatpush1.msra.mxu0 0.0
    %2657 = vmatprep.subr.mxu0 0.0
    %2658 = vmatpush1.msra.mxu0 0.0
    %2659 = vmatprep.subr.mxu0 0.0
    %2660 = vmatpush1.msra.mxu0 0.0
    %2661 = vmatprep.subr.mxu0 0.0
    %2662 = vmatpush1.msra.mxu0 0.0
    %2663 = vmatprep.subr.mxu0 0.0
    %2664 = vmatpush1.msra.mxu0 0.0
    %2665 = vmatprep.subr.mxu0 0.0
    %2666 = vmatpush1.msra.mxu0 0.0
    %2667 = vmatprep.mubr.f32.mxu0 0.0
    %2668 = vmatmul.mubr.f32.gmra.mrb[0].mxu0 %v1850
    %v2669 = vpop.f32.mrb[0].mxu0
    %v2670 = vadd.f32 %v2602, %v2669
    %v2671 = vpop.f32.mrb[0].mxu0
    %2672 = vmatprep.mubr.f32.mxu0 0.0
    %2673 = vmatmul.mubr.f32.gmra.mrb[0].mxu0 %v1853
    %v2674 = vpop.f32.mrb[0].mxu0
    %v2675 = vadd.f32 %v2602, %v2674
    %v2676 = vpop.f32.mrb[0].mxu0
    %2677 = vdwg.mxu0
    %v2679 = vsel %vm57, %v2500, 0
    %v2682 = vsel %vm57, %v2585, 0
    %2684 = vmatprep.subr.mxu0 0.0
    %2685 = vmatpush1.xpose.msra.mxu0 %v2682
    %2686 = vmatprep.subr.mxu0 0.0
    %2687 = vmatpush1.xpose.msra.mxu0 0.0
    %2688 = vmatprep.subr.mxu0 0.0
    %2689 = vmatpush1.xpose.msra.mxu0 0.0
    %2690 = vmatprep.subr.mxu0 0.0
    %2691 = vmatpush1.xpose.msra.mxu0 0.0
    %2692 = vmatprep.subr.mxu0 0.0
    %2693 = vmatpush1.xpose.msra.mxu0 0.0
    %2694 = vmatprep.subr.mxu0 0.0
    %2695 = vmatpush1.xpose.msra.mxu0 0.0
    %2696 = vmatprep.subr.mxu0 0.0
    %2697 = vmatpush1.xpose.msra.mxu0 0.0
    %2698 = vmatprep.subr.mxu0 0.0
    %2699 = vmatpush1.xpose.msra.mxu0 0.0
    %2700 = vmatprep.subr.mxu0 0.0
    %2701 = vmatpush1.xpose.msra.mxu0 0.0
    %2702 = vmatprep.subr.mxu0 0.0
    %2703 = vmatpush1.xpose.msra.mxu0 0.0
    %2704 = vmatprep.subr.mxu0 0.0
    %2705 = vmatpush1.xpose.msra.mxu0 0.0
    %2706 = vmatprep.subr.mxu0 0.0
    %2707 = vmatpush1.xpose.msra.mxu0 0.0
    %2708 = vmatprep.subr.mxu0 0.0
    %2709 = vmatpush1.xpose.msra.mxu0 0.0
    %2710 = vmatprep.subr.mxu0 0.0
    %2711 = vmatpush1.xpose.msra.mxu0 0.0
    %2712 = vmatprep.subr.mxu0 0.0
    %2713 = vmatpush1.xpose.msra.mxu0 0.0
    %2714 = vmatprep.subr.mxu0 0.0
    %2715 = vmatpush1.xpose.msra.mxu0 0.0
    %2716 = vmatprep.subr.mxu0 0.0
    %2717 = vmatpush1.xpose.msra.mxu0 0.0
    %2718 = vmatprep.subr.mxu0 0.0
    %2719 = vmatpush1.xpose.msra.mxu0 0.0
    %2720 = vmatprep.subr.mxu0 0.0
    %2721 = vmatpush1.xpose.msra.mxu0 0.0
    %2722 = vmatprep.subr.mxu0 0.0
    %2723 = vmatpush1.xpose.msra.mxu0 0.0
    %2724 = vmatprep.subr.mxu0 0.0
    %2725 = vmatpush1.xpose.msra.mxu0 0.0
    %2726 = vmatprep.subr.mxu0 0.0
    %2727 = vmatpush1.xpose.msra.mxu0 0.0
    %2728 = vmatprep.subr.mxu0 0.0
    %2729 = vmatpush1.xpose.msra.mxu0 0.0
    %2730 = vmatprep.subr.mxu0 0.0
    %2731 = vmatpush1.xpose.msra.mxu0 0.0
    %2732 = vmatprep.subr.mxu0 0.0
    %2733 = vmatpush1.xpose.msra.mxu0 0.0
    %2734 = vmatprep.subr.mxu0 0.0
    %2735 = vmatpush1.xpose.msra.mxu0 0.0
    %2736 = vmatprep.subr.mxu0 0.0
    %2737 = vmatpush1.xpose.msra.mxu0 0.0
    %2738 = vmatprep.subr.mxu0 0.0
    %2739 = vmatpush1.xpose.msra.mxu0 0.0
    %2740 = vmatprep.subr.mxu0 0.0
    %2741 = vmatpush1.xpose.msra.mxu0 0.0
    %2742 = vmatprep.subr.mxu0 0.0
    %2743 = vmatpush1.xpose.msra.mxu0 0.0
    %2744 = vmatprep.subr.mxu0 0.0
    %2745 = vmatpush1.xpose.msra.mxu0 0.0
    %2746 = vmatprep.subr.mxu0 0.0
    %2747 = vmatpush1.xpose.msra.mxu0 0.0
    %2748 = vmatprep.mubr.f32.mxu0 0.0
    %2749 = vmatmul.mubr.f32.gmra.mrb[0].mxu0 %v2679
    %v2750 = vpop.f32.mrb[0].mxu0
    %v2751 = vadd.f32 0.0, %v2750
    %v2752 = vpop.f32.mrb[0].mxu0
    %2753 = vdwg.mxu0
    %v2755 = vsel %vm57, %v2505, 0
    %v2758 = vsel %vm57, %v2590, 0
    %2760 = vmatprep.subr.mxu0 0.0
    %2761 = vmatpush1.xpose.msra.mxu0 %v2758
    %2762 = vmatprep.subr.mxu0 0.0
    %2763 = vmatpush1.xpose.msra.mxu0 0.0
    %2764 = vmatprep.subr.mxu0 0.0
    %2765 = vmatpush1.xpose.msra.mxu0 0.0
    %2766 = vmatprep.subr.mxu0 0.0
    %2767 = vmatpush1.xpose.msra.mxu0 0.0
    %2768 = vmatprep.subr.mxu0 0.0
    %2769 = vmatpush1.xpose.msra.mxu0 0.0
    %2770 = vmatprep.subr.mxu0 0.0
    %2771 = vmatpush1.xpose.msra.mxu0 0.0
    %2772 = vmatprep.subr.mxu0 0.0
    %2773 = vmatpush1.xpose.msra.mxu0 0.0
    %2774 = vmatprep.subr.mxu0 0.0
    %2775 = vmatpush1.xpose.msra.mxu0 0.0
    %2776 = vmatprep.subr.mxu0 0.0
    %2777 = vmatpush1.xpose.msra.mxu0 0.0
    %2778 = vmatprep.subr.mxu0 0.0
    %2779 = vmatpush1.xpose.msra.mxu0 0.0
    %2780 = vmatprep.subr.mxu0 0.0
    %2781 = vmatpush1.xpose.msra.mxu0 0.0
    %2782 = vmatprep.subr.mxu0 0.0
    %2783 = vmatpush1.xpose.msra.mxu0 0.0
    %2784 = vmatprep.subr.mxu0 0.0
    %2785 = vmatpush1.xpose.msra.mxu0 0.0
    %2786 = vmatprep.subr.mxu0 0.0
    %2787 = vmatpush1.xpose.msra.mxu0 0.0
    %2788 = vmatprep.subr.mxu0 0.0
    %2789 = vmatpush1.xpose.msra.mxu0 0.0
    %2790 = vmatprep.subr.mxu0 0.0
    %2791 = vmatpush1.xpose.msra.mxu0 0.0
    %2792 = vmatprep.subr.mxu0 0.0
    %2793 = vmatpush1.xpose.msra.mxu0 0.0
    %2794 = vmatprep.subr.mxu0 0.0
    %2795 = vmatpush1.xpose.msra.mxu0 0.0
    %2796 = vmatprep.subr.mxu0 0.0
    %2797 = vmatpush1.xpose.msra.mxu0 0.0
    %2798 = vmatprep.subr.mxu0 0.0
    %2799 = vmatpush1.xpose.msra.mxu0 0.0
    %2800 = vmatprep.subr.mxu0 0.0
    %2801 = vmatpush1.xpose.msra.mxu0 0.0
    %2802 = vmatprep.subr.mxu0 0.0
    %2803 = vmatpush1.xpose.msra.mxu0 0.0
    %2804 = vmatprep.subr.mxu0 0.0
    %2805 = vmatpush1.xpose.msra.mxu0 0.0
    %2806 = vmatprep.subr.mxu0 0.0
    %2807 = vmatpush1.xpose.msra.mxu0 0.0
    %2808 = vmatprep.subr.mxu0 0.0
    %2809 = vmatpush1.xpose.msra.mxu0 0.0
    %2810 = vmatprep.subr.mxu0 0.0
    %2811 = vmatpush1.xpose.msra.mxu0 0.0
    %2812 = vmatprep.subr.mxu0 0.0
    %2813 = vmatpush1.xpose.msra.mxu0 0.0
    %2814 = vmatprep.subr.mxu0 0.0
    %2815 = vmatpush1.xpose.msra.mxu0 0.0
    %2816 = vmatprep.subr.mxu0 0.0
    %2817 = vmatpush1.xpose.msra.mxu0 0.0
    %2818 = vmatprep.subr.mxu0 0.0
    %2819 = vmatpush1.xpose.msra.mxu0 0.0
    %2820 = vmatprep.subr.mxu0 0.0
    %2821 = vmatpush1.xpose.msra.mxu0 0.0
    %2822 = vmatprep.subr.mxu0 0.0
    %2823 = vmatpush1.xpose.msra.mxu0 0.0
    %2824 = vmatprep.mubr.f32.mxu0 0.0
    %2825 = vmatmul.mubr.f32.gmra.mrb[0].mxu0 %v2755
    %v2826 = vpop.f32.mrb[0].mxu0
    %v2827 = vadd.f32 0.0, %v2826
    %v2828 = vpop.f32.mrb[0].mxu0
    %2829 = vdwg.mxu0
    %v2830 = vsel %vm648, %v2751, -inf
    %2831 = vmax.xlane.f32.xlu0 %v2830
    %v2832 = vpop.xlane.xlu0 %2831
    %v2833 = vsel %vm648, %v2827, -inf
    %2834 = vmax.xlane.f32.xlu0 %v2833
    %v2835 = vpop.xlane.xlu0 %2834
    %v2836 = vsub.f32 %v2751, %v2832
    %v2837 = vsub.f32 %v2827, %v2835
    %v2838 = vmul.f32 %v2836, 1.442695
    %v2839 = vpow.pop %v2838
    %v2840 = vmul.f32 %v2837, 1.442695
    %v2841 = vpow.pop %v2840
    %v2842 = vsel %vm648, %v2839, 0.0
    %2843 = vadd.xlane.f32.xlu0 %v2842
    %v2844 = vpop.xlane.xlu0 %2843
    %v2845 = vsel %vm648, %v2841, 0.0
    %2846 = vadd.xlane.f32.xlu0 %v2845
    %v2847 = vpop.xlane.xlu0 %2846
    %v2849 = vsel %vm648, %v2839, 0
    %2851 = vmatprep.subr.mxu0 0.0
    %2852 = vmatpush1.msra.mxu0 %v2670
    %2853 = vmatprep.subr.mxu0 0.0
    %2854 = vmatpush1.msra.mxu0 0.0
    %2855 = vmatprep.subr.mxu0 0.0
    %2856 = vmatpush1.msra.mxu0 0.0
    %2857 = vmatprep.subr.mxu0 0.0
    %2858 = vmatpush1.msra.mxu0 0.0
    %2859 = vmatprep.subr.mxu0 0.0
    %2860 = vmatpush1.msra.mxu0 0.0
    %2861 = vmatprep.subr.mxu0 0.0
    %2862 = vmatpush1.msra.mxu0 0.0
    %2863 = vmatprep.subr.mxu0 0.0
    %2864 = vmatpush1.msra.mxu0 0.0
    %2865 = vmatprep.subr.mxu0 0.0
    %2866 = vmatpush1.msra.mxu0 0.0
    %2867 = vmatprep.subr.mxu0 0.0
    %2868 = vmatpush1.msra.mxu0 0.0
    %2869 = vmatprep.subr.mxu0 0.0
    %2870 = vmatpush1.msra.mxu0 0.0
    %2871 = vmatprep.subr.mxu0 0.0
    %2872 = vmatpush1.msra.mxu0 0.0
    %2873 = vmatprep.subr.mxu0 0.0
    %2874 = vmatpush1.msra.mxu0 0.0
    %2875 = vmatprep.subr.mxu0 0.0
    %2876 = vmatpush1.msra.mxu0 0.0
    %2877 = vmatprep.subr.mxu0 0.0
    %2878 = vmatpush1.msra.mxu0 0.0
    %2879 = vmatprep.subr.mxu0 0.0
    %2880 = vmatpush1.msra.mxu0 0.0
    %2881 = vmatprep.subr.mxu0 0.0
    %2882 = vmatpush1.msra.mxu0 0.0
    %2883 = vmatprep.subr.mxu0 0.0
    %2884 = vmatpush1.msra.mxu0 0.0
    %2885 = vmatprep.subr.mxu0 0.0
    %2886 = vmatpush1.msra.mxu0 0.0
    %2887 = vmatprep.subr.mxu0 0.0
    %2888 = vmatpush1.msra.mxu0 0.0
    %2889 = vmatprep.subr.mxu0 0.0
    %2890 = vmatpush1.msra.mxu0 0.0
    %2891 = vmatprep.subr.mxu0 0.0
    %2892 = vmatpush1.msra.mxu0 0.0
    %2893 = vmatprep.subr.mxu0 0.0
    %2894 = vmatpush1.msra.mxu0 0.0
    %2895 = vmatprep.subr.mxu0 0.0
    %2896 = vmatpush1.msra.mxu0 0.0
    %2897 = vmatprep.subr.mxu0 0.0
    %2898 = vmatpush1.msra.mxu0 0.0
    %2899 = vmatprep.subr.mxu0 0.0
    %2900 = vmatpush1.msra.mxu0 0.0
    %2901 = vmatprep.subr.mxu0 0.0
    %2902 = vmatpush1.msra.mxu0 0.0
    %2903 = vmatprep.subr.mxu0 0.0
    %2904 = vmatpush1.msra.mxu0 0.0
    %2905 = vmatprep.subr.mxu0 0.0
    %2906 = vmatpush1.msra.mxu0 0.0
    %2907 = vmatprep.subr.mxu0 0.0
    %2908 = vmatpush1.msra.mxu0 0.0
    %2909 = vmatprep.subr.mxu0 0.0
    %2910 = vmatpush1.msra.mxu0 0.0
    %2911 = vmatprep.subr.mxu0 0.0
    %2912 = vmatpush1.msra.mxu0 0.0
    %2913 = vmatprep.subr.mxu0 0.0
    %2914 = vmatpush1.msra.mxu0 0.0
    %2915 = vmatprep.mubr.f32.mxu0 0.0
    %2916 = vmatmul.mubr.f32.gmra.mrb[0].mxu0 %v2849
    %v2917 = vpop.f32.mrb[0].mxu0
    %v2918 = vadd.f32 0.0, %v2917
    %v2919 = vpop.f32.mrb[0].mxu0
    %2920 = vdwg.mxu0
    %v2922 = vsel %vm648, %v2841, 0
    %2924 = vmatprep.subr.mxu0 0.0
    %2925 = vmatpush1.msra.mxu0 %v2675
    %2926 = vmatprep.subr.mxu0 0.0
    %2927 = vmatpush1.msra.mxu0 0.0
    %2928 = vmatprep.subr.mxu0 0.0
    %2929 = vmatpush1.msra.mxu0 0.0
    %2930 = vmatprep.subr.mxu0 0.0
    %2931 = vmatpush1.msra.mxu0 0.0
    %2932 = vmatprep.subr.mxu0 0.0
    %2933 = vmatpush1.msra.mxu0 0.0
    %2934 = vmatprep.subr.mxu0 0.0
    %2935 = vmatpush1.msra.mxu0 0.0
    %2936 = vmatprep.subr.mxu0 0.0
    %2937 = vmatpush1.msra.mxu0 0.0
    %2938 = vmatprep.subr.mxu0 0.0
    %2939 = vmatpush1.msra.mxu0 0.0
    %2940 = vmatprep.subr.mxu0 0.0
    %2941 = vmatpush1.msra.mxu0 0.0
    %2942 = vmatprep.subr.mxu0 0.0
    %2943 = vmatpush1.msra.mxu0 0.0
    %2944 = vmatprep.subr.mxu0 0.0
    %2945 = vmatpush1.msra.mxu0 0.0
    %2946 = vmatprep.subr.mxu0 0.0
    %2947 = vmatpush1.msra.mxu0 0.0
    %2948 = vmatprep.subr.mxu0 0.0
    %2949 = vmatpush1.msra.mxu0 0.0
    %2950 = vmatprep.subr.mxu0 0.0
    %2951 = vmatpush1.msra.mxu0 0.0
    %2952 = vmatprep.subr.mxu0 0.0
    %2953 = vmatpush1.msra.mxu0 0.0
    %2954 = vmatprep.subr.mxu0 0.0
    %2955 = vmatpush1.msra.mxu0 0.0
    %2956 = vmatprep.subr.mxu0 0.0
    %2957 = vmatpush1.msra.mxu0 0.0
    %2958 = vmatprep.subr.mxu0 0.0
    %2959 = vmatpush1.msra.mxu0 0.0
    %2960 = vmatprep.subr.mxu0 0.0
    %2961 = vmatpush1.msra.mxu0 0.0
    %2962 = vmatprep.subr.mxu0 0.0
    %2963 = vmatpush1.msra.mxu0 0.0
    %2964 = vmatprep.subr.mxu0 0.0
    %2965 = vmatpush1.msra.mxu0 0.0
    %2966 = vmatprep.subr.mxu0 0.0
    %2967 = vmatpush1.msra.mxu0 0.0
    %2968 = vmatprep.subr.mxu0 0.0
    %2969 = vmatpush1.msra.mxu0 0.0
    %2970 = vmatprep.subr.mxu0 0.0
    %2971 = vmatpush1.msra.mxu0 0.0
    %2972 = vmatprep.subr.mxu0 0.0
    %2973 = vmatpush1.msra.mxu0 0.0
    %2974 = vmatprep.subr.mxu0 0.0
    %2975 = vmatpush1.msra.mxu0 0.0
    %2976 = vmatprep.subr.mxu0 0.0
    %2977 = vmatpush1.msra.mxu0 0.0
    %2978 = vmatprep.subr.mxu0 0.0
    %2979 = vmatpush1.msra.mxu0 0.0
    %2980 = vmatprep.subr.mxu0 0.0
    %2981 = vmatpush1.msra.mxu0 0.0
    %2982 = vmatprep.subr.mxu0 0.0
    %2983 = vmatpush1.msra.mxu0 0.0
    %2984 = vmatprep.subr.mxu0 0.0
    %2985 = vmatpush1.msra.mxu0 0.0
    %2986 = vmatprep.subr.mxu0 0.0
    %2987 = vmatpush1.msra.mxu0 0.0
    %2988 = vmatprep.mubr.f32.mxu0 0.0
    %2989 = vmatmul.mubr.f32.gmra.mrb[0].mxu0 %v2922
    %v2990 = vpop.f32.mrb[0].mxu0
    %v2991 = vadd.f32 0.0, %v2990
    %v2992 = vpop.f32.mrb[0].mxu0
    %2993 = vdwg.mxu0
    %v2994 = vrcp.pop %v2844
    %v2995 = vmul.f32 %v2918, %v2994
    %v2996 = vrcp.pop %v2847
    %v2997 = vmul.f32 %v2991, %v2996
    %s2998 = scalar_lea.vmem %s7, 48
    %v2999 = vld [vmem:[%s2998] sm:$0xff]
    %v3000 = vld [vmem:[%s2998 + $0x8] sm:$0xff]
    %v3002 = vsel %vm57, %v2995, 0
    %v3005 = vsel %vm57, %v2997, 0
    %3007 = vmatprep.subr.mxu0 0.0
    %3008 = vmatpush1.msra.mxu0 %v2999
    %3009 = vmatprep.subr.mxu0 0.0
    %3010 = vmatpush1.msra.mxu0 %v3000
    %3011 = vmatprep.subr.mxu0 0.0
    %3012 = vmatpush1.msra.mxu0 0.0
    %3013 = vmatprep.subr.mxu0 0.0
    %3014 = vmatpush1.msra.mxu0 0.0
    %3015 = vmatprep.subr.mxu0 0.0
    %3016 = vmatpush1.msra.mxu0 0.0
    %3017 = vmatprep.subr.mxu0 0.0
    %3018 = vmatpush1.msra.mxu0 0.0
    %3019 = vmatprep.subr.mxu0 0.0
    %3020 = vmatpush1.msra.mxu0 0.0
    %3021 = vmatprep.subr.mxu0 0.0
    %3022 = vmatpush1.msra.mxu0 0.0
    %3023 = vmatprep.subr.mxu0 0.0
    %3024 = vmatpush1.msra.mxu0 0.0
    %3025 = vmatprep.subr.mxu0 0.0
    %3026 = vmatpush1.msra.mxu0 0.0
    %3027 = vmatprep.subr.mxu0 0.0
    %3028 = vmatpush1.msra.mxu0 0.0
    %3029 = vmatprep.subr.mxu0 0.0
    %3030 = vmatpush1.msra.mxu0 0.0
    %3031 = vmatprep.subr.mxu0 0.0
    %3032 = vmatpush1.msra.mxu0 0.0
    %3033 = vmatprep.subr.mxu0 0.0
    %3034 = vmatpush1.msra.mxu0 0.0
    %3035 = vmatprep.subr.mxu0 0.0
    %3036 = vmatpush1.msra.mxu0 0.0
    %3037 = vmatprep.subr.mxu0 0.0
    %3038 = vmatpush1.msra.mxu0 0.0
    %3039 = vmatprep.subr.mxu0 0.0
    %3040 = vmatpush1.msra.mxu0 0.0
    %3041 = vmatprep.subr.mxu0 0.0
    %3042 = vmatpush1.msra.mxu0 0.0
    %3043 = vmatprep.subr.mxu0 0.0
    %3044 = vmatpush1.msra.mxu0 0.0
    %3045 = vmatprep.subr.mxu0 0.0
    %3046 = vmatpush1.msra.mxu0 0.0
    %3047 = vmatprep.subr.mxu0 0.0
    %3048 = vmatpush1.msra.mxu0 0.0
    %3049 = vmatprep.subr.mxu0 0.0
    %3050 = vmatpush1.msra.mxu0 0.0
    %3051 = vmatprep.subr.mxu0 0.0
    %3052 = vmatpush1.msra.mxu0 0.0
    %3053 = vmatprep.subr.mxu0 0.0
    %3054 = vmatpush1.msra.mxu0 0.0
    %3055 = vmatprep.subr.mxu0 0.0
    %3056 = vmatpush1.msra.mxu0 0.0
    %3057 = vmatprep.subr.mxu0 0.0
    %3058 = vmatpush1.msra.mxu0 0.0
    %3059 = vmatprep.subr.mxu0 0.0
    %3060 = vmatpush1.msra.mxu0 0.0
    %3061 = vmatprep.subr.mxu0 0.0
    %3062 = vmatpush1.msra.mxu0 0.0
    %3063 = vmatprep.subr.mxu0 0.0
    %3064 = vmatpush1.msra.mxu0 0.0
    %3065 = vmatprep.subr.mxu0 0.0
    %3066 = vmatpush1.msra.mxu0 0.0
    %3067 = vmatprep.subr.mxu0 0.0
    %3068 = vmatpush1.msra.mxu0 0.0
    %3069 = vmatprep.subr.mxu0 0.0
    %3070 = vmatpush1.msra.mxu0 0.0
    %3071 = vmatprep.mubr.f32.mxu0 0.0
    %3072 = vmatmul.mubr.f32.gmra.mrb[0].mxu0 %v3002
    %v3073 = vpop.f32.mrb[0].mxu0
    %v3074 = vadd.f32 0.0, %v3073
    %v3075 = vpop.f32.mrb[0].mxu0
    %3076 = vmatprep.mubr.f32.mxu0 0.0
    %3077 = vmatmul.mubr.f32.gmra.mrb[0].mxu0 %v3005
    %v3078 = vpop.f32.mrb[0].mxu0
    %v3079 = vadd.f32 0.0, %v3078
    %v3080 = vpop.f32.mrb[0].mxu0
    %3081 = vdwg.mxu0
    %v3083 = vsel %vm57, %v2417, 0
    %v3086 = vsel %vm57, %v2419, 0
    %3088 = vmatprep.subr.mxu0 0.0
    %3089 = vmatpush1.msra.mxu0 %v2421
    %3090 = vmatprep.subr.mxu0 0.0
    %3091 = vmatpush1.msra.mxu0 %v2422
    %3092 = vmatprep.subr.mxu0 0.0
    %3093 = vmatpush1.msra.mxu0 0.0
    %3094 = vmatprep.subr.mxu0 0.0
    %3095 = vmatpush1.msra.mxu0 0.0
    %3096 = vmatprep.subr.mxu0 0.0
    %3097 = vmatpush1.msra.mxu0 0.0
    %3098 = vmatprep.subr.mxu0 0.0
    %3099 = vmatpush1.msra.mxu0 0.0
    %3100 = vmatprep.subr.mxu0 0.0
    %3101 = vmatpush1.msra.mxu0 0.0
    %3102 = vmatprep.subr.mxu0 0.0
    %3103 = vmatpush1.msra.mxu0 0.0
    %3104 = vmatprep.subr.mxu0 0.0
    %3105 = vmatpush1.msra.mxu0 0.0
    %3106 = vmatprep.subr.mxu0 0.0
    %3107 = vmatpush1.msra.mxu0 0.0
    %3108 = vmatprep.subr.mxu0 0.0
    %3109 = vmatpush1.msra.mxu0 0.0
    %3110 = vmatprep.subr.mxu0 0.0
    %3111 = vmatpush1.msra.mxu0 0.0
    %3112 = vmatprep.subr.mxu0 0.0
    %3113 = vmatpush1.msra.mxu0 0.0
    %3114 = vmatprep.subr.mxu0 0.0
    %3115 = vmatpush1.msra.mxu0 0.0
    %3116 = vmatprep.subr.mxu0 0.0
    %3117 = vmatpush1.msra.mxu0 0.0
    %3118 = vmatprep.subr.mxu0 0.0
    %3119 = vmatpush1.msra.mxu0 0.0
    %3120 = vmatprep.subr.mxu0 0.0
    %3121 = vmatpush1.msra.mxu0 0.0
    %3122 = vmatprep.subr.mxu0 0.0
    %3123 = vmatpush1.msra.mxu0 0.0
    %3124 = vmatprep.subr.mxu0 0.0
    %3125 = vmatpush1.msra.mxu0 0.0
    %3126 = vmatprep.subr.mxu0 0.0
    %3127 = vmatpush1.msra.mxu0 0.0
    %3128 = vmatprep.subr.mxu0 0.0
    %3129 = vmatpush1.msra.mxu0 0.0
    %3130 = vmatprep.subr.mxu0 0.0
    %3131 = vmatpush1.msra.mxu0 0.0
    %3132 = vmatprep.subr.mxu0 0.0
    %3133 = vmatpush1.msra.mxu0 0.0
    %3134 = vmatprep.subr.mxu0 0.0
    %3135 = vmatpush1.msra.mxu0 0.0
    %3136 = vmatprep.subr.mxu0 0.0
    %3137 = vmatpush1.msra.mxu0 0.0
    %3138 = vmatprep.subr.mxu0 0.0
    %3139 = vmatpush1.msra.mxu0 0.0
    %3140 = vmatprep.subr.mxu0 0.0
    %3141 = vmatpush1.msra.mxu0 0.0
    %3142 = vmatprep.subr.mxu0 0.0
    %3143 = vmatpush1.msra.mxu0 0.0
    %3144 = vmatprep.subr.mxu0 0.0
    %3145 = vmatpush1.msra.mxu0 0.0
    %3146 = vmatprep.subr.mxu0 0.0
    %3147 = vmatpush1.msra.mxu0 0.0
    %3148 = vmatprep.subr.mxu0 0.0
    %3149 = vmatpush1.msra.mxu0 0.0
    %3150 = vmatprep.subr.mxu0 0.0
    %3151 = vmatpush1.msra.mxu0 0.0
    %3152 = vmatprep.mubr.f32.mxu0 0.0
    %3153 = vmatmul.mubr.f32.gmra.mrb[0].mxu0 %v3083
    %v3154 = vpop.f32.mrb[0].mxu0
    %v3155 = vadd.f32 %v3074, %v3154
    %v3156 = vpop.f32.mrb[0].mxu0
    %3157 = vmatprep.mubr.f32.mxu0 0.0
    %3158 = vmatmul.mubr.f32.gmra.mrb[0].mxu0 %v3086
    %v3159 = vpop.f32.mrb[0].mxu0
    %v3160 = vadd.f32 %v3079, %v3159
    %v3161 = vpop.f32.mrb[0].mxu0
    %3162 = vdwg.mxu0
    %s3163 = scalar_lea.vmem %s10, 8
    %v3164 = vld [vmem:[%s3163] sm:$0x1]
    %v3165 = vlaneseq
    %v3166 = vshrl.u32 %v3165, 7
    %v3167 = vsub.s32 0, %v3166
    %v3168 = vrot.slane %v3164, %v3167
    %v3169 = vadd.f32 %v3155, %v3168
    %v3170 = vadd.f32 %v3160, %v3168
    %v3171 = vadd.f32 %v1836, %v3169
    %v3172 = vadd.f32 %v1837, %v3170
    %v3173 = vld [vmem:[%s3163 + $0x1] sm:$0x1]
    %v3174 = vld [vmem:[%s3163 + $0x2] sm:$0x1]
    %v3175 = vsel %vm150, %v3171, 0.0
    %3176 = vadd.xlane.f32.xlu0 %v3175
    %v3177 = vpop.xlane.xlu0 %3176
    %v3178 = vsel %vm150, %v3172, 0.0
    %3179 = vadd.xlane.f32.xlu0 %v3178
    %v3180 = vpop.xlane.xlu0 %3179
    %v3181 = vmul.f32 %v3177, %v1576
    %v3182 = vmul.f32 %v3180, %v1576
    %v3183 = vsub.f32 %v3171, %v3181
    %v3184 = vsub.f32 %v3172, %v3182
    %v3185 = vmul.f32 %v3183, %v3183
    %v3186 = vmul.f32 %v3184, %v3184
    %v3187 = vsel %vm150, %v3185, 0.0
    %3188 = vadd.xlane.f32.xlu0 %v3187
    %v3189 = vpop.xlane.xlu0 %3188
    %v3190 = vsel %vm150, %v3186, 0.0
    %3191 = vadd.xlane.f32.xlu0 %v3190
    %v3192 = vpop.xlane.xlu0 %3191
    %v3193 = vmul.f32 %v3189, %v1576
    %v3194 = vmul.f32 %v3192, %v1576
    %v3195 = vadd.f32 %v3193, 1e-05
    %v3196 = vadd.f32 %v3194, 1e-05
    %v3197 = vrsqrt.pop %v3195
    %v3198 = vrsqrt.pop %v3196
    %v3199 = vmul.f32 %v3183, %v3197
    %v3200 = vmul.f32 %v3184, %v3198
    %v3201 = vlaneseq
    %v3202 = vshrl.u32 %v3201, 7
    %v3203 = vsub.s32 0, %v3202
    %v3204 = vrot.slane %v3173, %v3203
    %v3205 = vmul.f32 %v3199, %v3204
    %v3206 = vmul.f32 %v3200, %v3204
    %v3207 = vlaneseq
    %v3208 = vshrl.u32 %v3207, 7
    %v3209 = vsub.s32 0, %v3208
    %v3210 = vrot.slane %v3174, %v3209
    %v3211 = vadd.f32 %v3205, %v3210
    %v3212 = vadd.f32 %v3206, %v3210
    %s3213 = scalar_lea.vmem %s8, 32
    %v3214 = vld [vmem:[%s3213] sm:$0xff]
    %v3215 = vld [vmem:[%s3213 + $0x8] sm:$0xff]
    %v3216 = vld [vmem:[%s3213 + $0x10] sm:$0xff]
    %v3217 = vld [vmem:[%s3213 + $0x18] sm:$0xff]
    %v3218 = vld [vmem:[%s11 + $0x1] sm:$0x1]
    %v3219 = vlaneseq
    %v3220 = vshrl.u32 %v3219, 7
    %v3221 = vsub.s32 0, %v3220
    %v3222 = vrot.slane %v3218, %v3221
    %v3224 = vsel %vm150, %v3211, 0
    %v3227 = vsel %vm150, %v3212, 0
    %3229 = vmatprep.subr.mxu0 0.0
    %3230 = vmatpush1.msra.mxu0 %v3214
    %3231 = vmatprep.subr.mxu0 0.0
    %3232 = vmatpush1.msra.mxu0 %v3215
    %3233 = vmatprep.subr.mxu0 0.0
    %3234 = vmatpush1.msra.mxu0 %v3216
    %3235 = vmatprep.subr.mxu0 0.0
    %3236 = vmatpush1.msra.mxu0 %v3217
    %3237 = vmatprep.subr.mxu0 0.0
    %3238 = vmatpush1.msra.mxu0 0.0
    %3239 = vmatprep.subr.mxu0 0.0
    %3240 = vmatpush1.msra.mxu0 0.0
    %3241 = vmatprep.subr.mxu0 0.0
    %3242 = vmatpush1.msra.mxu0 0.0
    %3243 = vmatprep.subr.mxu0 0.0
    %3244 = vmatpush1.msra.mxu0 0.0
    %3245 = vmatprep.subr.mxu0 0.0
    %3246 = vmatpush1.msra.mxu0 0.0
    %3247 = vmatprep.subr.mxu0 0.0
    %3248 = vmatpush1.msra.mxu0 0.0
    %3249 = vmatprep.subr.mxu0 0.0
    %3250 = vmatpush1.msra.mxu0 0.0
    %3251 = vmatprep.subr.mxu0 0.0
    %3252 = vmatpush1.msra.mxu0 0.0
    %3253 = vmatprep.subr.mxu0 0.0
    %3254 = vmatpush1.msra.mxu0 0.0
    %3255 = vmatprep.subr.mxu0 0.0
    %3256 = vmatpush1.msra.mxu0 0.0
    %3257 = vmatprep.subr.mxu0 0.0
    %3258 = vmatpush1.msra.mxu0 0.0
    %3259 = vmatprep.subr.mxu0 0.0
    %3260 = vmatpush1.msra.mxu0 0.0
    %3261 = vmatprep.subr.mxu0 0.0
    %3262 = vmatpush1.msra.mxu0 0.0
    %3263 = vmatprep.subr.mxu0 0.0
    %3264 = vmatpush1.msra.mxu0 0.0
    %3265 = vmatprep.subr.mxu0 0.0
    %3266 = vmatpush1.msra.mxu0 0.0
    %3267 = vmatprep.subr.mxu0 0.0
    %3268 = vmatpush1.msra.mxu0 0.0
    %3269 = vmatprep.subr.mxu0 0.0
    %3270 = vmatpush1.msra.mxu0 0.0
    %3271 = vmatprep.subr.mxu0 0.0
    %3272 = vmatpush1.msra.mxu0 0.0
    %3273 = vmatprep.subr.mxu0 0.0
    %3274 = vmatpush1.msra.mxu0 0.0
    %3275 = vmatprep.subr.mxu0 0.0
    %3276 = vmatpush1.msra.mxu0 0.0
    %3277 = vmatprep.subr.mxu0 0.0
    %3278 = vmatpush1.msra.mxu0 0.0
    %3279 = vmatprep.subr.mxu0 0.0
    %3280 = vmatpush1.msra.mxu0 0.0
    %3281 = vmatprep.subr.mxu0 0.0
    %3282 = vmatpush1.msra.mxu0 0.0
    %3283 = vmatprep.subr.mxu0 0.0
    %3284 = vmatpush1.msra.mxu0 0.0
    %3285 = vmatprep.subr.mxu0 0.0
    %3286 = vmatpush1.msra.mxu0 0.0
    %3287 = vmatprep.subr.mxu0 0.0
    %3288 = vmatpush1.msra.mxu0 0.0
    %3289 = vmatprep.subr.mxu0 0.0
    %3290 = vmatpush1.msra.mxu0 0.0
    %3291 = vmatprep.subr.mxu0 0.0
    %3292 = vmatpush1.msra.mxu0 0.0
    %3293 = vmatprep.mubr.f32.mxu0 0.0
    %3294 = vmatmul.mubr.f32.gmra.mrb[0].mxu0 %v3224
    %v3295 = vpop.f32.mrb[0].mxu0
    %v3296 = vadd.f32 %v3222, %v3295
    %v3297 = vpop.f32.mrb[0].mxu0
    %3298 = vmatprep.mubr.f32.mxu0 0.0
    %3299 = vmatmul.mubr.f32.gmra.mrb[0].mxu0 %v3227
    %v3300 = vpop.f32.mrb[0].mxu0
    %v3301 = vadd.f32 %v3222, %v3300
    %v3302 = vpop.f32.mrb[0].mxu0
    %3303 = vdwg.mxu0
    %v3304 = vmax.f32 %v3296, 0.0
    %v3305 = vmax.f32 %v3301, 0.0
    %s3306 = scalar_lea.vmem %s9, 64
    %v3307 = vld [vmem:[%s3306] sm:$0xff]
    %v3308 = vld [vmem:[%s3306 + $0x8] sm:$0xff]
    %v3309 = vld [vmem:[%s3306 + $0x10] sm:$0xff]
    %v3310 = vld [vmem:[%s3306 + $0x18] sm:$0xff]
    %v3311 = vld [vmem:[%s3306 + $0x20] sm:$0xff]
    %v3312 = vld [vmem:[%s3306 + $0x28] sm:$0xff]
    %v3313 = vld [vmem:[%s3306 + $0x30] sm:$0xff]
    %v3314 = vld [vmem:[%s3306 + $0x38] sm:$0xff]
    %v3315 = vld [vmem:[%s3163 + $0x3] sm:$0x1]
    %v3316 = vlaneseq
    %v3317 = vshrl.u32 %v3316, 7
    %v3318 = vsub.s32 0, %v3317
    %v3319 = vrot.slane %v3315, %v3318
    %v3321 = vsel %vm1714, %v3304, 0
    %v3324 = vsel %vm1714, %v3305, 0
    %3326 = vmatprep.subr.mxu0 0.0
    %3327 = vmatpush1.msra.mxu0 %v3307
    %3328 = vmatprep.subr.mxu0 0.0
    %3329 = vmatpush1.msra.mxu0 %v3308
    %3330 = vmatprep.subr.mxu0 0.0
    %3331 = vmatpush1.msra.mxu0 %v3309
    %3332 = vmatprep.subr.mxu0 0.0
    %3333 = vmatpush1.msra.mxu0 %v3310
    %3334 = vmatprep.subr.mxu0 0.0
    %3335 = vmatpush1.msra.mxu0 %v3311
    %3336 = vmatprep.subr.mxu0 0.0
    %3337 = vmatpush1.msra.mxu0 %v3312
    %3338 = vmatprep.subr.mxu0 0.0
    %3339 = vmatpush1.msra.mxu0 %v3313
    %3340 = vmatprep.subr.mxu0 0.0
    %3341 = vmatpush1.msra.mxu0 %v3314
    %3342 = vmatprep.subr.mxu0 0.0
    %3343 = vmatpush1.msra.mxu0 0.0
    %3344 = vmatprep.subr.mxu0 0.0
    %3345 = vmatpush1.msra.mxu0 0.0
    %3346 = vmatprep.subr.mxu0 0.0
    %3347 = vmatpush1.msra.mxu0 0.0
    %3348 = vmatprep.subr.mxu0 0.0
    %3349 = vmatpush1.msra.mxu0 0.0
    %3350 = vmatprep.subr.mxu0 0.0
    %3351 = vmatpush1.msra.mxu0 0.0
    %3352 = vmatprep.subr.mxu0 0.0
    %3353 = vmatpush1.msra.mxu0 0.0
    %3354 = vmatprep.subr.mxu0 0.0
    %3355 = vmatpush1.msra.mxu0 0.0
    %3356 = vmatprep.subr.mxu0 0.0
    %3357 = vmatpush1.msra.mxu0 0.0
    %3358 = vmatprep.subr.mxu0 0.0
    %3359 = vmatpush1.msra.mxu0 0.0
    %3360 = vmatprep.subr.mxu0 0.0
    %3361 = vmatpush1.msra.mxu0 0.0
    %3362 = vmatprep.subr.mxu0 0.0
    %3363 = vmatpush1.msra.mxu0 0.0
    %3364 = vmatprep.subr.mxu0 0.0
    %3365 = vmatpush1.msra.mxu0 0.0
    %3366 = vmatprep.subr.mxu0 0.0
    %3367 = vmatpush1.msra.mxu0 0.0
    %3368 = vmatprep.subr.mxu0 0.0
    %3369 = vmatpush1.msra.mxu0 0.0
    %3370 = vmatprep.subr.mxu0 0.0
    %3371 = vmatpush1.msra.mxu0 0.0
    %3372 = vmatprep.subr.mxu0 0.0
    %3373 = vmatpush1.msra.mxu0 0.0
    %3374 = vmatprep.subr.mxu0 0.0
    %3375 = vmatpush1.msra.mxu0 0.0
    %3376 = vmatprep.subr.mxu0 0.0
    %3377 = vmatpush1.msra.mxu0 0.0
    %3378 = vmatprep.subr.mxu0 0.0
    %3379 = vmatpush1.msra.mxu0 0.0
    %3380 = vmatprep.subr.mxu0 0.0
    %3381 = vmatpush1.msra.mxu0 0.0
    %3382 = vmatprep.subr.mxu0 0.0
    %3383 = vmatpush1.msra.mxu0 0.0
    %3384 = vmatprep.subr.mxu0 0.0
    %3385 = vmatpush1.msra.mxu0 0.0
    %3386 = vmatprep.subr.mxu0 0.0
    %3387 = vmatpush1.msra.mxu0 0.0
    %3388 = vmatprep.subr.mxu0 0.0
    %3389 = vmatpush1.msra.mxu0 0.0
    %3390 = vmatprep.mubr.f32.mxu0 0.0
    %3391 = vmatmul.mubr.f32.gmra.mrb[0].mxu0 %v3321
    %v3392 = vpop.f32.mrb[0].mxu0
    %v3393 = vadd.f32 %v3319, %v3392
    %v3394 = vpop.f32.mrb[0].mxu0
    %3395 = vmatprep.mubr.f32.mxu0 0.0
    %3396 = vmatmul.mubr.f32.gmra.mrb[0].mxu0 %v3324
    %v3397 = vpop.f32.mrb[0].mxu0
    %v3398 = vadd.f32 %v3319, %v3397
    %v3399 = vpop.f32.mrb[0].mxu0
    %3400 = vdwg.mxu0
    %v3401 = vadd.f32 %v3211, %v3393
    %v3402 = vadd.f32 %v3212, %v3398
    %v3403 = vld [vmem:[%s3163 + $0x4] sm:$0x1]
    %v3404 = vld [vmem:[%s3163 + $0x5] sm:$0x1]
    %v3405 = vsel %vm150, %v3401, 0.0
    %3406 = vadd.xlane.f32.xlu0 %v3405
    %v3407 = vpop.xlane.xlu0 %3406
    %v3408 = vsel %vm150, %v3402, 0.0
    %3409 = vadd.xlane.f32.xlu0 %v3408
    %v3410 = vpop.xlane.xlu0 %3409
    %v3411 = vmul.f32 %v3407, %v1576
    %v3412 = vmul.f32 %v3410, %v1576
    %v3413 = vsub.f32 %v3401, %v3411
    %v3414 = vsub.f32 %v3402, %v3412
    %v3415 = vmul.f32 %v3413, %v3413
    %v3416 = vmul.f32 %v3414, %v3414
    %v3417 = vsel %vm150, %v3415, 0.0
    %3418 = vadd.xlane.f32.xlu0 %v3417
    %v3419 = vpop.xlane.xlu0 %3418
    %v3420 = vsel %vm150, %v3416, 0.0
    %3421 = vadd.xlane.f32.xlu0 %v3420
    %v3422 = vpop.xlane.xlu0 %3421
    %v3423 = vmul.f32 %v3419, %v1576
    %v3424 = vmul.f32 %v3422, %v1576
    %v3425 = vadd.f32 %v3423, 1e-05
    %v3426 = vadd.f32 %v3424, 1e-05
    %v3427 = vrsqrt.pop %v3425
    %v3428 = vrsqrt.pop %v3426
    %v3429 = vmul.f32 %v3413, %v3427
    %v3430 = vmul.f32 %v3414, %v3428
    %v3431 = vlaneseq
    %v3432 = vshrl.u32 %v3431, 7
    %v3433 = vsub.s32 0, %v3432
    %v3434 = vrot.slane %v3403, %v3433
    %v3435 = vmul.f32 %v3429, %v3434
    %v3436 = vmul.f32 %v3430, %v3434
    %v3437 = vlaneseq
    %v3438 = vshrl.u32 %v3437, 7
    %v3439 = vsub.s32 0, %v3438
    %v3440 = vrot.slane %v3404, %v3439
    %v3441 = vadd.f32 %v3435, %v3440
    %v3442 = vadd.f32 %v3436, %v3440
    %s3443 = scalar_lea.vmem %s3, 32
    %v3444 = vld [vmem:[%s3443] sm:$0xff]
    %v3445 = vld [vmem:[%s3443 + $0x8] sm:$0xff]
    %v3446 = vld [vmem:[%s3443 + $0x10] sm:$0xff]
    %v3447 = vld [vmem:[%s3443 + $0x18] sm:$0xff]
    %v3448 = vld [vmem:[%s4 + $0x2] sm:$0x1]
    %v3449 = vlaneseq
    %v3450 = vshrl.u32 %v3449, 7
    %v3451 = vsub.s32 0, %v3450
    %v3452 = vrot.slane %v3448, %v3451
    %v3454 = vsel %vm150, %v3441, 0
    %v3457 = vsel %vm150, %v3442, 0
    %3459 = vmatprep.subr.mxu0 0.0
    %3460 = vmatpush1.msra.mxu0 %v3444
    %3461 = vmatprep.subr.mxu0 0.0
    %3462 = vmatpush1.msra.mxu0 %v3445
    %3463 = vmatprep.subr.mxu0 0.0
    %3464 = vmatpush1.msra.mxu0 %v3446
    %3465 = vmatprep.subr.mxu0 0.0
    %3466 = vmatpush1.msra.mxu0 %v3447
    %3467 = vmatprep.subr.mxu0 0.0
    %3468 = vmatpush1.msra.mxu0 0.0
    %3469 = vmatprep.subr.mxu0 0.0
    %3470 = vmatpush1.msra.mxu0 0.0
    %3471 = vmatprep.subr.mxu0 0.0
    %3472 = vmatpush1.msra.mxu0 0.0
    %3473 = vmatprep.subr.mxu0 0.0
    %3474 = vmatpush1.msra.mxu0 0.0
    %3475 = vmatprep.subr.mxu0 0.0
    %3476 = vmatpush1.msra.mxu0 0.0
    %3477 = vmatprep.subr.mxu0 0.0
    %3478 = vmatpush1.msra.mxu0 0.0
    %3479 = vmatprep.subr.mxu0 0.0
    %3480 = vmatpush1.msra.mxu0 0.0
    %3481 = vmatprep.subr.mxu0 0.0
    %3482 = vmatpush1.msra.mxu0 0.0
    %3483 = vmatprep.subr.mxu0 0.0
    %3484 = vmatpush1.msra.mxu0 0.0
    %3485 = vmatprep.subr.mxu0 0.0
    %3486 = vmatpush1.msra.mxu0 0.0
    %3487 = vmatprep.subr.mxu0 0.0
    %3488 = vmatpush1.msra.mxu0 0.0
    %3489 = vmatprep.subr.mxu0 0.0
    %3490 = vmatpush1.msra.mxu0 0.0
    %3491 = vmatprep.subr.mxu0 0.0
    %3492 = vmatpush1.msra.mxu0 0.0
    %3493 = vmatprep.subr.mxu0 0.0
    %3494 = vmatpush1.msra.mxu0 0.0
    %3495 = vmatprep.subr.mxu0 0.0
    %3496 = vmatpush1.msra.mxu0 0.0
    %3497 = vmatprep.subr.mxu0 0.0
    %3498 = vmatpush1.msra.mxu0 0.0
    %3499 = vmatprep.subr.mxu0 0.0
    %3500 = vmatpush1.msra.mxu0 0.0
    %3501 = vmatprep.subr.mxu0 0.0
    %3502 = vmatpush1.msra.mxu0 0.0
    %3503 = vmatprep.subr.mxu0 0.0
    %3504 = vmatpush1.msra.mxu0 0.0
    %3505 = vmatprep.subr.mxu0 0.0
    %3506 = vmatpush1.msra.mxu0 0.0
    %3507 = vmatprep.subr.mxu0 0.0
    %3508 = vmatpush1.msra.mxu0 0.0
    %3509 = vmatprep.subr.mxu0 0.0
    %3510 = vmatpush1.msra.mxu0 0.0
    %3511 = vmatprep.subr.mxu0 0.0
    %3512 = vmatpush1.msra.mxu0 0.0
    %3513 = vmatprep.subr.mxu0 0.0
    %3514 = vmatpush1.msra.mxu0 0.0
    %3515 = vmatprep.subr.mxu0 0.0
    %3516 = vmatpush1.msra.mxu0 0.0
    %3517 = vmatprep.subr.mxu0 0.0
    %3518 = vmatpush1.msra.mxu0 0.0
    %3519 = vmatprep.subr.mxu0 0.0
    %3520 = vmatpush1.msra.mxu0 0.0
    %3521 = vmatprep.subr.mxu0 0.0
    %3522 = vmatpush1.msra.mxu0 0.0
    %3523 = vmatprep.mubr.f32.mxu0 0.0
    %3524 = vmatmul.mubr.f32.gmra.mrb[0].mxu0 %v3454
    %v3525 = vpop.f32.mrb[0].mxu0
    %v3526 = vadd.f32 %v3452, %v3525
    %v3527 = vpop.f32.mrb[0].mxu0
    %3528 = vmatprep.mubr.f32.mxu0 0.0
    %3529 = vmatmul.mubr.f32.gmra.mrb[0].mxu0 %v3457
    %v3530 = vpop.f32.mrb[0].mxu0
    %v3531 = vadd.f32 %v3452, %v3530
    %v3532 = vpop.f32.mrb[0].mxu0
    %3533 = vdwg.mxu0
    %v3534 = vld [vmem:[%s4 + $0x3] sm:$0x1]
    %v3535 = vld [vmem:[%s4 + $0x4] sm:$0x1]
    %v3536 = vsel %vm150, %v3526, 0.0
    %3537 = vadd.xlane.f32.xlu0 %v3536
    %v3538 = vpop.xlane.xlu0 %3537
    %v3539 = vsel %vm150, %v3531, 0.0
    %3540 = vadd.xlane.f32.xlu0 %v3539
    %v3541 = vpop.xlane.xlu0 %3540
    %v3542 = vmul.f32 %v3538, %v1576
    %v3543 = vmul.f32 %v3541, %v1576
    %v3544 = vsub.f32 %v3526, %v3542
    %v3545 = vsub.f32 %v3531, %v3543
    %v3546 = vmul.f32 %v3544, %v3544
    %v3547 = vmul.f32 %v3545, %v3545
    %v3548 = vsel %vm150, %v3546, 0.0
    %3549 = vadd.xlane.f32.xlu0 %v3548
    %v3550 = vpop.xlane.xlu0 %3549
    %v3551 = vsel %vm150, %v3547, 0.0
    %3552 = vadd.xlane.f32.xlu0 %v3551
    %v3553 = vpop.xlane.xlu0 %3552
    %v3554 = vmul.f32 %v3550, %v1576
    %v3555 = vmul.f32 %v3553, %v1576
    %v3556 = vadd.f32 %v3554, 1e-05
    %v3557 = vadd.f32 %v3555, 1e-05
    %v3558 = vrsqrt.pop %v3556
    %v3559 = vrsqrt.pop %v3557
    %v3560 = vmul.f32 %v3544, %v3558
    %v3561 = vmul.f32 %v3545, %v3559
    %v3562 = vlaneseq
    %v3563 = vshrl.u32 %v3562, 7
    %v3564 = vsub.s32 0, %v3563
    %v3565 = vrot.slane %v3534, %v3564
    %v3566 = vmul.f32 %v3560, %v3565
    %v3567 = vmul.f32 %v3561, %v3565
    %v3568 = vlaneseq
    %v3569 = vshrl.u32 %v3568, 7
    %v3570 = vsub.s32 0, %v3569
    %v3571 = vrot.slane %v3535, %v3570
    %v3572 = vadd.f32 %v3566, %v3571
    %v3573 = vadd.f32 %v3567, %v3571
    %v3574 = vmax.f32 %v3572, 0.0
    %v3575 = vmax.f32 %v3573, 0.0
    %s3576 = scalar_lea.vmem %s3, 64
    %v3577 = vld [vmem:[%s3576] sm:$0xff]
    %v3578 = vld [vmem:[%s3576 + $0x8] sm:$0xff]
    %v3579 = vld [vmem:[%s3576 + $0x10] sm:$0xff]
    %v3580 = vld [vmem:[%s3576 + $0x18] sm:$0xff]
    %v3581 = vld [vmem:[%s4 + $0x5] sm:$0x1]
    %v3582 = vlaneseq
    %v3583 = vshrl.u32 %v3582, 7
    %v3584 = vsub.s32 0, %v3583
    %v3585 = vrot.slane %v3581, %v3584
    %v3587 = vsel %vm150, %v3574, 0
    %v3590 = vsel %vm150, %v3575, 0
    %3592 = vmatprep.subr.mxu0 0.0
    %3593 = vmatpush1.msra.mxu0 %v3577
    %3594 = vmatprep.subr.mxu0 0.0
    %3595 = vmatpush1.msra.mxu0 %v3578
    %3596 = vmatprep.subr.mxu0 0.0
    %3597 = vmatpush1.msra.mxu0 %v3579
    %3598 = vmatprep.subr.mxu0 0.0
    %3599 = vmatpush1.msra.mxu0 %v3580
    %3600 = vmatprep.subr.mxu0 0.0
    %3601 = vmatpush1.msra.mxu0 0.0
    %3602 = vmatprep.subr.mxu0 0.0
    %3603 = vmatpush1.msra.mxu0 0.0
    %3604 = vmatprep.subr.mxu0 0.0
    %3605 = vmatpush1.msra.mxu0 0.0
    %3606 = vmatprep.subr.mxu0 0.0
    %3607 = vmatpush1.msra.mxu0 0.0
    %3608 = vmatprep.subr.mxu0 0.0
    %3609 = vmatpush1.msra.mxu0 0.0
    %3610 = vmatprep.subr.mxu0 0.0
    %3611 = vmatpush1.msra.mxu0 0.0
    %3612 = vmatprep.subr.mxu0 0.0
    %3613 = vmatpush1.msra.mxu0 0.0
    %3614 = vmatprep.subr.mxu0 0.0
    %3615 = vmatpush1.msra.mxu0 0.0
    %3616 = vmatprep.subr.mxu0 0.0
    %3617 = vmatpush1.msra.mxu0 0.0
    %3618 = vmatprep.subr.mxu0 0.0
    %3619 = vmatpush1.msra.mxu0 0.0
    %3620 = vmatprep.subr.mxu0 0.0
    %3621 = vmatpush1.msra.mxu0 0.0
    %3622 = vmatprep.subr.mxu0 0.0
    %3623 = vmatpush1.msra.mxu0 0.0
    %3624 = vmatprep.subr.mxu0 0.0
    %3625 = vmatpush1.msra.mxu0 0.0
    %3626 = vmatprep.subr.mxu0 0.0
    %3627 = vmatpush1.msra.mxu0 0.0
    %3628 = vmatprep.subr.mxu0 0.0
    %3629 = vmatpush1.msra.mxu0 0.0
    %3630 = vmatprep.subr.mxu0 0.0
    %3631 = vmatpush1.msra.mxu0 0.0
    %3632 = vmatprep.subr.mxu0 0.0
    %3633 = vmatpush1.msra.mxu0 0.0
    %3634 = vmatprep.subr.mxu0 0.0
    %3635 = vmatpush1.msra.mxu0 0.0
    %3636 = vmatprep.subr.mxu0 0.0
    %3637 = vmatpush1.msra.mxu0 0.0
    %3638 = vmatprep.subr.mxu0 0.0
    %3639 = vmatpush1.msra.mxu0 0.0
    %3640 = vmatprep.subr.mxu0 0.0
    %3641 = vmatpush1.msra.mxu0 0.0
    %3642 = vmatprep.subr.mxu0 0.0
    %3643 = vmatpush1.msra.mxu0 0.0
    %3644 = vmatprep.subr.mxu0 0.0
    %3645 = vmatpush1.msra.mxu0 0.0
    %3646 = vmatprep.subr.mxu0 0.0
    %3647 = vmatpush1.msra.mxu0 0.0
    %3648 = vmatprep.subr.mxu0 0.0
    %3649 = vmatpush1.msra.mxu0 0.0
    %3650 = vmatprep.subr.mxu0 0.0
    %3651 = vmatpush1.msra.mxu0 0.0
    %3652 = vmatprep.subr.mxu0 0.0
    %3653 = vmatpush1.msra.mxu0 0.0
    %3654 = vmatprep.subr.mxu0 0.0
    %3655 = vmatpush1.msra.mxu0 0.0
    %3656 = vmatprep.mubr.f32.mxu0 0.0
    %3657 = vmatmul.mubr.f32.gmra.mrb[0].mxu0 %v3587
    %v3658 = vpop.f32.mrb[0].mxu0
    %v3659 = vadd.f32 %v3585, %v3658
    %v3660 = vpop.f32.mrb[0].mxu0
    %3661 = vmatprep.mubr.f32.mxu0 0.0
    %3662 = vmatmul.mubr.f32.gmra.mrb[0].mxu0 %v3590
    %v3663 = vpop.f32.mrb[0].mxu0
    %v3664 = vadd.f32 %v3585, %v3663
    %v3665 = vpop.f32.mrb[0].mxu0
    %3666 = vdwg.mxu0
    %v3667 = vmax.f32 %v3659, 0.0
    %v3668 = vmax.f32 %v3664, 0.0
    %v3669 = vld [vmem:[%s12] sm:$0xff]
    %v3670 = vld [vmem:[%s12 + $0x8] sm:$0xff]
    %v3671 = vld [vmem:[%s12 + $0x10] sm:$0xff]
    %v3672 = vld [vmem:[%s12 + $0x18] sm:$0xff]
    %v3673 = vld [vmem:[%s13] sm:$0x1]
    %v3675 = vlaneseq
    %v3676 = vshrl.u32 %v3675, 7
    %v3677 = vsub.s32 0, %v3676
    %v3678 = vrot.slane %v3673, %v3677
    %v3681 = vsel %vm150, %v3667, 0
    %v3684 = vsel %vm150, %v3668, 0
    %3686 = vmatprep.subr.mxu0 0.0
    %3687 = vmatpush1.msra.mxu0 %v3669
    %3688 = vmatprep.subr.mxu0 0.0
    %3689 = vmatpush1.msra.mxu0 %v3670
    %3690 = vmatprep.subr.mxu0 0.0
    %3691 = vmatpush1.msra.mxu0 %v3671
    %3692 = vmatprep.subr.mxu0 0.0
    %3693 = vmatpush1.msra.mxu0 %v3672
    %3694 = vmatprep.subr.mxu0 0.0
    %3695 = vmatpush1.msra.mxu0 0.0
    %3696 = vmatprep.subr.mxu0 0.0
    %3697 = vmatpush1.msra.mxu0 0.0
    %3698 = vmatprep.subr.mxu0 0.0
    %3699 = vmatpush1.msra.mxu0 0.0
    %3700 = vmatprep.subr.mxu0 0.0
    %3701 = vmatpush1.msra.mxu0 0.0
    %3702 = vmatprep.subr.mxu0 0.0
    %3703 = vmatpush1.msra.mxu0 0.0
    %3704 = vmatprep.subr.mxu0 0.0
    %3705 = vmatpush1.msra.mxu0 0.0
    %3706 = vmatprep.subr.mxu0 0.0
    %3707 = vmatpush1.msra.mxu0 0.0
    %3708 = vmatprep.subr.mxu0 0.0
    %3709 = vmatpush1.msra.mxu0 0.0
    %3710 = vmatprep.subr.mxu0 0.0
    %3711 = vmatpush1.msra.mxu0 0.0
    %3712 = vmatprep.subr.mxu0 0.0
    %3713 = vmatpush1.msra.mxu0 0.0
    %3714 = vmatprep.subr.mxu0 0.0
    %3715 = vmatpush1.msra.mxu0 0.0
    %3716 = vmatprep.subr.mxu0 0.0
    %3717 = vmatpush1.msra.mxu0 0.0
    %3718 = vmatprep.subr.mxu0 0.0
    %3719 = vmatpush1.msra.mxu0 0.0
    %3720 = vmatprep.subr.mxu0 0.0
    %3721 = vmatpush1.msra.mxu0 0.0
    %3722 = vmatprep.subr.mxu0 0.0
    %3723 = vmatpush1.msra.mxu0 0.0
    %3724 = vmatprep.subr.mxu0 0.0
    %3725 = vmatpush1.msra.mxu0 0.0
    %3726 = vmatprep.subr.mxu0 0.0
    %3727 = vmatpush1.msra.mxu0 0.0
    %3728 = vmatprep.subr.mxu0 0.0
    %3729 = vmatpush1.msra.mxu0 0.0
    %3730 = vmatprep.subr.mxu0 0.0
    %3731 = vmatpush1.msra.mxu0 0.0
    %3732 = vmatprep.subr.mxu0 0.0
    %3733 = vmatpush1.msra.mxu0 0.0
    %3734 = vmatprep.subr.mxu0 0.0
    %3735 = vmatpush1.msra.mxu0 0.0
    %3736 = vmatprep.subr.mxu0 0.0
    %3737 = vmatpush1.msra.mxu0 0.0
    %3738 = vmatprep.subr.mxu0 0.0
    %3739 = vmatpush1.msra.mxu0 0.0
    %3740 = vmatprep.subr.mxu0 0.0
    %3741 = vmatpush1.msra.mxu0 0.0
    %3742 = vmatprep.subr.mxu0 0.0
    %3743 = vmatpush1.msra.mxu0 0.0
    %3744 = vmatprep.subr.mxu0 0.0
    %3745 = vmatpush1.msra.mxu0 0.0
    %3746 = vmatprep.subr.mxu0 0.0
    %3747 = vmatpush1.msra.mxu0 0.0
    %3748 = vmatprep.subr.mxu0 0.0
    %3749 = vmatpush1.msra.mxu0 0.0
    %3750 = vmatprep.mubr.f32.mxu0 0.0
    %3751 = vmatmul.mubr.f32.gmra.mrb[0].mxu0 %v3681
    %v3752 = vpop.f32.mrb[0].mxu0
    %v3753 = vadd.f32 %v3678, %v3752
    %v3754 = vpop.f32.mrb[0].mxu0
    %3755 = vmatprep.mubr.f32.mxu0 0.0
    %3756 = vmatmul.mubr.f32.gmra.mrb[0].mxu0 %v3684
    %v3757 = vpop.f32.mrb[0].mxu0
    %v3758 = vadd.f32 %v3678, %v3757
    %v3759 = vpop.f32.mrb[0].mxu0
    %3760 = vdwg.mxu0
    %3761 = vst.msk [vmem:[#allocation2] sm:$0xff] %vm57, %v3753
    %3762 = vst.msk [vmem:[#allocation2 + $0x8] sm:$0xff] %vm57, %v3758
    // Predicated region
    $region58: #{transformer_predictor_forward.1} parent=1 // pred_check
      _
    $region59: #{transformer_predictor_forward.1} parent=1 // pred_check_branch
      %3764 = sbr.rel (0) target = $region61
    $region60: #{transformer_predictor_forward.1} parent=1 // pred_region
      %s3766 = ssub.s32 256, 256
      %3767 = vsyncadd [#allocation3], %s3766
      %s3768 = sshll.u32 [#allocation2], 4
      %s3769 = int_to_ptr.vmem [resolvable:$true] %s3768
      %3774 = dma.vmem_to_hbm [thread:$0]  %s3769, 256, %s14, [#allocation3], 128, 128, 8
    $region61: #{transformer_predictor_forward.1} parent=1 // pred_fallthru
      _
    // Predicated region
    $region62: #{transformer_predictor_forward.1} parent=1 // pred_check
      _
    $region63: #{transformer_predictor_forward.1} parent=1 // pred_check_branch
      %3776 = sbr.rel (0) target = $region65
    $region64: #{transformer_predictor_forward.1} parent=1 // pred_region
      %3777 = dma.done [#allocation3], 256
    $region65: #{transformer_predictor_forward.1} parent=1 // pred_fallthru
      _
    %3778 = vsyncpa [#allocation3], 1

</llo_original>
